<compile_context>
chip_gen: v7x
topology: tpu7x:2x2x1
jax: 0.10.0
libtpu: 0.0.40
codegen_flags: <defaults>
</compile_context>

<pallas_src>
import jax
import jax.numpy as jnp
from jax.experimental import pallas as pl
from jax.experimental.pallas import tpu as pltpu


# ----------------------------------------------------------------------------
# Fused per-batch-block kernel
# ----------------------------------------------------------------------------
def _clf_fused_kernel(x_ref, w1e_ref, w1o_ref, b1_ref, w2e_ref, w2o_ref, b2_ref,
                      fc1w_ref, fc1b_ref, fc2w_ref, fc2b_ref, out_ref):
    f32 = jnp.float32
    BT = x_ref.shape[0]                       # images per grid step

    # ---- conv1 (5x5, 1->10) as banded MXU matmuls; width-pool folded into
    #      separate even/odd weight matrices (lanes = w'*10 + out_ch) --------
    X = x_ref[...].reshape(BT * 32, 28)       # rows = (image, padded input row)
    acc_e = jnp.zeros((BT, 24, 120), f32)     # conv1 output at even columns
    acc_o = jnp.zeros((BT, 24, 120), f32)     # conv1 output at odd columns
    for di in range(5):
        ye = jnp.dot(X, w1e_ref[di], preferred_element_type=f32).reshape(BT, 32, 120)
        yo = jnp.dot(X, w1o_ref[di], preferred_element_type=f32).reshape(BT, 32, 120)
        acc_e = acc_e + ye[:, di:di + 24, :]
        acc_o = acc_o + yo[:, di:di + 24, :]

    m = jnp.maximum(acc_e, acc_o) + b1_ref[...]        # width-pair max + bias
    m = m.reshape(BT, 12, 2, 120)                      # split H into (row, parity)
    a1 = jnp.maximum(m[:, :, 0, :], m[:, :, 1, :])     # full 2x2 max
    a1 = jnp.maximum(a1, 0.0)                          # (BT, 12, 120), lanes=(w', ch)

    # ---- conv2 (5x5, 10->20): 10 banded MXU matmuls, width-pool folded -----
    acc2e = jnp.zeros((BT * 8, 80), f32)               # even output columns
    acc2o = jnp.zeros((BT * 8, 80), f32)               # odd  output columns
    for di in range(5):
        sl = a1[:, di:di + 8, :].reshape(BT * 8, 120)
        acc2e = acc2e + jnp.dot(sl, w2e_ref[di], preferred_element_type=f32)
        acc2o = acc2o + jnp.dot(sl, w2o_ref[di], preferred_element_type=f32)
    # TODO(synk): Dropout2d is identity in eval mode; no stochastic drop.
    m2 = jnp.maximum(acc2e, acc2o) + b2_ref[...]       # (BT*8, 80) width pooled
    m2 = m2.reshape(BT, 4, 2, 80)
    a2 = jnp.maximum(m2[:, :, 0, :], m2[:, :, 1, :])   # full 2x2 max
    a2 = jnp.maximum(a2, 0.0)                          # (BT, 4, 80), lanes=(w', ch)

    # ---- fc1 (320->50): NCHW flatten folded into the (4, 80, 50) weights ----
    h1 = jnp.zeros((BT, 50), f32)
    for i in range(4):
        h1 = h1 + jnp.dot(a2[:, i, :], fc1w_ref[i], preferred_element_type=f32)
    h1 = jnp.maximum(h1 + fc1b_ref[...], 0.0)          # (BT, 50)
    # TODO(synk): F.dropout is identity in eval mode.

    # ---- fc2 (50->10) -------------------------------------------------------
    out = jnp.dot(h1, fc2w_ref[...], preferred_element_type=f32) + fc2b_ref[...]
    out_ref[...] = out.astype(out_ref.dtype)           # (BT, 10)


# ----------------------------------------------------------------------------
# Wrapper: one fused pallas_call, grid over batch blocks
# ----------------------------------------------------------------------------
def clf_forward(x_nchw, params):
    # x_nchw: (N, 1, 28, 28) exactly like the PyTorch module expects.
    N = x_nchw.shape[0]
    BT = int(min(8, N))                       # images per grid step
    n_pad = ((N + BT - 1) // BT) * BT
    f32 = jnp.float32

    # Pad rows 28->32 (so in-kernel (BT,32,28)->(BT*32,28) reshape is free) and
    # pad the batch up to a multiple of the block size.
    x = x_nchw.reshape(N, 28, 28).astype(f32)
    x = jnp.pad(x, ((0, n_pad - N), (0, 4), (0, 0)))   # (n_pad, 32, 28)

    conv1_w = params["conv1_w"].astype(f32)   # (10, 1, 5, 5)
    conv1_b = params["conv1_b"].astype(f32)
    conv2_w = params["conv2_w"].astype(f32)   # (20, 10, 5, 5)
    conv2_b = params["conv2_b"].astype(f32)
    fc1_w = params["fc1_w"].astype(f32)       # (50, 320)
    fc1_b = params["fc1_b"].astype(f32)
    fc2_w = params["fc2_w"].astype(f32)       # (10, 50)
    fc2_b = params["fc2_b"].astype(f32)

    # conv1 banded matrices (5, 28, 120): cols = (pooled w', out_ch); parity p
    # selects even (p=0) / odd (p=1) pre-pool output columns.
    A1 = jnp.transpose(conv1_w[:, 0], (1, 2, 0))        # (di, dj, oc)
    col = jnp.arange(28)[:, None]
    wq1 = jnp.arange(12)[None, :]

    def band1(p):
        dj = col - 2 * wq1 - p                          # (28, 12)
        valid = ((dj >= 0) & (dj <= 4)).astype(f32)
        djc = jnp.clip(dj, 0, 4)
        b = A1[:, djc, :] * valid[None, :, :, None]     # (5, 28, 12, 10)
        return b.reshape(5, 28, 120)

    w1e, w1o = band1(0), band1(1)
    b1t = jnp.tile(conv1_b, 12).reshape(1, 120)

    # conv2 banded matrices (5, 120, 80): rows = (w, in_ch), cols = (pooled w', out_ch).
    A2 = jnp.transpose(conv2_w, (2, 3, 1, 0))           # (di, dj, ci, oc)
    wi = jnp.arange(12)[:, None]
    wq2 = jnp.arange(4)[None, :]

    def band2(p):
        dj = wi - 2 * wq2 - p                           # (12, 4)
        valid = ((dj >= 0) & (dj <= 4)).astype(f32)
        djc = jnp.clip(dj, 0, 4)
        b = A2[:, djc, :, :] * valid[None, :, :, None, None]   # (5, 12, 4, 10, 20)
        b = jnp.transpose(b, (0, 1, 3, 2, 4))           # (5, 12, 10, 4, 20)
        return b.reshape(5, 120, 80)

    w2e, w2o = band2(0), band2(1)
    b2t = jnp.tile(conv2_b, 4).reshape(1, 80)

    # Fold PyTorch's NCHW flatten (x.view(-1, 320)) into fc1's weight layout:
    # fc1wp[i, j*20 + c, o] = fc1_w[o, c*16 + i*4 + j].
    fc1wp = jnp.transpose(fc1_w.reshape(50, 20, 4, 4), (2, 3, 1, 0)).reshape(4, 80, 50)
    fc1bp = fc1_b.reshape(1, 50)
    fc2wp = fc2_w.T                                     # (50, 10)
    fc2bp = fc2_b.reshape(1, 10)

    out = pl.pallas_call(
        _clf_fused_kernel,
        out_shape=jax.ShapeDtypeStruct((n_pad, 10), jnp.float32),
        grid=(n_pad // BT,),
        in_specs=[
            pl.BlockSpec((BT, 32, 28), lambda n: (n, 0, 0)),     # images
            pl.BlockSpec((5, 28, 120), lambda n: (0, 0, 0)),     # conv1 w (even)
            pl.BlockSpec((5, 28, 120), lambda n: (0, 0, 0)),     # conv1 w (odd)
            pl.BlockSpec((1, 120), lambda n: (0, 0)),            # conv1 b (tiled)
            pl.BlockSpec((5, 120, 80), lambda n: (0, 0, 0)),     # conv2 w (even)
            pl.BlockSpec((5, 120, 80), lambda n: (0, 0, 0)),     # conv2 w (odd)
            pl.BlockSpec((1, 80), lambda n: (0, 0)),             # conv2 b (tiled)
            pl.BlockSpec((4, 80, 50), lambda n: (0, 0, 0)),      # fc1 w
            pl.BlockSpec((1, 50), lambda n: (0, 0)),             # fc1 b
            pl.BlockSpec((50, 10), lambda n: (0, 0)),            # fc2 w
            pl.BlockSpec((1, 10), lambda n: (0, 0)),             # fc2 b
        ],
        out_specs=pl.BlockSpec((BT, 10), lambda n: (n, 0)),
        compiler_params=pltpu.CompilerParams(
            dimension_semantics=("parallel",)),
    )(x, w1e, w1o, b1t, w2e, w2o, b2t, fc1wp, fc1bp, fc2wp, fc2bp)
    return out[:N]


def init_params(key):
    ks = jax.random.split(key, 8)

    def u(k, shape, fan_in):
        bound = 1.0 / jnp.sqrt(jnp.float32(fan_in))
        return jax.random.uniform(k, shape, jnp.float32, -bound, bound)

    return {
        "conv1_w": u(ks[0], (10, 1, 5, 5), 25),
        "conv1_b": u(ks[1], (10,), 25),
        "conv2_w": u(ks[2], (20, 10, 5, 5), 250),
        "conv2_b": u(ks[3], (20,), 250),
        "fc1_w": u(ks[4], (50, 320), 320),
        "fc1_b": u(ks[5], (50,), 320),
        "fc2_w": u(ks[6], (10, 50), 50),
        "fc2_b": u(ks[7], (10,), 50),
    }


if __name__ == "__main__":
    key = jax.random.PRNGKey(0)
    pkey, xkey = jax.random.split(key)
    params = init_params(pkey)
    # Spatial size 28x28 is implied by fc1's 320 = 20 * 4 * 4 input features.
    x = jax.random.normal(xkey, (2, 1, 28, 28), jnp.float32)
    out = jax.jit(clf_forward)(x, params)
    jax.block_until_ready(out)
    assert out.shape == (2, 10) and out.dtype == jnp.float32
    print("KERNEL_OK")
</pallas_src>

<mosaic_0001>
module attributes {stable_mosaic.version = 11 : i64} {
  func.func @_clf_fused_kernel(%arg0: i32, %arg1: memref<2x32x28xf32, #tpu.memory_space<vmem>>, %arg2: memref<5x28x120xf32, #tpu.memory_space<vmem>>, %arg3: memref<5x28x120xf32, #tpu.memory_space<vmem>>, %arg4: memref<1x120xf32, #tpu.memory_space<vmem>>, %arg5: memref<5x120x80xf32, #tpu.memory_space<vmem>>, %arg6: memref<5x120x80xf32, #tpu.memory_space<vmem>>, %arg7: memref<1x80xf32, #tpu.memory_space<vmem>>, %arg8: memref<4x80x50xf32, #tpu.memory_space<vmem>>, %arg9: memref<1x50xf32, #tpu.memory_space<vmem>>, %arg10: memref<50x10xf32, #tpu.memory_space<vmem>>, %arg11: memref<1x10xf32, #tpu.memory_space<vmem>>, %arg12: memref<2x10xf32, #tpu.memory_space<vmem>>) attributes {dimension_semantics = [#tpu.dimension_semantics<parallel>], iteration_bounds = array<i64: 1>, scalar_prefetch = 0 : i64, scratch_operands = 0 : i64, tpu.core_type = #tpu.core_type<tc>, window_params = [{transform_indices = @transform_0, window_bounds = array<i64: 2, 32, 28>}, {pipeline_mode = #tpu.pipeline_mode<synchronous>, transform_indices = @transform_1, window_bounds = array<i64: 5, 28, 120>}, {pipeline_mode = #tpu.pipeline_mode<synchronous>, transform_indices = @transform_2, window_bounds = array<i64: 5, 28, 120>}, {pipeline_mode = #tpu.pipeline_mode<synchronous>, transform_indices = @transform_3, window_bounds = array<i64: 1, 120>}, {pipeline_mode = #tpu.pipeline_mode<synchronous>, transform_indices = @transform_4, window_bounds = array<i64: 5, 120, 80>}, {pipeline_mode = #tpu.pipeline_mode<synchronous>, transform_indices = @transform_5, window_bounds = array<i64: 5, 120, 80>}, {pipeline_mode = #tpu.pipeline_mode<synchronous>, transform_indices = @transform_6, window_bounds = array<i64: 1, 80>}, {pipeline_mode = #tpu.pipeline_mode<synchronous>, transform_indices = @transform_7, window_bounds = array<i64: 4, 80, 50>}, {pipeline_mode = #tpu.pipeline_mode<synchronous>, transform_indices = @transform_8, window_bounds = array<i64: 1, 50>}, {pipeline_mode = #tpu.pipeline_mode<synchronous>, transform_indices = @transform_9, window_bounds = array<i64: 50, 10>}, {pipeline_mode = #tpu.pipeline_mode<synchronous>, transform_indices = @transform_10, window_bounds = array<i64: 1, 10>}, {transform_indices = @transform_11, window_bounds = array<i64: 2, 10>}]} {
    %c0 = arith.constant 0 : index
    %c0_0 = arith.constant 0 : index
    %c0_1 = arith.constant 0 : index
    %0 = vector.load %arg1[%c0, %c0_0, %c0_1] : memref<2x32x28xf32, #tpu.memory_space<vmem>>, vector<2x32x28xf32>
    %1 = vector.shape_cast %0 : vector<2x32x28xf32> to vector<64x28xf32>
    %cst = arith.constant 0.000000e+00 : f32
    %2 = vector.broadcast %cst : f32 to vector<2x24x120xf32>
    %cst_2 = arith.constant 0.000000e+00 : f32
    %3 = vector.broadcast %cst_2 : f32 to vector<2x24x120xf32>
    %c0_3 = arith.constant 0 : index
    %c0_4 = arith.constant 0 : index
    %c0_5 = arith.constant 0 : index
    %4 = vector.load %arg2[%c0_3, %c0_4, %c0_5] : memref<5x28x120xf32, #tpu.memory_space<vmem>>, vector<1x28x120xf32>
    %5 = vector.shape_cast %4 : vector<1x28x120xf32> to vector<28x120xf32>
    %cst_6 = arith.constant dense<0.000000e+00> : vector<64x120xf32>
    %6 = tpu.matmul %1, %5, %cst_6 {dimension_numbers = #tpu.dot_dimension_numbers<[1], [0], [0], [1], [0, 0, 1, 1], [], []>} : vector<64x28xf32>, vector<28x120xf32>, vector<64x120xf32> -> vector<64x120xf32>
    %7 = vector.shape_cast %6 : vector<64x120xf32> to vector<2x32x120xf32>
    %c0_7 = arith.constant 0 : index
    %c0_8 = arith.constant 0 : index
    %c0_9 = arith.constant 0 : index
    %8 = vector.load %arg3[%c0_7, %c0_8, %c0_9] : memref<5x28x120xf32, #tpu.memory_space<vmem>>, vector<1x28x120xf32>
    %9 = vector.shape_cast %8 : vector<1x28x120xf32> to vector<28x120xf32>
    %cst_10 = arith.constant dense<0.000000e+00> : vector<64x120xf32>
    %10 = tpu.matmul %1, %9, %cst_10 {dimension_numbers = #tpu.dot_dimension_numbers<[1], [0], [0], [1], [0, 0, 1, 1], [], []>} : vector<64x28xf32>, vector<28x120xf32>, vector<64x120xf32> -> vector<64x120xf32>
    %11 = vector.shape_cast %10 : vector<64x120xf32> to vector<2x32x120xf32>
    %12 = vector.extract_strided_slice %7 {offsets = [0, 0, 0], sizes = [2, 24, 120], strides = [1, 1, 1]} : vector<2x32x120xf32> to vector<2x24x120xf32>
    %13 = arith.addf %2, %12 : vector<2x24x120xf32>
    %14 = vector.extract_strided_slice %11 {offsets = [0, 0, 0], sizes = [2, 24, 120], strides = [1, 1, 1]} : vector<2x32x120xf32> to vector<2x24x120xf32>
    %15 = arith.addf %3, %14 : vector<2x24x120xf32>
    %c1 = arith.constant 1 : index
    %c0_11 = arith.constant 0 : index
    %c0_12 = arith.constant 0 : index
    %16 = vector.load %arg2[%c1, %c0_11, %c0_12] : memref<5x28x120xf32, #tpu.memory_space<vmem>>, vector<1x28x120xf32>
    %17 = vector.shape_cast %16 : vector<1x28x120xf32> to vector<28x120xf32>
    %cst_13 = arith.constant dense<0.000000e+00> : vector<64x120xf32>
    %18 = tpu.matmul %1, %17, %cst_13 {dimension_numbers = #tpu.dot_dimension_numbers<[1], [0], [0], [1], [0, 0, 1, 1], [], []>} : vector<64x28xf32>, vector<28x120xf32>, vector<64x120xf32> -> vector<64x120xf32>
    %19 = vector.shape_cast %18 : vector<64x120xf32> to vector<2x32x120xf32>
    %c1_14 = arith.constant 1 : index
    %c0_15 = arith.constant 0 : index
    %c0_16 = arith.constant 0 : index
    %20 = vector.load %arg3[%c1_14, %c0_15, %c0_16] : memref<5x28x120xf32, #tpu.memory_space<vmem>>, vector<1x28x120xf32>
    %21 = vector.shape_cast %20 : vector<1x28x120xf32> to vector<28x120xf32>
    %cst_17 = arith.constant dense<0.000000e+00> : vector<64x120xf32>
    %22 = tpu.matmul %1, %21, %cst_17 {dimension_numbers = #tpu.dot_dimension_numbers<[1], [0], [0], [1], [0, 0, 1, 1], [], []>} : vector<64x28xf32>, vector<28x120xf32>, vector<64x120xf32> -> vector<64x120xf32>
    %23 = vector.shape_cast %22 : vector<64x120xf32> to vector<2x32x120xf32>
    %24 = vector.extract_strided_slice %19 {offsets = [0, 1, 0], sizes = [2, 24, 120], strides = [1, 1, 1]} : vector<2x32x120xf32> to vector<2x24x120xf32>
    %25 = arith.addf %13, %24 : vector<2x24x120xf32>
    %26 = vector.extract_strided_slice %23 {offsets = [0, 1, 0], sizes = [2, 24, 120], strides = [1, 1, 1]} : vector<2x32x120xf32> to vector<2x24x120xf32>
    %27 = arith.addf %15, %26 : vector<2x24x120xf32>
    %c2 = arith.constant 2 : index
    %c0_18 = arith.constant 0 : index
    %c0_19 = arith.constant 0 : index
    %28 = vector.load %arg2[%c2, %c0_18, %c0_19] : memref<5x28x120xf32, #tpu.memory_space<vmem>>, vector<1x28x120xf32>
    %29 = vector.shape_cast %28 : vector<1x28x120xf32> to vector<28x120xf32>
    %cst_20 = arith.constant dense<0.000000e+00> : vector<64x120xf32>
    %30 = tpu.matmul %1, %29, %cst_20 {dimension_numbers = #tpu.dot_dimension_numbers<[1], [0], [0], [1], [0, 0, 1, 1], [], []>} : vector<64x28xf32>, vector<28x120xf32>, vector<64x120xf32> -> vector<64x120xf32>
    %31 = vector.shape_cast %30 : vector<64x120xf32> to vector<2x32x120xf32>
    %c2_21 = arith.constant 2 : index
    %c0_22 = arith.constant 0 : index
    %c0_23 = arith.constant 0 : index
    %32 = vector.load %arg3[%c2_21, %c0_22, %c0_23] : memref<5x28x120xf32, #tpu.memory_space<vmem>>, vector<1x28x120xf32>
    %33 = vector.shape_cast %32 : vector<1x28x120xf32> to vector<28x120xf32>
    %cst_24 = arith.constant dense<0.000000e+00> : vector<64x120xf32>
    %34 = tpu.matmul %1, %33, %cst_24 {dimension_numbers = #tpu.dot_dimension_numbers<[1], [0], [0], [1], [0, 0, 1, 1], [], []>} : vector<64x28xf32>, vector<28x120xf32>, vector<64x120xf32> -> vector<64x120xf32>
    %35 = vector.shape_cast %34 : vector<64x120xf32> to vector<2x32x120xf32>
    %36 = vector.extract_strided_slice %31 {offsets = [0, 2, 0], sizes = [2, 24, 120], strides = [1, 1, 1]} : vector<2x32x120xf32> to vector<2x24x120xf32>
    %37 = arith.addf %25, %36 : vector<2x24x120xf32>
    %38 = vector.extract_strided_slice %35 {offsets = [0, 2, 0], sizes = [2, 24, 120], strides = [1, 1, 1]} : vector<2x32x120xf32> to vector<2x24x120xf32>
    %39 = arith.addf %27, %38 : vector<2x24x120xf32>
    %c3 = arith.constant 3 : index
    %c0_25 = arith.constant 0 : index
    %c0_26 = arith.constant 0 : index
    %40 = vector.load %arg2[%c3, %c0_25, %c0_26] : memref<5x28x120xf32, #tpu.memory_space<vmem>>, vector<1x28x120xf32>
    %41 = vector.shape_cast %40 : vector<1x28x120xf32> to vector<28x120xf32>
    %cst_27 = arith.constant dense<0.000000e+00> : vector<64x120xf32>
    %42 = tpu.matmul %1, %41, %cst_27 {dimension_numbers = #tpu.dot_dimension_numbers<[1], [0], [0], [1], [0, 0, 1, 1], [], []>} : vector<64x28xf32>, vector<28x120xf32>, vector<64x120xf32> -> vector<64x120xf32>
    %43 = vector.shape_cast %42 : vector<64x120xf32> to vector<2x32x120xf32>
    %c3_28 = arith.constant 3 : index
    %c0_29 = arith.constant 0 : index
    %c0_30 = arith.constant 0 : index
    %44 = vector.load %arg3[%c3_28, %c0_29, %c0_30] : memref<5x28x120xf32, #tpu.memory_space<vmem>>, vector<1x28x120xf32>
    %45 = vector.shape_cast %44 : vector<1x28x120xf32> to vector<28x120xf32>
    %cst_31 = arith.constant dense<0.000000e+00> : vector<64x120xf32>
    %46 = tpu.matmul %1, %45, %cst_31 {dimension_numbers = #tpu.dot_dimension_numbers<[1], [0], [0], [1], [0, 0, 1, 1], [], []>} : vector<64x28xf32>, vector<28x120xf32>, vector<64x120xf32> -> vector<64x120xf32>
    %47 = vector.shape_cast %46 : vector<64x120xf32> to vector<2x32x120xf32>
    %48 = vector.extract_strided_slice %43 {offsets = [0, 3, 0], sizes = [2, 24, 120], strides = [1, 1, 1]} : vector<2x32x120xf32> to vector<2x24x120xf32>
    %49 = arith.addf %37, %48 : vector<2x24x120xf32>
    %50 = vector.extract_strided_slice %47 {offsets = [0, 3, 0], sizes = [2, 24, 120], strides = [1, 1, 1]} : vector<2x32x120xf32> to vector<2x24x120xf32>
    %51 = arith.addf %39, %50 : vector<2x24x120xf32>
    %c4 = arith.constant 4 : index
    %c0_32 = arith.constant 0 : index
    %c0_33 = arith.constant 0 : index
    %52 = vector.load %arg2[%c4, %c0_32, %c0_33] : memref<5x28x120xf32, #tpu.memory_space<vmem>>, vector<1x28x120xf32>
    %53 = vector.shape_cast %52 : vector<1x28x120xf32> to vector<28x120xf32>
    %cst_34 = arith.constant dense<0.000000e+00> : vector<64x120xf32>
    %54 = tpu.matmul %1, %53, %cst_34 {dimension_numbers = #tpu.dot_dimension_numbers<[1], [0], [0], [1], [0, 0, 1, 1], [], []>} : vector<64x28xf32>, vector<28x120xf32>, vector<64x120xf32> -> vector<64x120xf32>
    %55 = vector.shape_cast %54 : vector<64x120xf32> to vector<2x32x120xf32>
    %c4_35 = arith.constant 4 : index
    %c0_36 = arith.constant 0 : index
    %c0_37 = arith.constant 0 : index
    %56 = vector.load %arg3[%c4_35, %c0_36, %c0_37] : memref<5x28x120xf32, #tpu.memory_space<vmem>>, vector<1x28x120xf32>
    %57 = vector.shape_cast %56 : vector<1x28x120xf32> to vector<28x120xf32>
    %cst_38 = arith.constant dense<0.000000e+00> : vector<64x120xf32>
    %58 = tpu.matmul %1, %57, %cst_38 {dimension_numbers = #tpu.dot_dimension_numbers<[1], [0], [0], [1], [0, 0, 1, 1], [], []>} : vector<64x28xf32>, vector<28x120xf32>, vector<64x120xf32> -> vector<64x120xf32>
    %59 = vector.shape_cast %58 : vector<64x120xf32> to vector<2x32x120xf32>
    %60 = vector.extract_strided_slice %55 {offsets = [0, 4, 0], sizes = [2, 24, 120], strides = [1, 1, 1]} : vector<2x32x120xf32> to vector<2x24x120xf32>
    %61 = arith.addf %49, %60 : vector<2x24x120xf32>
    %62 = vector.extract_strided_slice %59 {offsets = [0, 4, 0], sizes = [2, 24, 120], strides = [1, 1, 1]} : vector<2x32x120xf32> to vector<2x24x120xf32>
    %63 = arith.addf %51, %62 : vector<2x24x120xf32>
    %64 = arith.maximumf %61, %63 : vector<2x24x120xf32>
    %c0_39 = arith.constant 0 : index
    %c0_40 = arith.constant 0 : index
    %65 = vector.load %arg4[%c0_39, %c0_40] : memref<1x120xf32, #tpu.memory_space<vmem>>, vector<1x120xf32>
    %66 = vector.shape_cast %65 : vector<1x120xf32> to vector<1x1x120xf32>
    %67 = vector.broadcast %66 : vector<1x1x120xf32> to vector<2x24x120xf32>
    %68 = arith.addf %64, %67 : vector<2x24x120xf32>
    %69 = vector.shape_cast %68 : vector<2x24x120xf32> to vector<2x12x2x120xf32>
    %70 = vector.extract_strided_slice %69 {offsets = [0, 0, 0, 0], sizes = [2, 12, 1, 120], strides = [1, 1, 1, 1]} : vector<2x12x2x120xf32> to vector<2x12x1x120xf32>
    %71 = vector.shape_cast %70 : vector<2x12x1x120xf32> to vector<2x12x120xf32>
    %72 = vector.extract_strided_slice %69 {offsets = [0, 0, 1, 0], sizes = [2, 12, 1, 120], strides = [1, 1, 1, 1]} : vector<2x12x2x120xf32> to vector<2x12x1x120xf32>
    %73 = vector.shape_cast %72 : vector<2x12x1x120xf32> to vector<2x12x120xf32>
    %74 = arith.maximumf %71, %73 : vector<2x12x120xf32>
    %cst_41 = arith.constant 0.000000e+00 : f32
    %75 = vector.broadcast %cst_41 : f32 to vector<2x12x120xf32>
    %76 = arith.maximumf %74, %75 : vector<2x12x120xf32>
    %cst_42 = arith.constant 0.000000e+00 : f32
    %77 = vector.broadcast %cst_42 : f32 to vector<16x80xf32>
    %cst_43 = arith.constant 0.000000e+00 : f32
    %78 = vector.broadcast %cst_43 : f32 to vector<16x80xf32>
    %79 = vector.extract_strided_slice %76 {offsets = [0, 0, 0], sizes = [2, 8, 120], strides = [1, 1, 1]} : vector<2x12x120xf32> to vector<2x8x120xf32>
    %80 = vector.shape_cast %79 : vector<2x8x120xf32> to vector<16x120xf32>
    %c0_44 = arith.constant 0 : index
    %c0_45 = arith.constant 0 : index
    %c0_46 = arith.constant 0 : index
    %81 = vector.load %arg5[%c0_44, %c0_45, %c0_46] : memref<5x120x80xf32, #tpu.memory_space<vmem>>, vector<1x120x80xf32>
    %82 = vector.shape_cast %81 : vector<1x120x80xf32> to vector<120x80xf32>
    %cst_47 = arith.constant dense<0.000000e+00> : vector<16x80xf32>
    %83 = tpu.matmul %80, %82, %cst_47 {dimension_numbers = #tpu.dot_dimension_numbers<[1], [0], [0], [1], [0, 0, 1, 1], [], []>} : vector<16x120xf32>, vector<120x80xf32>, vector<16x80xf32> -> vector<16x80xf32>
    %84 = arith.addf %77, %83 : vector<16x80xf32>
    %c0_48 = arith.constant 0 : index
    %c0_49 = arith.constant 0 : index
    %c0_50 = arith.constant 0 : index
    %85 = vector.load %arg6[%c0_48, %c0_49, %c0_50] : memref<5x120x80xf32, #tpu.memory_space<vmem>>, vector<1x120x80xf32>
    %86 = vector.shape_cast %85 : vector<1x120x80xf32> to vector<120x80xf32>
    %cst_51 = arith.constant dense<0.000000e+00> : vector<16x80xf32>
    %87 = tpu.matmul %80, %86, %cst_51 {dimension_numbers = #tpu.dot_dimension_numbers<[1], [0], [0], [1], [0, 0, 1, 1], [], []>} : vector<16x120xf32>, vector<120x80xf32>, vector<16x80xf32> -> vector<16x80xf32>
    %88 = arith.addf %78, %87 : vector<16x80xf32>
    %89 = vector.extract_strided_slice %76 {offsets = [0, 1, 0], sizes = [2, 8, 120], strides = [1, 1, 1]} : vector<2x12x120xf32> to vector<2x8x120xf32>
    %90 = vector.shape_cast %89 : vector<2x8x120xf32> to vector<16x120xf32>
    %c1_52 = arith.constant 1 : index
    %c0_53 = arith.constant 0 : index
    %c0_54 = arith.constant 0 : index
    %91 = vector.load %arg5[%c1_52, %c0_53, %c0_54] : memref<5x120x80xf32, #tpu.memory_space<vmem>>, vector<1x120x80xf32>
    %92 = vector.shape_cast %91 : vector<1x120x80xf32> to vector<120x80xf32>
    %cst_55 = arith.constant dense<0.000000e+00> : vector<16x80xf32>
    %93 = tpu.matmul %90, %92, %cst_55 {dimension_numbers = #tpu.dot_dimension_numbers<[1], [0], [0], [1], [0, 0, 1, 1], [], []>} : vector<16x120xf32>, vector<120x80xf32>, vector<16x80xf32> -> vector<16x80xf32>
    %94 = arith.addf %84, %93 : vector<16x80xf32>
    %c1_56 = arith.constant 1 : index
    %c0_57 = arith.constant 0 : index
    %c0_58 = arith.constant 0 : index
    %95 = vector.load %arg6[%c1_56, %c0_57, %c0_58] : memref<5x120x80xf32, #tpu.memory_space<vmem>>, vector<1x120x80xf32>
    %96 = vector.shape_cast %95 : vector<1x120x80xf32> to vector<120x80xf32>
    %cst_59 = arith.constant dense<0.000000e+00> : vector<16x80xf32>
    %97 = tpu.matmul %90, %96, %cst_59 {dimension_numbers = #tpu.dot_dimension_numbers<[1], [0], [0], [1], [0, 0, 1, 1], [], []>} : vector<16x120xf32>, vector<120x80xf32>, vector<16x80xf32> -> vector<16x80xf32>
    %98 = arith.addf %88, %97 : vector<16x80xf32>
    %99 = vector.extract_strided_slice %76 {offsets = [0, 2, 0], sizes = [2, 8, 120], strides = [1, 1, 1]} : vector<2x12x120xf32> to vector<2x8x120xf32>
    %100 = vector.shape_cast %99 : vector<2x8x120xf32> to vector<16x120xf32>
    %c2_60 = arith.constant 2 : index
    %c0_61 = arith.constant 0 : index
    %c0_62 = arith.constant 0 : index
    %101 = vector.load %arg5[%c2_60, %c0_61, %c0_62] : memref<5x120x80xf32, #tpu.memory_space<vmem>>, vector<1x120x80xf32>
    %102 = vector.shape_cast %101 : vector<1x120x80xf32> to vector<120x80xf32>
    %cst_63 = arith.constant dense<0.000000e+00> : vector<16x80xf32>
    %103 = tpu.matmul %100, %102, %cst_63 {dimension_numbers = #tpu.dot_dimension_numbers<[1], [0], [0], [1], [0, 0, 1, 1], [], []>} : vector<16x120xf32>, vector<120x80xf32>, vector<16x80xf32> -> vector<16x80xf32>
    %104 = arith.addf %94, %103 : vector<16x80xf32>
    %c2_64 = arith.constant 2 : index
    %c0_65 = arith.constant 0 : index
    %c0_66 = arith.constant 0 : index
    %105 = vector.load %arg6[%c2_64, %c0_65, %c0_66] : memref<5x120x80xf32, #tpu.memory_space<vmem>>, vector<1x120x80xf32>
    %106 = vector.shape_cast %105 : vector<1x120x80xf32> to vector<120x80xf32>
    %cst_67 = arith.constant dense<0.000000e+00> : vector<16x80xf32>
    %107 = tpu.matmul %100, %106, %cst_67 {dimension_numbers = #tpu.dot_dimension_numbers<[1], [0], [0], [1], [0, 0, 1, 1], [], []>} : vector<16x120xf32>, vector<120x80xf32>, vector<16x80xf32> -> vector<16x80xf32>
    %108 = arith.addf %98, %107 : vector<16x80xf32>
    %109 = vector.extract_strided_slice %76 {offsets = [0, 3, 0], sizes = [2, 8, 120], strides = [1, 1, 1]} : vector<2x12x120xf32> to vector<2x8x120xf32>
    %110 = vector.shape_cast %109 : vector<2x8x120xf32> to vector<16x120xf32>
    %c3_68 = arith.constant 3 : index
    %c0_69 = arith.constant 0 : index
    %c0_70 = arith.constant 0 : index
    %111 = vector.load %arg5[%c3_68, %c0_69, %c0_70] : memref<5x120x80xf32, #tpu.memory_space<vmem>>, vector<1x120x80xf32>
    %112 = vector.shape_cast %111 : vector<1x120x80xf32> to vector<120x80xf32>
    %cst_71 = arith.constant dense<0.000000e+00> : vector<16x80xf32>
    %113 = tpu.matmul %110, %112, %cst_71 {dimension_numbers = #tpu.dot_dimension_numbers<[1], [0], [0], [1], [0, 0, 1, 1], [], []>} : vector<16x120xf32>, vector<120x80xf32>, vector<16x80xf32> -> vector<16x80xf32>
    %114 = arith.addf %104, %113 : vector<16x80xf32>
    %c3_72 = arith.constant 3 : index
    %c0_73 = arith.constant 0 : index
    %c0_74 = arith.constant 0 : index
    %115 = vector.load %arg6[%c3_72, %c0_73, %c0_74] : memref<5x120x80xf32, #tpu.memory_space<vmem>>, vector<1x120x80xf32>
    %116 = vector.shape_cast %115 : vector<1x120x80xf32> to vector<120x80xf32>
    %cst_75 = arith.constant dense<0.000000e+00> : vector<16x80xf32>
    %117 = tpu.matmul %110, %116, %cst_75 {dimension_numbers = #tpu.dot_dimension_numbers<[1], [0], [0], [1], [0, 0, 1, 1], [], []>} : vector<16x120xf32>, vector<120x80xf32>, vector<16x80xf32> -> vector<16x80xf32>
    %118 = arith.addf %108, %117 : vector<16x80xf32>
    %119 = vector.extract_strided_slice %76 {offsets = [0, 4, 0], sizes = [2, 8, 120], strides = [1, 1, 1]} : vector<2x12x120xf32> to vector<2x8x120xf32>
    %120 = vector.shape_cast %119 : vector<2x8x120xf32> to vector<16x120xf32>
    %c4_76 = arith.constant 4 : index
    %c0_77 = arith.constant 0 : index
    %c0_78 = arith.constant 0 : index
    %121 = vector.load %arg5[%c4_76, %c0_77, %c0_78] : memref<5x120x80xf32, #tpu.memory_space<vmem>>, vector<1x120x80xf32>
    %122 = vector.shape_cast %121 : vector<1x120x80xf32> to vector<120x80xf32>
    %cst_79 = arith.constant dense<0.000000e+00> : vector<16x80xf32>
    %123 = tpu.matmul %120, %122, %cst_79 {dimension_numbers = #tpu.dot_dimension_numbers<[1], [0], [0], [1], [0, 0, 1, 1], [], []>} : vector<16x120xf32>, vector<120x80xf32>, vector<16x80xf32> -> vector<16x80xf32>
    %124 = arith.addf %114, %123 : vector<16x80xf32>
    %c4_80 = arith.constant 4 : index
    %c0_81 = arith.constant 0 : index
    %c0_82 = arith.constant 0 : index
    %125 = vector.load %arg6[%c4_80, %c0_81, %c0_82] : memref<5x120x80xf32, #tpu.memory_space<vmem>>, vector<1x120x80xf32>
    %126 = vector.shape_cast %125 : vector<1x120x80xf32> to vector<120x80xf32>
    %cst_83 = arith.constant dense<0.000000e+00> : vector<16x80xf32>
    %127 = tpu.matmul %120, %126, %cst_83 {dimension_numbers = #tpu.dot_dimension_numbers<[1], [0], [0], [1], [0, 0, 1, 1], [], []>} : vector<16x120xf32>, vector<120x80xf32>, vector<16x80xf32> -> vector<16x80xf32>
    %128 = arith.addf %118, %127 : vector<16x80xf32>
    %129 = arith.maximumf %124, %128 : vector<16x80xf32>
    %c0_84 = arith.constant 0 : index
    %c0_85 = arith.constant 0 : index
    %130 = vector.load %arg7[%c0_84, %c0_85] : memref<1x80xf32, #tpu.memory_space<vmem>>, vector<1x80xf32>
    %131 = vector.broadcast %130 : vector<1x80xf32> to vector<16x80xf32>
    %132 = arith.addf %129, %131 : vector<16x80xf32>
    %133 = vector.shape_cast %132 : vector<16x80xf32> to vector<2x4x2x80xf32>
    %134 = vector.extract_strided_slice %133 {offsets = [0, 0, 0, 0], sizes = [2, 4, 1, 80], strides = [1, 1, 1, 1]} : vector<2x4x2x80xf32> to vector<2x4x1x80xf32>
    %135 = vector.shape_cast %134 : vector<2x4x1x80xf32> to vector<2x4x80xf32>
    %136 = vector.extract_strided_slice %133 {offsets = [0, 0, 1, 0], sizes = [2, 4, 1, 80], strides = [1, 1, 1, 1]} : vector<2x4x2x80xf32> to vector<2x4x1x80xf32>
    %137 = vector.shape_cast %136 : vector<2x4x1x80xf32> to vector<2x4x80xf32>
    %138 = arith.maximumf %135, %137 : vector<2x4x80xf32>
    %cst_86 = arith.constant 0.000000e+00 : f32
    %139 = vector.broadcast %cst_86 : f32 to vector<2x4x80xf32>
    %140 = arith.maximumf %138, %139 : vector<2x4x80xf32>
    %cst_87 = arith.constant 0.000000e+00 : f32
    %141 = vector.broadcast %cst_87 : f32 to vector<2x50xf32>
    %142 = vector.extract_strided_slice %140 {offsets = [0, 0, 0], sizes = [2, 1, 80], strides = [1, 1, 1]} : vector<2x4x80xf32> to vector<2x1x80xf32>
    %143 = vector.shape_cast %142 : vector<2x1x80xf32> to vector<2x80xf32>
    %c0_88 = arith.constant 0 : index
    %c0_89 = arith.constant 0 : index
    %c0_90 = arith.constant 0 : index
    %144 = vector.load %arg8[%c0_88, %c0_89, %c0_90] : memref<4x80x50xf32, #tpu.memory_space<vmem>>, vector<1x80x50xf32>
    %145 = vector.shape_cast %144 : vector<1x80x50xf32> to vector<80x50xf32>
    %cst_91 = arith.constant dense<0.000000e+00> : vector<2x50xf32>
    %146 = tpu.matmul %143, %145, %cst_91 {dimension_numbers = #tpu.dot_dimension_numbers<[1], [0], [0], [1], [0, 0, 1, 1], [], []>} : vector<2x80xf32>, vector<80x50xf32>, vector<2x50xf32> -> vector<2x50xf32>
    %147 = arith.addf %141, %146 : vector<2x50xf32>
    %148 = vector.extract_strided_slice %140 {offsets = [0, 1, 0], sizes = [2, 1, 80], strides = [1, 1, 1]} : vector<2x4x80xf32> to vector<2x1x80xf32>
    %149 = vector.shape_cast %148 : vector<2x1x80xf32> to vector<2x80xf32>
    %c1_92 = arith.constant 1 : index
    %c0_93 = arith.constant 0 : index
    %c0_94 = arith.constant 0 : index
    %150 = vector.load %arg8[%c1_92, %c0_93, %c0_94] : memref<4x80x50xf32, #tpu.memory_space<vmem>>, vector<1x80x50xf32>
    %151 = vector.shape_cast %150 : vector<1x80x50xf32> to vector<80x50xf32>
    %cst_95 = arith.constant dense<0.000000e+00> : vector<2x50xf32>
    %152 = tpu.matmul %149, %151, %cst_95 {dimension_numbers = #tpu.dot_dimension_numbers<[1], [0], [0], [1], [0, 0, 1, 1], [], []>} : vector<2x80xf32>, vector<80x50xf32>, vector<2x50xf32> -> vector<2x50xf32>
    %153 = arith.addf %147, %152 : vector<2x50xf32>
    %154 = vector.extract_strided_slice %140 {offsets = [0, 2, 0], sizes = [2, 1, 80], strides = [1, 1, 1]} : vector<2x4x80xf32> to vector<2x1x80xf32>
    %155 = vector.shape_cast %154 : vector<2x1x80xf32> to vector<2x80xf32>
    %c2_96 = arith.constant 2 : index
    %c0_97 = arith.constant 0 : index
    %c0_98 = arith.constant 0 : index
    %156 = vector.load %arg8[%c2_96, %c0_97, %c0_98] : memref<4x80x50xf32, #tpu.memory_space<vmem>>, vector<1x80x50xf32>
    %157 = vector.shape_cast %156 : vector<1x80x50xf32> to vector<80x50xf32>
    %cst_99 = arith.constant dense<0.000000e+00> : vector<2x50xf32>
    %158 = tpu.matmul %155, %157, %cst_99 {dimension_numbers = #tpu.dot_dimension_numbers<[1], [0], [0], [1], [0, 0, 1, 1], [], []>} : vector<2x80xf32>, vector<80x50xf32>, vector<2x50xf32> -> vector<2x50xf32>
    %159 = arith.addf %153, %158 : vector<2x50xf32>
    %160 = vector.extract_strided_slice %140 {offsets = [0, 3, 0], sizes = [2, 1, 80], strides = [1, 1, 1]} : vector<2x4x80xf32> to vector<2x1x80xf32>
    %161 = vector.shape_cast %160 : vector<2x1x80xf32> to vector<2x80xf32>
    %c3_100 = arith.constant 3 : index
    %c0_101 = arith.constant 0 : index
    %c0_102 = arith.constant 0 : index
    %162 = vector.load %arg8[%c3_100, %c0_101, %c0_102] : memref<4x80x50xf32, #tpu.memory_space<vmem>>, vector<1x80x50xf32>
    %163 = vector.shape_cast %162 : vector<1x80x50xf32> to vector<80x50xf32>
    %cst_103 = arith.constant dense<0.000000e+00> : vector<2x50xf32>
    %164 = tpu.matmul %161, %163, %cst_103 {dimension_numbers = #tpu.dot_dimension_numbers<[1], [0], [0], [1], [0, 0, 1, 1], [], []>} : vector<2x80xf32>, vector<80x50xf32>, vector<2x50xf32> -> vector<2x50xf32>
    %165 = arith.addf %159, %164 : vector<2x50xf32>
    %c0_104 = arith.constant 0 : index
    %c0_105 = arith.constant 0 : index
    %166 = vector.load %arg9[%c0_104, %c0_105] : memref<1x50xf32, #tpu.memory_space<vmem>>, vector<1x50xf32>
    %167 = vector.broadcast %166 : vector<1x50xf32> to vector<2x50xf32>
    %168 = arith.addf %165, %167 : vector<2x50xf32>
    %cst_106 = arith.constant 0.000000e+00 : f32
    %169 = vector.broadcast %cst_106 : f32 to vector<2x50xf32>
    %170 = arith.maximumf %168, %169 : vector<2x50xf32>
    %c0_107 = arith.constant 0 : index
    %c0_108 = arith.constant 0 : index
    %171 = vector.load %arg10[%c0_107, %c0_108] : memref<50x10xf32, #tpu.memory_space<vmem>>, vector<50x10xf32>
    %cst_109 = arith.constant dense<0.000000e+00> : vector<2x10xf32>
    %172 = tpu.matmul %170, %171, %cst_109 {dimension_numbers = #tpu.dot_dimension_numbers<[1], [0], [0], [1], [0, 0, 1, 1], [], []>} : vector<2x50xf32>, vector<50x10xf32>, vector<2x10xf32> -> vector<2x10xf32>
    %c0_110 = arith.constant 0 : index
    %c0_111 = arith.constant 0 : index
    %173 = vector.load %arg11[%c0_110, %c0_111] : memref<1x10xf32, #tpu.memory_space<vmem>>, vector<1x10xf32>
    %174 = vector.broadcast %173 : vector<1x10xf32> to vector<2x10xf32>
    %175 = arith.addf %172, %174 : vector<2x10xf32>
    %c0_112 = arith.constant 0 : index
    %c0_113 = arith.constant 0 : index
    %176 = vector.load %arg12[%c0_112, %c0_113] : memref<2x10xf32, #tpu.memory_space<vmem>>, vector<2x10xf32>
    tpu.vector_store %arg12[%c0_112, %c0_113], %175 {strides = array<i32>} : memref<2x10xf32, #tpu.memory_space<vmem>>, vector<2x10xf32>,
    return
  }
  func.func @transform_0(%arg0: i32) -> (i32, i32, i32) {
    %c0_i32 = arith.constant 0 : i32
    %c0_i32_0 = arith.constant 0 : i32
    %c0_i32_1 = arith.constant 0 : i32
    return %arg0, %c0_i32, %c0_i32_0 : i32, i32, i32
  }
  func.func @transform_1(%arg0: i32) -> (i32, i32, i32) {
    %c0_i32 = arith.constant 0 : i32
    %c0_i32_0 = arith.constant 0 : i32
    %c0_i32_1 = arith.constant 0 : i32
    %c0_i32_2 = arith.constant 0 : i32
    return %c0_i32, %c0_i32_0, %c0_i32_1 : i32, i32, i32
  }
  func.func @transform_2(%arg0: i32) -> (i32, i32, i32) {
    %c0_i32 = arith.constant 0 : i32
    %c0_i32_0 = arith.constant 0 : i32
    %c0_i32_1 = arith.constant 0 : i32
    %c0_i32_2 = arith.constant 0 : i32
    return %c0_i32, %c0_i32_0, %c0_i32_1 : i32, i32, i32
  }
  func.func @transform_3(%arg0: i32) -> (i32, i32) {
    %c0_i32 = arith.constant 0 : i32
    %c0_i32_0 = arith.constant 0 : i32
    %c0_i32_1 = arith.constant 0 : i32
    return %c0_i32, %c0_i32_0 : i32, i32
  }
  func.func @transform_4(%arg0: i32) -> (i32, i32, i32) {
    %c0_i32 = arith.constant 0 : i32
    %c0_i32_0 = arith.constant 0 : i32
    %c0_i32_1 = arith.constant 0 : i32
    %c0_i32_2 = arith.constant 0 : i32
    return %c0_i32, %c0_i32_0, %c0_i32_1 : i32, i32, i32
  }
  func.func @transform_5(%arg0: i32) -> (i32, i32, i32) {
    %c0_i32 = arith.constant 0 : i32
    %c0_i32_0 = arith.constant 0 : i32
    %c0_i32_1 = arith.constant 0 : i32
    %c0_i32_2 = arith.constant 0 : i32
    return %c0_i32, %c0_i32_0, %c0_i32_1 : i32, i32, i32
  }
  func.func @transform_6(%arg0: i32) -> (i32, i32) {
    %c0_i32 = arith.constant 0 : i32
    %c0_i32_0 = arith.constant 0 : i32
    %c0_i32_1 = arith.constant 0 : i32
    return %c0_i32, %c0_i32_0 : i32, i32
  }
  func.func @transform_7(%arg0: i32) -> (i32, i32, i32) {
    %c0_i32 = arith.constant 0 : i32
    %c0_i32_0 = arith.constant 0 : i32
    %c0_i32_1 = arith.constant 0 : i32
    %c0_i32_2 = arith.constant 0 : i32
    return %c0_i32, %c0_i32_0, %c0_i32_1 : i32, i32, i32
  }
  func.func @transform_8(%arg0: i32) -> (i32, i32) {
    %c0_i32 = arith.constant 0 : i32
    %c0_i32_0 = arith.constant 0 : i32
    %c0_i32_1 = arith.constant 0 : i32
    return %c0_i32, %c0_i32_0 : i32, i32
  }
  func.func @transform_9(%arg0: i32) -> (i32, i32) {
    %c0_i32 = arith.constant 0 : i32
    %c0_i32_0 = arith.constant 0 : i32
    %c0_i32_1 = arith.constant 0 : i32
    return %c0_i32, %c0_i32_0 : i32, i32
  }
  func.func @transform_10(%arg0: i32) -> (i32, i32) {
    %c0_i32 = arith.constant 0 : i32
    %c0_i32_0 = arith.constant 0 : i32
    %c0_i32_1 = arith.constant 0 : i32
    return %c0_i32, %c0_i32_0 : i32, i32
  }
  func.func @transform_11(%arg0: i32) -> (i32, i32) {
    %c0_i32 = arith.constant 0 : i32
    %c0_i32_0 = arith.constant 0 : i32
    return %arg0, %c0_i32 : i32, i32
  }
}

</mosaic_0001>

<llo_original>
// kernel: tile.13
$region0: #{tile.13}
  #allocation0 [shape = 's32[1]{0}', space=sflag, size = 0x4, scoped, tag = 'scoped memory for tile.13']
  %s0 = inlined_call_operand.vmem [shape: f32[10], index: 0, kind: input, shape index: {}]
  %s1 = inlined_call_operand.vmem [shape: f32[12,10], index: 1, kind: output, shape index: {}]
  // Predicated region
  $region2: #{tile.13} parent=0 // pred_check
    _
  $region3: #{tile.13} parent=0 // pred_check_branch
    %3 = sbr.rel (0) target = $region5
  $region4: #{tile.13} parent=0 // pred_region
    _
  $region5: #{tile.13} parent=0 // pred_fallthru
    _
  %v4 = vld [vmem:[%s0] ss:$0 sm:$0xff]
  %5 = vst [vmem:[%s1] sm:$0xff] %v4
  %s6 = scalar_lea.vmem %s1, 8
  %7 = vst [vmem:[%s6] sm:$0xff] %v4

// kernel: tile.14
$region0: #{tile.14}
  %s0 = inlined_call_operand.vmem [shape: f32[12,10], index: 0, kind: input, shape index: {}]
  %s1 = inlined_call_operand.vmem [shape: f32[1,120], index: 1, kind: output, shape index: {}]
  $region1: #{tile.14} parent=0
    #allocation0 [shape = 'u8[4096]{0}', space=vmem, size = 0x1000, scoped, tag = 'scoped mem for output reshape']
    %v2 = vld [vmem:[%s0] sm:$0x1]
    %vm3 = vcmask 80896
    %4 = vst.msk [vmem:[#allocation0] sm:$0x1] %vm3, %v2
    %s5 = scalar_lea.vmem %s0, 11
    %v6 = vld [vmem:[%s5] sm:$0x1]
    %7 = vrot.lane.b32.xlu0 %v6, 110
    %v8 = vpop.permute.xlu0 %7
    %vm9 = vcmask 982896
    %10 = vst.msk [vmem:[#allocation0] sm:$0x1] %vm9, %v8
    %s11 = scalar_lea.vmem %s0, 10
    %v12 = vld [vmem:[%s11] sm:$0x1]
    %13 = vrot.lane.b32.xlu0 %v12, 100
    %v14 = vpop.permute.xlu0 %13
    %vm15 = vcmask 900896
    %16 = vst.msk [vmem:[#allocation0] sm:$0x1] %vm15, %v14
    %s17 = scalar_lea.vmem %s0, 9
    %v18 = vld [vmem:[%s17] sm:$0x1]
    %19 = vrot.lane.b32.xlu0 %v18, 90
    %v20 = vpop.permute.xlu0 %19
    %vm21 = vcmask 818896
    %22 = vst.msk [vmem:[#allocation0] sm:$0x1] %vm21, %v20
    %s23 = scalar_lea.vmem %s0, 8
    %v24 = vld [vmem:[%s23] sm:$0x1]
    %25 = vrot.lane.b32.xlu0 %v24, 80
    %v26 = vpop.permute.xlu0 %25
    %vm27 = vcmask 736896
    %28 = vst.msk [vmem:[#allocation0] sm:$0x1] %vm27, %v26
    %s29 = scalar_lea.vmem %s0, 7
    %v30 = vld [vmem:[%s29] sm:$0x1]
    %31 = vrot.lane.b32.xlu0 %v30, 70
    %v32 = vpop.permute.xlu0 %31
    %vm33 = vcmask 654896
    %34 = vst.msk [vmem:[#allocation0] sm:$0x1] %vm33, %v32
    %s35 = scalar_lea.vmem %s0, 6
    %v36 = vld [vmem:[%s35] sm:$0x1]
    %37 = vrot.lane.b32.xlu0 %v36, 60
    %v38 = vpop.permute.xlu0 %37
    %vm39 = vcmask 572896
    %40 = vst.msk [vmem:[#allocation0] sm:$0x1] %vm39, %v38
    %s41 = scalar_lea.vmem %s0, 5
    %v42 = vld [vmem:[%s41] sm:$0x1]
    %43 = vrot.lane.b32.xlu0 %v42, 50
    %v44 = vpop.permute.xlu0 %43
    %vm45 = vcmask 490896
    %46 = vst.msk [vmem:[#allocation0] sm:$0x1] %vm45, %v44
    %s47 = scalar_lea.vmem %s0, 4
    %v48 = vld [vmem:[%s47] sm:$0x1]
    %49 = vrot.lane.b32.xlu0 %v48, 40
    %v50 = vpop.permute.xlu0 %49
    %vm51 = vcmask 408896
    %52 = vst.msk [vmem:[#allocation0] sm:$0x1] %vm51, %v50
    %s53 = scalar_lea.vmem %s0, 3
    %v54 = vld [vmem:[%s53] sm:$0x1]
    %55 = vrot.lane.b32.xlu0 %v54, 30
    %v56 = vpop.permute.xlu0 %55
    %vm57 = vcmask 326896
    %58 = vst.msk [vmem:[#allocation0] sm:$0x1] %vm57, %v56
    %s59 = scalar_lea.vmem %s0, 2
    %v60 = vld [vmem:[%s59] sm:$0x1]
    %61 = vrot.lane.b32.xlu0 %v60, 20
    %v62 = vpop.permute.xlu0 %61
    %vm63 = vcmask 244896
    %64 = vst.msk [vmem:[#allocation0] sm:$0x1] %vm63, %v62
    %s65 = scalar_lea.vmem %s0, 1
    %v66 = vld [vmem:[%s65] sm:$0x1]
    %67 = vrot.lane.b32.xlu0 %v66, 10
    %v68 = vpop.permute.xlu0 %67
    %vm69 = vcmask 162896
    %70 = vst.msk [vmem:[#allocation0] sm:$0x1] %vm69, %v68
    %s72 = sshllo.u32 0, 1
    %v74 = vld [vmem:[#allocation0] sm:%s72]
    %s75 = sshllo.u32 0, 1
    %76 = vst [vmem:[%s1] sm:%s75] %v74

// kernel: tile.18
$region0: #{tile.18}
  #allocation0 [shape = 's32[1]{0}', space=sflag, size = 0x4, scoped, tag = 'scoped memory for tile.18']
  %s0 = inlined_call_operand.vmem [shape: f32[20], index: 0, kind: input, shape index: {}]
  %s1 = inlined_call_operand.vmem [shape: f32[4,20], index: 1, kind: output, shape index: {}]
  // Predicated region
  $region2: #{tile.18} parent=0 // pred_check
    _
  $region3: #{tile.18} parent=0 // pred_check_branch
    %3 = sbr.rel (0) target = $region5
  $region4: #{tile.18} parent=0 // pred_region
    _
  $region5: #{tile.18} parent=0 // pred_fallthru
    _
  %v4 = vld [vmem:[%s0] ss:$0 sm:$0xff]
  %5 = vst [vmem:[%s1] sm:$0xf] %v4

// kernel: tile.19
$region0: #{tile.19}
  %s0 = inlined_call_operand.vmem [shape: f32[4,20], index: 0, kind: input, shape index: {}]
  %s1 = inlined_call_operand.vmem [shape: f32[1,80], index: 1, kind: output, shape index: {}]
  $region1: #{tile.19} parent=0
    #allocation0 [shape = 'u8[4096]{0}', space=vmem, size = 0x1000, scoped, tag = 'scoped mem for output reshape']
    #allocation1 [shape = 'u8[4096]{0}', space=vmem, size = 0x1000, scoped, tag = 'scoped mem for input reshape']
    %s3 = sshllo.u32 0, 4
    %v4 = vld [vmem:[%s0] sm:%s3]
    %5 = vst [vmem:[#allocation1] sm:%s3] %v4
    %v6 = vld [vmem:[#allocation1] sm:$0x1]
    %vm7 = vcmask 162816
    %8 = vst.msk [vmem:[#allocation0] sm:$0x1] %vm7, %v6
    %s9 = scalar_lea.vmem [#allocation1], 3
    %v10 = vld [vmem:[%s9] sm:$0x1]
    %11 = vrot.lane.b32.xlu0 %v10, 60
    %v12 = vpop.permute.xlu0 %11
    %vm13 = vcmask 654816
    %14 = vst.msk [vmem:[#allocation0] sm:$0x1] %vm13, %v12
    %s15 = scalar_lea.vmem [#allocation1], 2
    %v16 = vld [vmem:[%s15] sm:$0x1]
    %17 = vrot.lane.b32.xlu0 %v16, 40
    %v18 = vpop.permute.xlu0 %17
    %vm19 = vcmask 490816
    %20 = vst.msk [vmem:[#allocation0] sm:$0x1] %vm19, %v18
    %s21 = scalar_lea.vmem [#allocation1], 1
    %v22 = vld [vmem:[%s21] sm:$0x1]
    %23 = vrot.lane.b32.xlu0 %v22, 20
    %v24 = vpop.permute.xlu0 %23
    %vm25 = vcmask 326816
    %26 = vst.msk [vmem:[#allocation0] sm:$0x1] %vm25, %v24
    %s28 = sshllo.u32 0, 1
    %v30 = vld [vmem:[#allocation0] sm:%s28]
    %s31 = sshllo.u32 0, 1
    %32 = vst [vmem:[%s1] sm:%s31] %v30

// kernel: clf_forward.1
$region0: #{clf_forward.1}
  #allocation0 [shape = 'u32[]', space=smem, size = 0x4, offset = 0x4, fixed_abs, tag = 'smem constant byte address 0x4 - core index']
  #allocation1 [shape = 'u32[144,128]{1,0:T(1,128)}', space=vmem, size = 0x12000, scoped, tag = 'internal scratch']
  %s0 = inlined_call_operand.vmem [shape: f32[2,32,28], index: 0, kind: input, shape index: {}]
  %s1 = inlined_call_operand.vmem [shape: f32[5,28,120], index: 1, kind: input, shape index: {}]
  %s2 = inlined_call_operand.vmem [shape: f32[5,28,120], index: 2, kind: input, shape index: {}]
  %s3 = inlined_call_operand.vmem [shape: f32[1,120], index: 3, kind: input, shape index: {}]
  %s4 = inlined_call_operand.vmem [shape: f32[5,120,80], index: 4, kind: input, shape index: {}]
  %s5 = inlined_call_operand.vmem [shape: f32[5,120,80], index: 5, kind: input, shape index: {}]
  %s6 = inlined_call_operand.vmem [shape: f32[1,80], index: 6, kind: input, shape index: {}]
  %s7 = inlined_call_operand.vmem [shape: f32[4,80,50], index: 7, kind: input, shape index: {}]
  %s8 = inlined_call_operand.vmem [shape: f32[1,50], index: 8, kind: input, shape index: {}]
  %s9 = inlined_call_operand.vmem [shape: f32[50,10], index: 9, kind: input, shape index: {}]
  %s10 = inlined_call_operand.vmem [shape: f32[1,10], index: 10, kind: input, shape index: {}]
  %s11 = inlined_call_operand.hbm [shape: f32[2,10], index: 11, kind: output, shape index: {}]
  %s12 = sld [smem:[#allocation0]]
  $region54: #{clf_forward.1} parent=0
    _
  %s14 = ssub.s32 1, %s12
  %s15 = scalar_select 0, %s14, %s12
  $region1: #{clf_forward.1} parent=0
    #allocation2 [shape = 'u8[1024]{0}', space=vmem, size = 0x400, scoped, tag = 'output window, operand 0, single buffered']
    #allocation3 [shape = 's32[1]{0}', space=sflag, size = 0x4, scoped, tag = 'scoped memory for clf_forward.1']
    %16 = vsyncpa [#allocation3], 0
    // Predicated region
    $region2: #{clf_forward.1} parent=1 // pred_check
      _
    $region3: #{clf_forward.1} parent=1 // pred_check_branch
      %18 = sbr.rel (0) target = $region5
    $region4: #{clf_forward.1} parent=1 // pred_region
      _
    $region5: #{clf_forward.1} parent=1 // pred_fallthru
      _
    // Predicated region
    $region6: #{clf_forward.1} parent=1 // pred_check
      _
    $region7: #{clf_forward.1} parent=1 // pred_check_branch
      %20 = sbr.rel (0) target = $region9
    $region8: #{clf_forward.1} parent=1 // pred_region
      _
    $region9: #{clf_forward.1} parent=1 // pred_fallthru
      _
    // Predicated region
    $region10: #{clf_forward.1} parent=1 // pred_check
      _
    $region11: #{clf_forward.1} parent=1 // pred_check_branch
      %22 = sbr.rel (0) target = $region13
    $region12: #{clf_forward.1} parent=1 // pred_region
      _
    $region13: #{clf_forward.1} parent=1 // pred_fallthru
      _
    // Predicated region
    $region14: #{clf_forward.1} parent=1 // pred_check
      _
    $region15: #{clf_forward.1} parent=1 // pred_check_branch
      %24 = sbr.rel (0) target = $region17
    $region16: #{clf_forward.1} parent=1 // pred_region
      _
    $region17: #{clf_forward.1} parent=1 // pred_fallthru
      _
    // Predicated region
    $region18: #{clf_forward.1} parent=1 // pred_check
      _
    $region19: #{clf_forward.1} parent=1 // pred_check_branch
      %26 = sbr.rel (0) target = $region21
    $region20: #{clf_forward.1} parent=1 // pred_region
      _
    $region21: #{clf_forward.1} parent=1 // pred_fallthru
      _
    // Predicated region
    $region22: #{clf_forward.1} parent=1 // pred_check
      _
    $region23: #{clf_forward.1} parent=1 // pred_check_branch
      %28 = sbr.rel (0) target = $region25
    $region24: #{clf_forward.1} parent=1 // pred_region
      _
    $region25: #{clf_forward.1} parent=1 // pred_fallthru
      _
    // Predicated region
    $region26: #{clf_forward.1} parent=1 // pred_check
      _
    $region27: #{clf_forward.1} parent=1 // pred_check_branch
      %30 = sbr.rel (0) target = $region29
    $region28: #{clf_forward.1} parent=1 // pred_region
      _
    $region29: #{clf_forward.1} parent=1 // pred_fallthru
      _
    // Predicated region
    $region30: #{clf_forward.1} parent=1 // pred_check
      _
    $region31: #{clf_forward.1} parent=1 // pred_check_branch
      %32 = sbr.rel (0) target = $region33
    $region32: #{clf_forward.1} parent=1 // pred_region
      _
    $region33: #{clf_forward.1} parent=1 // pred_fallthru
      _
    // Predicated region
    $region34: #{clf_forward.1} parent=1 // pred_check
      _
    $region35: #{clf_forward.1} parent=1 // pred_check_branch
      %34 = sbr.rel (0) target = $region37
    $region36: #{clf_forward.1} parent=1 // pred_region
      _
    $region37: #{clf_forward.1} parent=1 // pred_fallthru
      _
    // Predicated region
    $region38: #{clf_forward.1} parent=1 // pred_check
      _
    $region39: #{clf_forward.1} parent=1 // pred_check_branch
      %36 = sbr.rel (0) target = $region41
    $region40: #{clf_forward.1} parent=1 // pred_region
      _
    $region41: #{clf_forward.1} parent=1 // pred_fallthru
      _
    // Predicated region
    $region42: #{clf_forward.1} parent=1 // pred_check
      _
    $region43: #{clf_forward.1} parent=1 // pred_check_branch
      %38 = sbr.rel (0) target = $region45
    $region44: #{clf_forward.1} parent=1 // pred_region
      _
    $region45: #{clf_forward.1} parent=1 // pred_fallthru
      _
    %v39 = vld [vmem:[%s0] sm:$0xff]
    %v40 = vld [vmem:[%s0 + $0x8] sm:$0xff]
    %v41 = vld [vmem:[%s0 + $0x10] sm:$0xff]
    %v42 = vld [vmem:[%s0 + $0x18] sm:$0xff]
    %v43 = vld [vmem:[%s0 + $0x20] sm:$0xff]
    %v44 = vld [vmem:[%s0 + $0x28] sm:$0xff]
    %v45 = vld [vmem:[%s0 + $0x30] sm:$0xff]
    %v46 = vld [vmem:[%s0 + $0x38] sm:$0xff]
    %v47 = vld [vmem:[%s1] sm:$0xff]
    %v48 = vld [vmem:[%s1 + $0x8] sm:$0xff]
    %v49 = vld [vmem:[%s1 + $0x10] sm:$0xff]
    %v50 = vld [vmem:[%s1 + $0x18] sm:$0xf]
    %vm51 = vcmask 228352
    %v53 = vsel %vm51, %v39, 0
    %v56 = vsel %vm51, %v40, 0
    %v59 = vsel %vm51, %v41, 0
    %v62 = vsel %vm51, %v42, 0
    %v65 = vsel %vm51, %v43, 0
    %v68 = vsel %vm51, %v44, 0
    %v71 = vsel %vm51, %v45, 0
    %v74 = vsel %vm51, %v46, 0
    %vm76 = vcmask 1043456
    %v78 = vsel %vm76, %v50, 0
    %80 = vmatprep.subr.mxu0 0.0
    %81 = vmatpush1.msra.mxu0 %v47
    %82 = vmatprep.subr.mxu0 0.0
    %83 = vmatpush1.msra.mxu0 %v48
    %84 = vmatprep.subr.mxu0 0.0
    %85 = vmatpush1.msra.mxu0 %v49
    %86 = vmatprep.subr.mxu0 0.0
    %87 = vmatpush1.msra.mxu0 %v78
    %88 = vmatprep.subr.mxu0 0.0
    %89 = vmatpush1.msra.mxu0 0.0
    %90 = vmatprep.subr.mxu0 0.0
    %91 = vmatpush1.msra.mxu0 0.0
    %92 = vmatprep.subr.mxu0 0.0
    %93 = vmatpush1.msra.mxu0 0.0
    %94 = vmatprep.subr.mxu0 0.0
    %95 = vmatpush1.msra.mxu0 0.0
    %96 = vmatprep.subr.mxu0 0.0
    %97 = vmatpush1.msra.mxu0 0.0
    %98 = vmatprep.subr.mxu0 0.0
    %99 = vmatpush1.msra.mxu0 0.0
    %100 = vmatprep.subr.mxu0 0.0
    %101 = vmatpush1.msra.mxu0 0.0
    %102 = vmatprep.subr.mxu0 0.0
    %103 = vmatpush1.msra.mxu0 0.0
    %104 = vmatprep.subr.mxu0 0.0
    %105 = vmatpush1.msra.mxu0 0.0
    %106 = vmatprep.subr.mxu0 0.0
    %107 = vmatpush1.msra.mxu0 0.0
    %108 = vmatprep.subr.mxu0 0.0
    %109 = vmatpush1.msra.mxu0 0.0
    %110 = vmatprep.subr.mxu0 0.0
    %111 = vmatpush1.msra.mxu0 0.0
    %112 = vmatprep.subr.mxu0 0.0
    %113 = vmatpush1.msra.mxu0 0.0
    %114 = vmatprep.subr.mxu0 0.0
    %115 = vmatpush1.msra.mxu0 0.0
    %116 = vmatprep.subr.mxu0 0.0
    %117 = vmatpush1.msra.mxu0 0.0
    %118 = vmatprep.subr.mxu0 0.0
    %119 = vmatpush1.msra.mxu0 0.0
    %120 = vmatprep.subr.mxu0 0.0
    %121 = vmatpush1.msra.mxu0 0.0
    %122 = vmatprep.subr.mxu0 0.0
    %123 = vmatpush1.msra.mxu0 0.0
    %124 = vmatprep.subr.mxu0 0.0
    %125 = vmatpush1.msra.mxu0 0.0
    %126 = vmatprep.subr.mxu0 0.0
    %127 = vmatpush1.msra.mxu0 0.0
    %128 = vmatprep.subr.mxu0 0.0
    %129 = vmatpush1.msra.mxu0 0.0
    %130 = vmatprep.subr.mxu0 0.0
    %131 = vmatpush1.msra.mxu0 0.0
    %132 = vmatprep.subr.mxu0 0.0
    %133 = vmatpush1.msra.mxu0 0.0
    %134 = vmatprep.subr.mxu0 0.0
    %135 = vmatpush1.msra.mxu0 0.0
    %136 = vmatprep.subr.mxu0 0.0
    %137 = vmatpush1.msra.mxu0 0.0
    %138 = vmatprep.subr.mxu0 0.0
    %139 = vmatpush1.msra.mxu0 0.0
    %140 = vmatprep.subr.mxu0 0.0
    %141 = vmatpush1.msra.mxu0 0.0
    %142 = vmatprep.subr.mxu0 0.0
    %143 = vmatpush1.msra.mxu0 0.0
    %144 = vmatprep.mubr.f32.mxu0 0.0
    %145 = vmatmul.mubr.f32.gmra.mrb[0].mxu0 %v53
    %v146 = vpop.f32.mrb[0].mxu0
    %v147 = vadd.f32 0.0, %v146
    %v148 = vpop.f32.mrb[0].mxu0
    %149 = vmatprep.mubr.f32.mxu0 0.0
    %150 = vmatmul.mubr.f32.gmra.mrb[0].mxu0 %v56
    %v151 = vpop.f32.mrb[0].mxu0
    %v152 = vadd.f32 0.0, %v151
    %v153 = vpop.f32.mrb[0].mxu0
    %154 = vmatprep.mubr.f32.mxu0 0.0
    %155 = vmatmul.mubr.f32.gmra.mrb[0].mxu0 %v59
    %v156 = vpop.f32.mrb[0].mxu0
    %v157 = vadd.f32 0.0, %v156
    %v158 = vpop.f32.mrb[0].mxu0
    %159 = vmatprep.mubr.f32.mxu0 0.0
    %160 = vmatmul.mubr.f32.gmra.mrb[0].mxu0 %v62
    %v161 = vpop.f32.mrb[0].mxu0
    %v162 = vpop.f32.mrb[0].mxu0
    %163 = vmatprep.mubr.f32.mxu0 0.0
    %164 = vmatmul.mubr.f32.gmra.mrb[0].mxu0 %v65
    %v165 = vpop.f32.mrb[0].mxu0
    %v166 = vadd.f32 0.0, %v165
    %v167 = vpop.f32.mrb[0].mxu0
    %168 = vmatprep.mubr.f32.mxu0 0.0
    %169 = vmatmul.mubr.f32.gmra.mrb[0].mxu0 %v68
    %v170 = vpop.f32.mrb[0].mxu0
    %v171 = vadd.f32 0.0, %v170
    %v172 = vpop.f32.mrb[0].mxu0
    %173 = vmatprep.mubr.f32.mxu0 0.0
    %174 = vmatmul.mubr.f32.gmra.mrb[0].mxu0 %v71
    %v175 = vpop.f32.mrb[0].mxu0
    %v176 = vadd.f32 0.0, %v175
    %v177 = vpop.f32.mrb[0].mxu0
    %178 = vmatprep.mubr.f32.mxu0 0.0
    %179 = vmatmul.mubr.f32.gmra.mrb[0].mxu0 %v74
    %v180 = vpop.f32.mrb[0].mxu0
    %v181 = vpop.f32.mrb[0].mxu0
    %182 = vdwg.mxu0
    %v183 = vld [vmem:[%s2] sm:$0xff]
    %v184 = vld [vmem:[%s2 + $0x8] sm:$0xff]
    %v185 = vld [vmem:[%s2 + $0x10] sm:$0xff]
    %v186 = vld [vmem:[%s2 + $0x18] sm:$0xf]
    %v188 = vsel %vm76, %v186, 0
    %190 = vmatprep.subr.mxu0 0.0
    %191 = vmatpush1.msra.mxu0 %v183
    %192 = vmatprep.subr.mxu0 0.0
    %193 = vmatpush1.msra.mxu0 %v184
    %194 = vmatprep.subr.mxu0 0.0
    %195 = vmatpush1.msra.mxu0 %v185
    %196 = vmatprep.subr.mxu0 0.0
    %197 = vmatpush1.msra.mxu0 %v188
    %198 = vmatprep.subr.mxu0 0.0
    %199 = vmatpush1.msra.mxu0 0.0
    %200 = vmatprep.subr.mxu0 0.0
    %201 = vmatpush1.msra.mxu0 0.0
    %202 = vmatprep.subr.mxu0 0.0
    %203 = vmatpush1.msra.mxu0 0.0
    %204 = vmatprep.subr.mxu0 0.0
    %205 = vmatpush1.msra.mxu0 0.0
    %206 = vmatprep.subr.mxu0 0.0
    %207 = vmatpush1.msra.mxu0 0.0
    %208 = vmatprep.subr.mxu0 0.0
    %209 = vmatpush1.msra.mxu0 0.0
    %210 = vmatprep.subr.mxu0 0.0
    %211 = vmatpush1.msra.mxu0 0.0
    %212 = vmatprep.subr.mxu0 0.0
    %213 = vmatpush1.msra.mxu0 0.0
    %214 = vmatprep.subr.mxu0 0.0
    %215 = vmatpush1.msra.mxu0 0.0
    %216 = vmatprep.subr.mxu0 0.0
    %217 = vmatpush1.msra.mxu0 0.0
    %218 = vmatprep.subr.mxu0 0.0
    %219 = vmatpush1.msra.mxu0 0.0
    %220 = vmatprep.subr.mxu0 0.0
    %221 = vmatpush1.msra.mxu0 0.0
    %222 = vmatprep.subr.mxu0 0.0
    %223 = vmatpush1.msra.mxu0 0.0
    %224 = vmatprep.subr.mxu0 0.0
    %225 = vmatpush1.msra.mxu0 0.0
    %226 = vmatprep.subr.mxu0 0.0
    %227 = vmatpush1.msra.mxu0 0.0
    %228 = vmatprep.subr.mxu0 0.0
    %229 = vmatpush1.msra.mxu0 0.0
    %230 = vmatprep.subr.mxu0 0.0
    %231 = vmatpush1.msra.mxu0 0.0
    %232 = vmatprep.subr.mxu0 0.0
    %233 = vmatpush1.msra.mxu0 0.0
    %234 = vmatprep.subr.mxu0 0.0
    %235 = vmatpush1.msra.mxu0 0.0
    %236 = vmatprep.subr.mxu0 0.0
    %237 = vmatpush1.msra.mxu0 0.0
    %238 = vmatprep.subr.mxu0 0.0
    %239 = vmatpush1.msra.mxu0 0.0
    %240 = vmatprep.subr.mxu0 0.0
    %241 = vmatpush1.msra.mxu0 0.0
    %242 = vmatprep.subr.mxu0 0.0
    %243 = vmatpush1.msra.mxu0 0.0
    %244 = vmatprep.subr.mxu0 0.0
    %245 = vmatpush1.msra.mxu0 0.0
    %246 = vmatprep.subr.mxu0 0.0
    %247 = vmatpush1.msra.mxu0 0.0
    %248 = vmatprep.subr.mxu0 0.0
    %249 = vmatpush1.msra.mxu0 0.0
    %250 = vmatprep.subr.mxu0 0.0
    %251 = vmatpush1.msra.mxu0 0.0
    %252 = vmatprep.subr.mxu0 0.0
    %253 = vmatpush1.msra.mxu0 0.0
    %254 = vmatprep.mubr.f32.mxu0 0.0
    %255 = vmatmul.mubr.f32.gmra.mrb[0].mxu0 %v53
    %v256 = vpop.f32.mrb[0].mxu0
    %v257 = vadd.f32 0.0, %v256
    %v258 = vpop.f32.mrb[0].mxu0
    %259 = vmatprep.mubr.f32.mxu0 0.0
    %260 = vmatmul.mubr.f32.gmra.mrb[0].mxu0 %v56
    %v261 = vpop.f32.mrb[0].mxu0
    %v262 = vadd.f32 0.0, %v261
    %v263 = vpop.f32.mrb[0].mxu0
    %264 = vmatprep.mubr.f32.mxu0 0.0
    %265 = vmatmul.mubr.f32.gmra.mrb[0].mxu0 %v59
    %v266 = vpop.f32.mrb[0].mxu0
    %v267 = vadd.f32 0.0, %v266
    %v268 = vpop.f32.mrb[0].mxu0
    %269 = vmatprep.mubr.f32.mxu0 0.0
    %270 = vmatmul.mubr.f32.gmra.mrb[0].mxu0 %v62
    %v271 = vpop.f32.mrb[0].mxu0
    %v272 = vpop.f32.mrb[0].mxu0
    %273 = vmatprep.mubr.f32.mxu0 0.0
    %274 = vmatmul.mubr.f32.gmra.mrb[0].mxu0 %v65
    %v275 = vpop.f32.mrb[0].mxu0
    %v276 = vadd.f32 0.0, %v275
    %v277 = vpop.f32.mrb[0].mxu0
    %278 = vmatprep.mubr.f32.mxu0 0.0
    %279 = vmatmul.mubr.f32.gmra.mrb[0].mxu0 %v68
    %v280 = vpop.f32.mrb[0].mxu0
    %v281 = vadd.f32 0.0, %v280
    %v282 = vpop.f32.mrb[0].mxu0
    %283 = vmatprep.mubr.f32.mxu0 0.0
    %284 = vmatmul.mubr.f32.gmra.mrb[0].mxu0 %v71
    %v285 = vpop.f32.mrb[0].mxu0
    %v286 = vadd.f32 0.0, %v285
    %v287 = vpop.f32.mrb[0].mxu0
    %288 = vmatprep.mubr.f32.mxu0 0.0
    %289 = vmatmul.mubr.f32.gmra.mrb[0].mxu0 %v74
    %v290 = vpop.f32.mrb[0].mxu0
    %v291 = vpop.f32.mrb[0].mxu0
    %292 = vdwg.mxu0
    %v293 = vadd.f32 %v147, 0.0
    %v294 = vadd.f32 %v152, 0.0
    %v295 = vadd.f32 %v157, 0.0
    %v296 = vadd.f32 %v166, 0.0
    %v297 = vadd.f32 %v171, 0.0
    %v298 = vadd.f32 %v176, 0.0
    %v299 = vadd.f32 %v257, 0.0
    %v300 = vadd.f32 %v262, 0.0
    %v301 = vadd.f32 %v267, 0.0
    %v302 = vadd.f32 %v276, 0.0
    %v303 = vadd.f32 %v281, 0.0
    %v304 = vadd.f32 %v286, 0.0
    %s305 = scalar_lea.vmem %s1, 32
    %v306 = vld [vmem:[%s305] sm:$0xff]
    %v307 = vld [vmem:[%s305 + $0x8] sm:$0xff]
    %v308 = vld [vmem:[%s305 + $0x10] sm:$0xff]
    %v309 = vld [vmem:[%s305 + $0x18] sm:$0xf]
    %v311 = vsel %vm76, %v309, 0
    %313 = vmatprep.subr.mxu0 0.0
    %314 = vmatpush1.msra.mxu0 %v306
    %315 = vmatprep.subr.mxu0 0.0
    %316 = vmatpush1.msra.mxu0 %v307
    %317 = vmatprep.subr.mxu0 0.0
    %318 = vmatpush1.msra.mxu0 %v308
    %319 = vmatprep.subr.mxu0 0.0
    %320 = vmatpush1.msra.mxu0 %v311
    %321 = vmatprep.subr.mxu0 0.0
    %322 = vmatpush1.msra.mxu0 0.0
    %323 = vmatprep.subr.mxu0 0.0
    %324 = vmatpush1.msra.mxu0 0.0
    %325 = vmatprep.subr.mxu0 0.0
    %326 = vmatpush1.msra.mxu0 0.0
    %327 = vmatprep.subr.mxu0 0.0
    %328 = vmatpush1.msra.mxu0 0.0
    %329 = vmatprep.subr.mxu0 0.0
    %330 = vmatpush1.msra.mxu0 0.0
    %331 = vmatprep.subr.mxu0 0.0
    %332 = vmatpush1.msra.mxu0 0.0
    %333 = vmatprep.subr.mxu0 0.0
    %334 = vmatpush1.msra.mxu0 0.0
    %335 = vmatprep.subr.mxu0 0.0
    %336 = vmatpush1.msra.mxu0 0.0
    %337 = vmatprep.subr.mxu0 0.0
    %338 = vmatpush1.msra.mxu0 0.0
    %339 = vmatprep.subr.mxu0 0.0
    %340 = vmatpush1.msra.mxu0 0.0
    %341 = vmatprep.subr.mxu0 0.0
    %342 = vmatpush1.msra.mxu0 0.0
    %343 = vmatprep.subr.mxu0 0.0
    %344 = vmatpush1.msra.mxu0 0.0
    %345 = vmatprep.subr.mxu0 0.0
    %346 = vmatpush1.msra.mxu0 0.0
    %347 = vmatprep.subr.mxu0 0.0
    %348 = vmatpush1.msra.mxu0 0.0
    %349 = vmatprep.subr.mxu0 0.0
    %350 = vmatpush1.msra.mxu0 0.0
    %351 = vmatprep.subr.mxu0 0.0
    %352 = vmatpush1.msra.mxu0 0.0
    %353 = vmatprep.subr.mxu0 0.0
    %354 = vmatpush1.msra.mxu0 0.0
    %355 = vmatprep.subr.mxu0 0.0
    %356 = vmatpush1.msra.mxu0 0.0
    %357 = vmatprep.subr.mxu0 0.0
    %358 = vmatpush1.msra.mxu0 0.0
    %359 = vmatprep.subr.mxu0 0.0
    %360 = vmatpush1.msra.mxu0 0.0
    %361 = vmatprep.subr.mxu0 0.0
    %362 = vmatpush1.msra.mxu0 0.0
    %363 = vmatprep.subr.mxu0 0.0
    %364 = vmatpush1.msra.mxu0 0.0
    %365 = vmatprep.subr.mxu0 0.0
    %366 = vmatpush1.msra.mxu0 0.0
    %367 = vmatprep.subr.mxu0 0.0
    %368 = vmatpush1.msra.mxu0 0.0
    %369 = vmatprep.subr.mxu0 0.0
    %370 = vmatpush1.msra.mxu0 0.0
    %371 = vmatprep.subr.mxu0 0.0
    %372 = vmatpush1.msra.mxu0 0.0
    %373 = vmatprep.subr.mxu0 0.0
    %374 = vmatpush1.msra.mxu0 0.0
    %375 = vmatprep.subr.mxu0 0.0
    %376 = vmatpush1.msra.mxu0 0.0
    %377 = vmatprep.mubr.f32.mxu0 0.0
    %378 = vmatmul.mubr.f32.gmra.mrb[0].mxu0 %v53
    %v379 = vpop.f32.mrb[0].mxu0
    %v380 = vadd.f32 0.0, %v379
    %v381 = vpop.f32.mrb[0].mxu0
    %382 = vmatprep.mubr.f32.mxu0 0.0
    %383 = vmatmul.mubr.f32.gmra.mrb[0].mxu0 %v56
    %v384 = vpop.f32.mrb[0].mxu0
    %v385 = vadd.f32 0.0, %v384
    %v386 = vpop.f32.mrb[0].mxu0
    %387 = vmatprep.mubr.f32.mxu0 0.0
    %388 = vmatmul.mubr.f32.gmra.mrb[0].mxu0 %v59
    %v389 = vpop.f32.mrb[0].mxu0
    %v390 = vadd.f32 0.0, %v389
    %v391 = vpop.f32.mrb[0].mxu0
    %392 = vmatprep.mubr.f32.mxu0 0.0
    %393 = vmatmul.mubr.f32.gmra.mrb[0].mxu0 %v62
    %v394 = vpop.f32.mrb[0].mxu0
    %v395 = vadd.f32 0.0, %v394
    %v396 = vpop.f32.mrb[0].mxu0
    %397 = vmatprep.mubr.f32.mxu0 0.0
    %398 = vmatmul.mubr.f32.gmra.mrb[0].mxu0 %v65
    %v399 = vpop.f32.mrb[0].mxu0
    %v400 = vadd.f32 0.0, %v399
    %v401 = vpop.f32.mrb[0].mxu0
    %402 = vmatprep.mubr.f32.mxu0 0.0
    %403 = vmatmul.mubr.f32.gmra.mrb[0].mxu0 %v68
    %v404 = vpop.f32.mrb[0].mxu0
    %v405 = vadd.f32 0.0, %v404
    %v406 = vpop.f32.mrb[0].mxu0
    %407 = vmatprep.mubr.f32.mxu0 0.0
    %408 = vmatmul.mubr.f32.gmra.mrb[0].mxu0 %v71
    %v409 = vpop.f32.mrb[0].mxu0
    %v410 = vadd.f32 0.0, %v409
    %v411 = vpop.f32.mrb[0].mxu0
    %412 = vmatprep.mubr.f32.mxu0 0.0
    %413 = vmatmul.mubr.f32.gmra.mrb[0].mxu0 %v74
    %v414 = vpop.f32.mrb[0].mxu0
    %v415 = vadd.f32 0.0, %v414
    %v416 = vpop.f32.mrb[0].mxu0
    %417 = vdwg.mxu0
    %s418 = scalar_lea.vmem %s2, 32
    %v419 = vld [vmem:[%s418] sm:$0xff]
    %v420 = vld [vmem:[%s418 + $0x8] sm:$0xff]
    %v421 = vld [vmem:[%s418 + $0x10] sm:$0xff]
    %v422 = vld [vmem:[%s418 + $0x18] sm:$0xf]
    %v424 = vsel %vm76, %v422, 0
    %426 = vmatprep.subr.mxu0 0.0
    %427 = vmatpush1.msra.mxu0 %v419
    %428 = vmatprep.subr.mxu0 0.0
    %429 = vmatpush1.msra.mxu0 %v420
    %430 = vmatprep.subr.mxu0 0.0
    %431 = vmatpush1.msra.mxu0 %v421
    %432 = vmatprep.subr.mxu0 0.0
    %433 = vmatpush1.msra.mxu0 %v424
    %434 = vmatprep.subr.mxu0 0.0
    %435 = vmatpush1.msra.mxu0 0.0
    %436 = vmatprep.subr.mxu0 0.0
    %437 = vmatpush1.msra.mxu0 0.0
    %438 = vmatprep.subr.mxu0 0.0
    %439 = vmatpush1.msra.mxu0 0.0
    %440 = vmatprep.subr.mxu0 0.0
    %441 = vmatpush1.msra.mxu0 0.0
    %442 = vmatprep.subr.mxu0 0.0
    %443 = vmatpush1.msra.mxu0 0.0
    %444 = vmatprep.subr.mxu0 0.0
    %445 = vmatpush1.msra.mxu0 0.0
    %446 = vmatprep.subr.mxu0 0.0
    %447 = vmatpush1.msra.mxu0 0.0
    %448 = vmatprep.subr.mxu0 0.0
    %449 = vmatpush1.msra.mxu0 0.0
    %450 = vmatprep.subr.mxu0 0.0
    %451 = vmatpush1.msra.mxu0 0.0
    %452 = vmatprep.subr.mxu0 0.0
    %453 = vmatpush1.msra.mxu0 0.0
    %454 = vmatprep.subr.mxu0 0.0
    %455 = vmatpush1.msra.mxu0 0.0
    %456 = vmatprep.subr.mxu0 0.0
    %457 = vmatpush1.msra.mxu0 0.0
    %458 = vmatprep.subr.mxu0 0.0
    %459 = vmatpush1.msra.mxu0 0.0
    %460 = vmatprep.subr.mxu0 0.0
    %461 = vmatpush1.msra.mxu0 0.0
    %462 = vmatprep.subr.mxu0 0.0
    %463 = vmatpush1.msra.mxu0 0.0
    %464 = vmatprep.subr.mxu0 0.0
    %465 = vmatpush1.msra.mxu0 0.0
    %466 = vmatprep.subr.mxu0 0.0
    %467 = vmatpush1.msra.mxu0 0.0
    %468 = vmatprep.subr.mxu0 0.0
    %469 = vmatpush1.msra.mxu0 0.0
    %470 = vmatprep.subr.mxu0 0.0
    %471 = vmatpush1.msra.mxu0 0.0
    %472 = vmatprep.subr.mxu0 0.0
    %473 = vmatpush1.msra.mxu0 0.0
    %474 = vmatprep.subr.mxu0 0.0
    %475 = vmatpush1.msra.mxu0 0.0
    %476 = vmatprep.subr.mxu0 0.0
    %477 = vmatpush1.msra.mxu0 0.0
    %478 = vmatprep.subr.mxu0 0.0
    %479 = vmatpush1.msra.mxu0 0.0
    %480 = vmatprep.subr.mxu0 0.0
    %481 = vmatpush1.msra.mxu0 0.0
    %482 = vmatprep.subr.mxu0 0.0
    %483 = vmatpush1.msra.mxu0 0.0
    %484 = vmatprep.subr.mxu0 0.0
    %485 = vmatpush1.msra.mxu0 0.0
    %486 = vmatprep.subr.mxu0 0.0
    %487 = vmatpush1.msra.mxu0 0.0
    %488 = vmatprep.subr.mxu0 0.0
    %489 = vmatpush1.msra.mxu0 0.0
    %490 = vmatprep.mubr.f32.mxu0 0.0
    %491 = vmatmul.mubr.f32.gmra.mrb[0].mxu0 %v53
    %v492 = vpop.f32.mrb[0].mxu0
    %v493 = vadd.f32 0.0, %v492
    %v494 = vpop.f32.mrb[0].mxu0
    %495 = vmatprep.mubr.f32.mxu0 0.0
    %496 = vmatmul.mubr.f32.gmra.mrb[0].mxu0 %v56
    %v497 = vpop.f32.mrb[0].mxu0
    %v498 = vadd.f32 0.0, %v497
    %v499 = vpop.f32.mrb[0].mxu0
    %500 = vmatprep.mubr.f32.mxu0 0.0
    %501 = vmatmul.mubr.f32.gmra.mrb[0].mxu0 %v59
    %v502 = vpop.f32.mrb[0].mxu0
    %v503 = vadd.f32 0.0, %v502
    %v504 = vpop.f32.mrb[0].mxu0
    %505 = vmatprep.mubr.f32.mxu0 0.0
    %506 = vmatmul.mubr.f32.gmra.mrb[0].mxu0 %v62
    %v507 = vpop.f32.mrb[0].mxu0
    %v508 = vadd.f32 0.0, %v507
    %v509 = vpop.f32.mrb[0].mxu0
    %510 = vmatprep.mubr.f32.mxu0 0.0
    %511 = vmatmul.mubr.f32.gmra.mrb[0].mxu0 %v65
    %v512 = vpop.f32.mrb[0].mxu0
    %v513 = vadd.f32 0.0, %v512
    %v514 = vpop.f32.mrb[0].mxu0
    %515 = vmatprep.mubr.f32.mxu0 0.0
    %516 = vmatmul.mubr.f32.gmra.mrb[0].mxu0 %v68
    %v517 = vpop.f32.mrb[0].mxu0
    %v518 = vadd.f32 0.0, %v517
    %v519 = vpop.f32.mrb[0].mxu0
    %520 = vmatprep.mubr.f32.mxu0 0.0
    %521 = vmatmul.mubr.f32.gmra.mrb[0].mxu0 %v71
    %v522 = vpop.f32.mrb[0].mxu0
    %v523 = vadd.f32 0.0, %v522
    %v524 = vpop.f32.mrb[0].mxu0
    %525 = vmatprep.mubr.f32.mxu0 0.0
    %526 = vmatmul.mubr.f32.gmra.mrb[0].mxu0 %v74
    %v527 = vpop.f32.mrb[0].mxu0
    %v528 = vadd.f32 0.0, %v527
    %v529 = vpop.f32.mrb[0].mxu0
    %530 = vdwg.mxu0
    %vm539 = vcmask 1046528
    %v540 = vrot.slane %v380, 1
    %v541 = vrot.slane %v385, 1
    %v542 = vsel %vm539, %v540, %v541
    %v543 = vrot.slane %v390, 1
    %v544 = vsel %vm539, %v541, %v543
    %v545 = vrot.slane %v395, 1
    %v546 = vsel %vm539, %v543, %v545
    %v547 = vrot.slane %v400, 1
    %v548 = vrot.slane %v405, 1
    %v549 = vsel %vm539, %v547, %v548
    %v550 = vrot.slane %v410, 1
    %v551 = vsel %vm539, %v548, %v550
    %v552 = vrot.slane %v415, 1
    %v553 = vsel %vm539, %v550, %v552
    %v560 = vadd.f32 %v293, %v542
    %v561 = vadd.f32 %v294, %v544
    %v562 = vadd.f32 %v295, %v546
    %v563 = vadd.f32 %v296, %v549
    %v564 = vadd.f32 %v297, %v551
    %v565 = vadd.f32 %v298, %v553
    %v574 = vrot.slane %v493, 1
    %v575 = vrot.slane %v498, 1
    %v576 = vsel %vm539, %v574, %v575
    %v577 = vrot.slane %v503, 1
    %v578 = vsel %vm539, %v575, %v577
    %v579 = vrot.slane %v508, 1
    %v580 = vsel %vm539, %v577, %v579
    %v581 = vrot.slane %v513, 1
    %v582 = vrot.slane %v518, 1
    %v583 = vsel %vm539, %v581, %v582
    %v584 = vrot.slane %v523, 1
    %v585 = vsel %vm539, %v582, %v584
    %v586 = vrot.slane %v528, 1
    %v587 = vsel %vm539, %v584, %v586
    %v594 = vadd.f32 %v299, %v576
    %v595 = vadd.f32 %v300, %v578
    %v596 = vadd.f32 %v301, %v580
    %v597 = vadd.f32 %v302, %v583
    %v598 = vadd.f32 %v303, %v585
    %v599 = vadd.f32 %v304, %v587
    %s600 = scalar_lea.vmem %s1, 64
    %v601 = vld [vmem:[%s600] sm:$0xff]
    %v602 = vld [vmem:[%s600 + $0x8] sm:$0xff]
    %v603 = vld [vmem:[%s600 + $0x10] sm:$0xff]
    %v604 = vld [vmem:[%s600 + $0x18] sm:$0xf]
    %v606 = vsel %vm76, %v604, 0
    %608 = vmatprep.subr.mxu0 0.0
    %609 = vmatpush1.msra.mxu0 %v601
    %610 = vmatprep.subr.mxu0 0.0
    %611 = vmatpush1.msra.mxu0 %v602
    %612 = vmatprep.subr.mxu0 0.0
    %613 = vmatpush1.msra.mxu0 %v603
    %614 = vmatprep.subr.mxu0 0.0
    %615 = vmatpush1.msra.mxu0 %v606
    %616 = vmatprep.subr.mxu0 0.0
    %617 = vmatpush1.msra.mxu0 0.0
    %618 = vmatprep.subr.mxu0 0.0
    %619 = vmatpush1.msra.mxu0 0.0
    %620 = vmatprep.subr.mxu0 0.0
    %621 = vmatpush1.msra.mxu0 0.0
    %622 = vmatprep.subr.mxu0 0.0
    %623 = vmatpush1.msra.mxu0 0.0
    %624 = vmatprep.subr.mxu0 0.0
    %625 = vmatpush1.msra.mxu0 0.0
    %626 = vmatprep.subr.mxu0 0.0
    %627 = vmatpush1.msra.mxu0 0.0
    %628 = vmatprep.subr.mxu0 0.0
    %629 = vmatpush1.msra.mxu0 0.0
    %630 = vmatprep.subr.mxu0 0.0
    %631 = vmatpush1.msra.mxu0 0.0
    %632 = vmatprep.subr.mxu0 0.0
    %633 = vmatpush1.msra.mxu0 0.0
    %634 = vmatprep.subr.mxu0 0.0
    %635 = vmatpush1.msra.mxu0 0.0
    %636 = vmatprep.subr.mxu0 0.0
    %637 = vmatpush1.msra.mxu0 0.0
    %638 = vmatprep.subr.mxu0 0.0
    %639 = vmatpush1.msra.mxu0 0.0
    %640 = vmatprep.subr.mxu0 0.0
    %641 = vmatpush1.msra.mxu0 0.0
    %642 = vmatprep.subr.mxu0 0.0
    %643 = vmatpush1.msra.mxu0 0.0
    %644 = vmatprep.subr.mxu0 0.0
    %645 = vmatpush1.msra.mxu0 0.0
    %646 = vmatprep.subr.mxu0 0.0
    %647 = vmatpush1.msra.mxu0 0.0
    %648 = vmatprep.subr.mxu0 0.0
    %649 = vmatpush1.msra.mxu0 0.0
    %650 = vmatprep.subr.mxu0 0.0
    %651 = vmatpush1.msra.mxu0 0.0
    %652 = vmatprep.subr.mxu0 0.0
    %653 = vmatpush1.msra.mxu0 0.0
    %654 = vmatprep.subr.mxu0 0.0
    %655 = vmatpush1.msra.mxu0 0.0
    %656 = vmatprep.subr.mxu0 0.0
    %657 = vmatpush1.msra.mxu0 0.0
    %658 = vmatprep.subr.mxu0 0.0
    %659 = vmatpush1.msra.mxu0 0.0
    %660 = vmatprep.subr.mxu0 0.0
    %661 = vmatpush1.msra.mxu0 0.0
    %662 = vmatprep.subr.mxu0 0.0
    %663 = vmatpush1.msra.mxu0 0.0
    %664 = vmatprep.subr.mxu0 0.0
    %665 = vmatpush1.msra.mxu0 0.0
    %666 = vmatprep.subr.mxu0 0.0
    %667 = vmatpush1.msra.mxu0 0.0
    %668 = vmatprep.subr.mxu0 0.0
    %669 = vmatpush1.msra.mxu0 0.0
    %670 = vmatprep.subr.mxu0 0.0
    %671 = vmatpush1.msra.mxu0 0.0
    %672 = vmatprep.mubr.f32.mxu0 0.0
    %673 = vmatmul.mubr.f32.gmra.mrb[0].mxu0 %v53
    %v674 = vpop.f32.mrb[0].mxu0
    %v675 = vadd.f32 0.0, %v674
    %v676 = vpop.f32.mrb[0].mxu0
    %677 = vmatprep.mubr.f32.mxu0 0.0
    %678 = vmatmul.mubr.f32.gmra.mrb[0].mxu0 %v56
    %v679 = vpop.f32.mrb[0].mxu0
    %v680 = vadd.f32 0.0, %v679
    %v681 = vpop.f32.mrb[0].mxu0
    %682 = vmatprep.mubr.f32.mxu0 0.0
    %683 = vmatmul.mubr.f32.gmra.mrb[0].mxu0 %v59
    %v684 = vpop.f32.mrb[0].mxu0
    %v685 = vadd.f32 0.0, %v684
    %v686 = vpop.f32.mrb[0].mxu0
    %687 = vmatprep.mubr.f32.mxu0 0.0
    %688 = vmatmul.mubr.f32.gmra.mrb[0].mxu0 %v62
    %v689 = vpop.f32.mrb[0].mxu0
    %v690 = vadd.f32 0.0, %v689
    %v691 = vpop.f32.mrb[0].mxu0
    %692 = vmatprep.mubr.f32.mxu0 0.0
    %693 = vmatmul.mubr.f32.gmra.mrb[0].mxu0 %v65
    %v694 = vpop.f32.mrb[0].mxu0
    %v695 = vadd.f32 0.0, %v694
    %v696 = vpop.f32.mrb[0].mxu0
    %697 = vmatprep.mubr.f32.mxu0 0.0
    %698 = vmatmul.mubr.f32.gmra.mrb[0].mxu0 %v68
    %v699 = vpop.f32.mrb[0].mxu0
    %v700 = vadd.f32 0.0, %v699
    %v701 = vpop.f32.mrb[0].mxu0
    %702 = vmatprep.mubr.f32.mxu0 0.0
    %703 = vmatmul.mubr.f32.gmra.mrb[0].mxu0 %v71
    %v704 = vpop.f32.mrb[0].mxu0
    %v705 = vadd.f32 0.0, %v704
    %v706 = vpop.f32.mrb[0].mxu0
    %707 = vmatprep.mubr.f32.mxu0 0.0
    %708 = vmatmul.mubr.f32.gmra.mrb[0].mxu0 %v74
    %v709 = vpop.f32.mrb[0].mxu0
    %v710 = vadd.f32 0.0, %v709
    %v711 = vpop.f32.mrb[0].mxu0
    %712 = vdwg.mxu0
    %s713 = scalar_lea.vmem %s2, 64
    %v714 = vld [vmem:[%s713] sm:$0xff]
    %v715 = vld [vmem:[%s713 + $0x8] sm:$0xff]
    %v716 = vld [vmem:[%s713 + $0x10] sm:$0xff]
    %v717 = vld [vmem:[%s713 + $0x18] sm:$0xf]
    %v719 = vsel %vm76, %v717, 0
    %721 = vmatprep.subr.mxu0 0.0
    %722 = vmatpush1.msra.mxu0 %v714
    %723 = vmatprep.subr.mxu0 0.0
    %724 = vmatpush1.msra.mxu0 %v715
    %725 = vmatprep.subr.mxu0 0.0
    %726 = vmatpush1.msra.mxu0 %v716
    %727 = vmatprep.subr.mxu0 0.0
    %728 = vmatpush1.msra.mxu0 %v719
    %729 = vmatprep.subr.mxu0 0.0
    %730 = vmatpush1.msra.mxu0 0.0
    %731 = vmatprep.subr.mxu0 0.0
    %732 = vmatpush1.msra.mxu0 0.0
    %733 = vmatprep.subr.mxu0 0.0
    %734 = vmatpush1.msra.mxu0 0.0
    %735 = vmatprep.subr.mxu0 0.0
    %736 = vmatpush1.msra.mxu0 0.0
    %737 = vmatprep.subr.mxu0 0.0
    %738 = vmatpush1.msra.mxu0 0.0
    %739 = vmatprep.subr.mxu0 0.0
    %740 = vmatpush1.msra.mxu0 0.0
    %741 = vmatprep.subr.mxu0 0.0
    %742 = vmatpush1.msra.mxu0 0.0
    %743 = vmatprep.subr.mxu0 0.0
    %744 = vmatpush1.msra.mxu0 0.0
    %745 = vmatprep.subr.mxu0 0.0
    %746 = vmatpush1.msra.mxu0 0.0
    %747 = vmatprep.subr.mxu0 0.0
    %748 = vmatpush1.msra.mxu0 0.0
    %749 = vmatprep.subr.mxu0 0.0
    %750 = vmatpush1.msra.mxu0 0.0
    %751 = vmatprep.subr.mxu0 0.0
    %752 = vmatpush1.msra.mxu0 0.0
    %753 = vmatprep.subr.mxu0 0.0
    %754 = vmatpush1.msra.mxu0 0.0
    %755 = vmatprep.subr.mxu0 0.0
    %756 = vmatpush1.msra.mxu0 0.0
    %757 = vmatprep.subr.mxu0 0.0
    %758 = vmatpush1.msra.mxu0 0.0
    %759 = vmatprep.subr.mxu0 0.0
    %760 = vmatpush1.msra.mxu0 0.0
    %761 = vmatprep.subr.mxu0 0.0
    %762 = vmatpush1.msra.mxu0 0.0
    %763 = vmatprep.subr.mxu0 0.0
    %764 = vmatpush1.msra.mxu0 0.0
    %765 = vmatprep.subr.mxu0 0.0
    %766 = vmatpush1.msra.mxu0 0.0
    %767 = vmatprep.subr.mxu0 0.0
    %768 = vmatpush1.msra.mxu0 0.0
    %769 = vmatprep.subr.mxu0 0.0
    %770 = vmatpush1.msra.mxu0 0.0
    %771 = vmatprep.subr.mxu0 0.0
    %772 = vmatpush1.msra.mxu0 0.0
    %773 = vmatprep.subr.mxu0 0.0
    %774 = vmatpush1.msra.mxu0 0.0
    %775 = vmatprep.subr.mxu0 0.0
    %776 = vmatpush1.msra.mxu0 0.0
    %777 = vmatprep.subr.mxu0 0.0
    %778 = vmatpush1.msra.mxu0 0.0
    %779 = vmatprep.subr.mxu0 0.0
    %780 = vmatpush1.msra.mxu0 0.0
    %781 = vmatprep.subr.mxu0 0.0
    %782 = vmatpush1.msra.mxu0 0.0
    %783 = vmatprep.subr.mxu0 0.0
    %784 = vmatpush1.msra.mxu0 0.0
    %785 = vmatprep.mubr.f32.mxu0 0.0
    %786 = vmatmul.mubr.f32.gmra.mrb[0].mxu0 %v53
    %v787 = vpop.f32.mrb[0].mxu0
    %v788 = vadd.f32 0.0, %v787
    %v789 = vpop.f32.mrb[0].mxu0
    %790 = vmatprep.mubr.f32.mxu0 0.0
    %791 = vmatmul.mubr.f32.gmra.mrb[0].mxu0 %v56
    %v792 = vpop.f32.mrb[0].mxu0
    %v793 = vadd.f32 0.0, %v792
    %v794 = vpop.f32.mrb[0].mxu0
    %795 = vmatprep.mubr.f32.mxu0 0.0
    %796 = vmatmul.mubr.f32.gmra.mrb[0].mxu0 %v59
    %v797 = vpop.f32.mrb[0].mxu0
    %v798 = vadd.f32 0.0, %v797
    %v799 = vpop.f32.mrb[0].mxu0
    %800 = vmatprep.mubr.f32.mxu0 0.0
    %801 = vmatmul.mubr.f32.gmra.mrb[0].mxu0 %v62
    %v802 = vpop.f32.mrb[0].mxu0
    %v803 = vadd.f32 0.0, %v802
    %v804 = vpop.f32.mrb[0].mxu0
    %805 = vmatprep.mubr.f32.mxu0 0.0
    %806 = vmatmul.mubr.f32.gmra.mrb[0].mxu0 %v65
    %v807 = vpop.f32.mrb[0].mxu0
    %v808 = vadd.f32 0.0, %v807
    %v809 = vpop.f32.mrb[0].mxu0
    %810 = vmatprep.mubr.f32.mxu0 0.0
    %811 = vmatmul.mubr.f32.gmra.mrb[0].mxu0 %v68
    %v812 = vpop.f32.mrb[0].mxu0
    %v813 = vadd.f32 0.0, %v812
    %v814 = vpop.f32.mrb[0].mxu0
    %815 = vmatprep.mubr.f32.mxu0 0.0
    %816 = vmatmul.mubr.f32.gmra.mrb[0].mxu0 %v71
    %v817 = vpop.f32.mrb[0].mxu0
    %v818 = vadd.f32 0.0, %v817
    %v819 = vpop.f32.mrb[0].mxu0
    %820 = vmatprep.mubr.f32.mxu0 0.0
    %821 = vmatmul.mubr.f32.gmra.mrb[0].mxu0 %v74
    %v822 = vpop.f32.mrb[0].mxu0
    %v823 = vadd.f32 0.0, %v822
    %v824 = vpop.f32.mrb[0].mxu0
    %825 = vdwg.mxu0
    %vm834 = vcmask 1045504
    %v835 = vrot.slane %v675, 2
    %v836 = vrot.slane %v680, 2
    %v837 = vsel %vm834, %v835, %v836
    %v838 = vrot.slane %v685, 2
    %v839 = vsel %vm834, %v836, %v838
    %v840 = vrot.slane %v690, 2
    %v841 = vsel %vm834, %v838, %v840
    %v842 = vrot.slane %v695, 2
    %v843 = vrot.slane %v700, 2
    %v844 = vsel %vm834, %v842, %v843
    %v845 = vrot.slane %v705, 2
    %v846 = vsel %vm834, %v843, %v845
    %v847 = vrot.slane %v710, 2
    %v848 = vsel %vm834, %v845, %v847
    %v855 = vadd.f32 %v560, %v837
    %v856 = vadd.f32 %v561, %v839
    %v857 = vadd.f32 %v562, %v841
    %v858 = vadd.f32 %v563, %v844
    %v859 = vadd.f32 %v564, %v846
    %v860 = vadd.f32 %v565, %v848
    %v869 = vrot.slane %v788, 2
    %v870 = vrot.slane %v793, 2
    %v871 = vsel %vm834, %v869, %v870
    %v872 = vrot.slane %v798, 2
    %v873 = vsel %vm834, %v870, %v872
    %v874 = vrot.slane %v803, 2
    %v875 = vsel %vm834, %v872, %v874
    %v876 = vrot.slane %v808, 2
    %v877 = vrot.slane %v813, 2
    %v878 = vsel %vm834, %v876, %v877
    %v879 = vrot.slane %v818, 2
    %v880 = vsel %vm834, %v877, %v879
    %v881 = vrot.slane %v823, 2
    %v882 = vsel %vm834, %v879, %v881
    %v889 = vadd.f32 %v594, %v871
    %v890 = vadd.f32 %v595, %v873
    %v891 = vadd.f32 %v596, %v875
    %v892 = vadd.f32 %v597, %v878
    %v893 = vadd.f32 %v598, %v880
    %v894 = vadd.f32 %v599, %v882
    %s895 = scalar_lea.vmem %s1, 96
    %v896 = vld [vmem:[%s895] sm:$0xff]
    %v897 = vld [vmem:[%s895 + $0x8] sm:$0xff]
    %v898 = vld [vmem:[%s895 + $0x10] sm:$0xff]
    %v899 = vld [vmem:[%s895 + $0x18] sm:$0xf]
    %v901 = vsel %vm76, %v899, 0
    %903 = vmatprep.subr.mxu0 0.0
    %904 = vmatpush1.msra.mxu0 %v896
    %905 = vmatprep.subr.mxu0 0.0
    %906 = vmatpush1.msra.mxu0 %v897
    %907 = vmatprep.subr.mxu0 0.0
    %908 = vmatpush1.msra.mxu0 %v898
    %909 = vmatprep.subr.mxu0 0.0
    %910 = vmatpush1.msra.mxu0 %v901
    %911 = vmatprep.subr.mxu0 0.0
    %912 = vmatpush1.msra.mxu0 0.0
    %913 = vmatprep.subr.mxu0 0.0
    %914 = vmatpush1.msra.mxu0 0.0
    %915 = vmatprep.subr.mxu0 0.0
    %916 = vmatpush1.msra.mxu0 0.0
    %917 = vmatprep.subr.mxu0 0.0
    %918 = vmatpush1.msra.mxu0 0.0
    %919 = vmatprep.subr.mxu0 0.0
    %920 = vmatpush1.msra.mxu0 0.0
    %921 = vmatprep.subr.mxu0 0.0
    %922 = vmatpush1.msra.mxu0 0.0
    %923 = vmatprep.subr.mxu0 0.0
    %924 = vmatpush1.msra.mxu0 0.0
    %925 = vmatprep.subr.mxu0 0.0
    %926 = vmatpush1.msra.mxu0 0.0
    %927 = vmatprep.subr.mxu0 0.0
    %928 = vmatpush1.msra.mxu0 0.0
    %929 = vmatprep.subr.mxu0 0.0
    %930 = vmatpush1.msra.mxu0 0.0
    %931 = vmatprep.subr.mxu0 0.0
    %932 = vmatpush1.msra.mxu0 0.0
    %933 = vmatprep.subr.mxu0 0.0
    %934 = vmatpush1.msra.mxu0 0.0
    %935 = vmatprep.subr.mxu0 0.0
    %936 = vmatpush1.msra.mxu0 0.0
    %937 = vmatprep.subr.mxu0 0.0
    %938 = vmatpush1.msra.mxu0 0.0
    %939 = vmatprep.subr.mxu0 0.0
    %940 = vmatpush1.msra.mxu0 0.0
    %941 = vmatprep.subr.mxu0 0.0
    %942 = vmatpush1.msra.mxu0 0.0
    %943 = vmatprep.subr.mxu0 0.0
    %944 = vmatpush1.msra.mxu0 0.0
    %945 = vmatprep.subr.mxu0 0.0
    %946 = vmatpush1.msra.mxu0 0.0
    %947 = vmatprep.subr.mxu0 0.0
    %948 = vmatpush1.msra.mxu0 0.0
    %949 = vmatprep.subr.mxu0 0.0
    %950 = vmatpush1.msra.mxu0 0.0
    %951 = vmatprep.subr.mxu0 0.0
    %952 = vmatpush1.msra.mxu0 0.0
    %953 = vmatprep.subr.mxu0 0.0
    %954 = vmatpush1.msra.mxu0 0.0
    %955 = vmatprep.subr.mxu0 0.0
    %956 = vmatpush1.msra.mxu0 0.0
    %957 = vmatprep.subr.mxu0 0.0
    %958 = vmatpush1.msra.mxu0 0.0
    %959 = vmatprep.subr.mxu0 0.0
    %960 = vmatpush1.msra.mxu0 0.0
    %961 = vmatprep.subr.mxu0 0.0
    %962 = vmatpush1.msra.mxu0 0.0
    %963 = vmatprep.subr.mxu0 0.0
    %964 = vmatpush1.msra.mxu0 0.0
    %965 = vmatprep.subr.mxu0 0.0
    %966 = vmatpush1.msra.mxu0 0.0
    %967 = vmatprep.mubr.f32.mxu0 0.0
    %968 = vmatmul.mubr.f32.gmra.mrb[0].mxu0 %v53
    %v969 = vpop.f32.mrb[0].mxu0
    %v970 = vadd.f32 0.0, %v969
    %v971 = vpop.f32.mrb[0].mxu0
    %972 = vmatprep.mubr.f32.mxu0 0.0
    %973 = vmatmul.mubr.f32.gmra.mrb[0].mxu0 %v56
    %v974 = vpop.f32.mrb[0].mxu0
    %v975 = vadd.f32 0.0, %v974
    %v976 = vpop.f32.mrb[0].mxu0
    %977 = vmatprep.mubr.f32.mxu0 0.0
    %978 = vmatmul.mubr.f32.gmra.mrb[0].mxu0 %v59
    %v979 = vpop.f32.mrb[0].mxu0
    %v980 = vadd.f32 0.0, %v979
    %v981 = vpop.f32.mrb[0].mxu0
    %982 = vmatprep.mubr.f32.mxu0 0.0
    %983 = vmatmul.mubr.f32.gmra.mrb[0].mxu0 %v62
    %v984 = vpop.f32.mrb[0].mxu0
    %v985 = vadd.f32 0.0, %v984
    %v986 = vpop.f32.mrb[0].mxu0
    %987 = vmatprep.mubr.f32.mxu0 0.0
    %988 = vmatmul.mubr.f32.gmra.mrb[0].mxu0 %v65
    %v989 = vpop.f32.mrb[0].mxu0
    %v990 = vadd.f32 0.0, %v989
    %v991 = vpop.f32.mrb[0].mxu0
    %992 = vmatprep.mubr.f32.mxu0 0.0
    %993 = vmatmul.mubr.f32.gmra.mrb[0].mxu0 %v68
    %v994 = vpop.f32.mrb[0].mxu0
    %v995 = vadd.f32 0.0, %v994
    %v996 = vpop.f32.mrb[0].mxu0
    %997 = vmatprep.mubr.f32.mxu0 0.0
    %998 = vmatmul.mubr.f32.gmra.mrb[0].mxu0 %v71
    %v999 = vpop.f32.mrb[0].mxu0
    %v1000 = vadd.f32 0.0, %v999
    %v1001 = vpop.f32.mrb[0].mxu0
    %1002 = vmatprep.mubr.f32.mxu0 0.0
    %1003 = vmatmul.mubr.f32.gmra.mrb[0].mxu0 %v74
    %v1004 = vpop.f32.mrb[0].mxu0
    %v1005 = vadd.f32 0.0, %v1004
    %v1006 = vpop.f32.mrb[0].mxu0
    %1007 = vdwg.mxu0
    %s1008 = scalar_lea.vmem %s2, 96
    %v1009 = vld [vmem:[%s1008] sm:$0xff]
    %v1010 = vld [vmem:[%s1008 + $0x8] sm:$0xff]
    %v1011 = vld [vmem:[%s1008 + $0x10] sm:$0xff]
    %v1012 = vld [vmem:[%s1008 + $0x18] sm:$0xf]
    %v1014 = vsel %vm76, %v1012, 0
    %1016 = vmatprep.subr.mxu0 0.0
    %1017 = vmatpush1.msra.mxu0 %v1009
    %1018 = vmatprep.subr.mxu0 0.0
    %1019 = vmatpush1.msra.mxu0 %v1010
    %1020 = vmatprep.subr.mxu0 0.0
    %1021 = vmatpush1.msra.mxu0 %v1011
    %1022 = vmatprep.subr.mxu0 0.0
    %1023 = vmatpush1.msra.mxu0 %v1014
    %1024 = vmatprep.subr.mxu0 0.0
    %1025 = vmatpush1.msra.mxu0 0.0
    %1026 = vmatprep.subr.mxu0 0.0
    %1027 = vmatpush1.msra.mxu0 0.0
    %1028 = vmatprep.subr.mxu0 0.0
    %1029 = vmatpush1.msra.mxu0 0.0
    %1030 = vmatprep.subr.mxu0 0.0
    %1031 = vmatpush1.msra.mxu0 0.0
    %1032 = vmatprep.subr.mxu0 0.0
    %1033 = vmatpush1.msra.mxu0 0.0
    %1034 = vmatprep.subr.mxu0 0.0
    %1035 = vmatpush1.msra.mxu0 0.0
    %1036 = vmatprep.subr.mxu0 0.0
    %1037 = vmatpush1.msra.mxu0 0.0
    %1038 = vmatprep.subr.mxu0 0.0
    %1039 = vmatpush1.msra.mxu0 0.0
    %1040 = vmatprep.subr.mxu0 0.0
    %1041 = vmatpush1.msra.mxu0 0.0
    %1042 = vmatprep.subr.mxu0 0.0
    %1043 = vmatpush1.msra.mxu0 0.0
    %1044 = vmatprep.subr.mxu0 0.0
    %1045 = vmatpush1.msra.mxu0 0.0
    %1046 = vmatprep.subr.mxu0 0.0
    %1047 = vmatpush1.msra.mxu0 0.0
    %1048 = vmatprep.subr.mxu0 0.0
    %1049 = vmatpush1.msra.mxu0 0.0
    %1050 = vmatprep.subr.mxu0 0.0
    %1051 = vmatpush1.msra.mxu0 0.0
    %1052 = vmatprep.subr.mxu0 0.0
    %1053 = vmatpush1.msra.mxu0 0.0
    %1054 = vmatprep.subr.mxu0 0.0
    %1055 = vmatpush1.msra.mxu0 0.0
    %1056 = vmatprep.subr.mxu0 0.0
    %1057 = vmatpush1.msra.mxu0 0.0
    %1058 = vmatprep.subr.mxu0 0.0
    %1059 = vmatpush1.msra.mxu0 0.0
    %1060 = vmatprep.subr.mxu0 0.0
    %1061 = vmatpush1.msra.mxu0 0.0
    %1062 = vmatprep.subr.mxu0 0.0
    %1063 = vmatpush1.msra.mxu0 0.0
    %1064 = vmatprep.subr.mxu0 0.0
    %1065 = vmatpush1.msra.mxu0 0.0
    %1066 = vmatprep.subr.mxu0 0.0
    %1067 = vmatpush1.msra.mxu0 0.0
    %1068 = vmatprep.subr.mxu0 0.0
    %1069 = vmatpush1.msra.mxu0 0.0
    %1070 = vmatprep.subr.mxu0 0.0
    %1071 = vmatpush1.msra.mxu0 0.0
    %1072 = vmatprep.subr.mxu0 0.0
    %1073 = vmatpush1.msra.mxu0 0.0
    %1074 = vmatprep.subr.mxu0 0.0
    %1075 = vmatpush1.msra.mxu0 0.0
    %1076 = vmatprep.subr.mxu0 0.0
    %1077 = vmatpush1.msra.mxu0 0.0
    %1078 = vmatprep.subr.mxu0 0.0
    %1079 = vmatpush1.msra.mxu0 0.0
    %1080 = vmatprep.mubr.f32.mxu0 0.0
    %1081 = vmatmul.mubr.f32.gmra.mrb[0].mxu0 %v53
    %v1082 = vpop.f32.mrb[0].mxu0
    %v1083 = vadd.f32 0.0, %v1082
    %v1084 = vpop.f32.mrb[0].mxu0
    %1085 = vmatprep.mubr.f32.mxu0 0.0
    %1086 = vmatmul.mubr.f32.gmra.mrb[0].mxu0 %v56
    %v1087 = vpop.f32.mrb[0].mxu0
    %v1088 = vadd.f32 0.0, %v1087
    %v1089 = vpop.f32.mrb[0].mxu0
    %1090 = vmatprep.mubr.f32.mxu0 0.0
    %1091 = vmatmul.mubr.f32.gmra.mrb[0].mxu0 %v59
    %v1092 = vpop.f32.mrb[0].mxu0
    %v1093 = vadd.f32 0.0, %v1092
    %v1094 = vpop.f32.mrb[0].mxu0
    %1095 = vmatprep.mubr.f32.mxu0 0.0
    %1096 = vmatmul.mubr.f32.gmra.mrb[0].mxu0 %v62
    %v1097 = vpop.f32.mrb[0].mxu0
    %v1098 = vadd.f32 0.0, %v1097
    %v1099 = vpop.f32.mrb[0].mxu0
    %1100 = vmatprep.mubr.f32.mxu0 0.0
    %1101 = vmatmul.mubr.f32.gmra.mrb[0].mxu0 %v65
    %v1102 = vpop.f32.mrb[0].mxu0
    %v1103 = vadd.f32 0.0, %v1102
    %v1104 = vpop.f32.mrb[0].mxu0
    %1105 = vmatprep.mubr.f32.mxu0 0.0
    %1106 = vmatmul.mubr.f32.gmra.mrb[0].mxu0 %v68
    %v1107 = vpop.f32.mrb[0].mxu0
    %v1108 = vadd.f32 0.0, %v1107
    %v1109 = vpop.f32.mrb[0].mxu0
    %1110 = vmatprep.mubr.f32.mxu0 0.0
    %1111 = vmatmul.mubr.f32.gmra.mrb[0].mxu0 %v71
    %v1112 = vpop.f32.mrb[0].mxu0
    %v1113 = vadd.f32 0.0, %v1112
    %v1114 = vpop.f32.mrb[0].mxu0
    %1115 = vmatprep.mubr.f32.mxu0 0.0
    %1116 = vmatmul.mubr.f32.gmra.mrb[0].mxu0 %v74
    %v1117 = vpop.f32.mrb[0].mxu0
    %v1118 = vadd.f32 0.0, %v1117
    %v1119 = vpop.f32.mrb[0].mxu0
    %1120 = vdwg.mxu0
    %vm1129 = vcmask 1044480
    %v1130 = vrot.slane %v970, 3
    %v1131 = vrot.slane %v975, 3
    %v1132 = vsel %vm1129, %v1130, %v1131
    %v1133 = vrot.slane %v980, 3
    %v1134 = vsel %vm1129, %v1131, %v1133
    %v1135 = vrot.slane %v985, 3
    %v1136 = vsel %vm1129, %v1133, %v1135
    %v1137 = vrot.slane %v990, 3
    %v1138 = vrot.slane %v995, 3
    %v1139 = vsel %vm1129, %v1137, %v1138
    %v1140 = vrot.slane %v1000, 3
    %v1141 = vsel %vm1129, %v1138, %v1140
    %v1142 = vrot.slane %v1005, 3
    %v1143 = vsel %vm1129, %v1140, %v1142
    %v1150 = vadd.f32 %v855, %v1132
    %v1151 = vadd.f32 %v856, %v1134
    %v1152 = vadd.f32 %v857, %v1136
    %v1153 = vadd.f32 %v858, %v1139
    %v1154 = vadd.f32 %v859, %v1141
    %v1155 = vadd.f32 %v860, %v1143
    %v1164 = vrot.slane %v1083, 3
    %v1165 = vrot.slane %v1088, 3
    %v1166 = vsel %vm1129, %v1164, %v1165
    %v1167 = vrot.slane %v1093, 3
    %v1168 = vsel %vm1129, %v1165, %v1167
    %v1169 = vrot.slane %v1098, 3
    %v1170 = vsel %vm1129, %v1167, %v1169
    %v1171 = vrot.slane %v1103, 3
    %v1172 = vrot.slane %v1108, 3
    %v1173 = vsel %vm1129, %v1171, %v1172
    %v1174 = vrot.slane %v1113, 3
    %v1175 = vsel %vm1129, %v1172, %v1174
    %v1176 = vrot.slane %v1118, 3
    %v1177 = vsel %vm1129, %v1174, %v1176
    %v1184 = vadd.f32 %v889, %v1166
    %v1185 = vadd.f32 %v890, %v1168
    %v1186 = vadd.f32 %v891, %v1170
    %v1187 = vadd.f32 %v892, %v1173
    %v1188 = vadd.f32 %v893, %v1175
    %v1189 = vadd.f32 %v894, %v1177
    %s1190 = scalar_lea.vmem %s1, 128
    %v1191 = vld [vmem:[%s1190] sm:$0xff]
    %v1192 = vld [vmem:[%s1190 + $0x8] sm:$0xff]
    %v1193 = vld [vmem:[%s1190 + $0x10] sm:$0xff]
    %v1194 = vld [vmem:[%s1190 + $0x18] sm:$0xf]
    %v1196 = vsel %vm76, %v1194, 0
    %1198 = vmatprep.subr.mxu0 0.0
    %1199 = vmatpush1.msra.mxu0 %v1191
    %1200 = vmatprep.subr.mxu0 0.0
    %1201 = vmatpush1.msra.mxu0 %v1192
    %1202 = vmatprep.subr.mxu0 0.0
    %1203 = vmatpush1.msra.mxu0 %v1193
    %1204 = vmatprep.subr.mxu0 0.0
    %1205 = vmatpush1.msra.mxu0 %v1196
    %1206 = vmatprep.subr.mxu0 0.0
    %1207 = vmatpush1.msra.mxu0 0.0
    %1208 = vmatprep.subr.mxu0 0.0
    %1209 = vmatpush1.msra.mxu0 0.0
    %1210 = vmatprep.subr.mxu0 0.0
    %1211 = vmatpush1.msra.mxu0 0.0
    %1212 = vmatprep.subr.mxu0 0.0
    %1213 = vmatpush1.msra.mxu0 0.0
    %1214 = vmatprep.subr.mxu0 0.0
    %1215 = vmatpush1.msra.mxu0 0.0
    %1216 = vmatprep.subr.mxu0 0.0
    %1217 = vmatpush1.msra.mxu0 0.0
    %1218 = vmatprep.subr.mxu0 0.0
    %1219 = vmatpush1.msra.mxu0 0.0
    %1220 = vmatprep.subr.mxu0 0.0
    %1221 = vmatpush1.msra.mxu0 0.0
    %1222 = vmatprep.subr.mxu0 0.0
    %1223 = vmatpush1.msra.mxu0 0.0
    %1224 = vmatprep.subr.mxu0 0.0
    %1225 = vmatpush1.msra.mxu0 0.0
    %1226 = vmatprep.subr.mxu0 0.0
    %1227 = vmatpush1.msra.mxu0 0.0
    %1228 = vmatprep.subr.mxu0 0.0
    %1229 = vmatpush1.msra.mxu0 0.0
    %1230 = vmatprep.subr.mxu0 0.0
    %1231 = vmatpush1.msra.mxu0 0.0
    %1232 = vmatprep.subr.mxu0 0.0
    %1233 = vmatpush1.msra.mxu0 0.0
    %1234 = vmatprep.subr.mxu0 0.0
    %1235 = vmatpush1.msra.mxu0 0.0
    %1236 = vmatprep.subr.mxu0 0.0
    %1237 = vmatpush1.msra.mxu0 0.0
    %1238 = vmatprep.subr.mxu0 0.0
    %1239 = vmatpush1.msra.mxu0 0.0
    %1240 = vmatprep.subr.mxu0 0.0
    %1241 = vmatpush1.msra.mxu0 0.0
    %1242 = vmatprep.subr.mxu0 0.0
    %1243 = vmatpush1.msra.mxu0 0.0
    %1244 = vmatprep.subr.mxu0 0.0
    %1245 = vmatpush1.msra.mxu0 0.0
    %1246 = vmatprep.subr.mxu0 0.0
    %1247 = vmatpush1.msra.mxu0 0.0
    %1248 = vmatprep.subr.mxu0 0.0
    %1249 = vmatpush1.msra.mxu0 0.0
    %1250 = vmatprep.subr.mxu0 0.0
    %1251 = vmatpush1.msra.mxu0 0.0
    %1252 = vmatprep.subr.mxu0 0.0
    %1253 = vmatpush1.msra.mxu0 0.0
    %1254 = vmatprep.subr.mxu0 0.0
    %1255 = vmatpush1.msra.mxu0 0.0
    %1256 = vmatprep.subr.mxu0 0.0
    %1257 = vmatpush1.msra.mxu0 0.0
    %1258 = vmatprep.subr.mxu0 0.0
    %1259 = vmatpush1.msra.mxu0 0.0
    %1260 = vmatprep.subr.mxu0 0.0
    %1261 = vmatpush1.msra.mxu0 0.0
    %1262 = vmatprep.mubr.f32.mxu0 0.0
    %1263 = vmatmul.mubr.f32.gmra.mrb[0].mxu0 %v53
    %v1264 = vpop.f32.mrb[0].mxu0
    %v1265 = vadd.f32 0.0, %v1264
    %v1266 = vpop.f32.mrb[0].mxu0
    %1267 = vmatprep.mubr.f32.mxu0 0.0
    %1268 = vmatmul.mubr.f32.gmra.mrb[0].mxu0 %v56
    %v1269 = vpop.f32.mrb[0].mxu0
    %v1270 = vadd.f32 0.0, %v1269
    %v1271 = vpop.f32.mrb[0].mxu0
    %1272 = vmatprep.mubr.f32.mxu0 0.0
    %1273 = vmatmul.mubr.f32.gmra.mrb[0].mxu0 %v59
    %v1274 = vpop.f32.mrb[0].mxu0
    %v1275 = vadd.f32 0.0, %v1274
    %v1276 = vpop.f32.mrb[0].mxu0
    %1277 = vmatprep.mubr.f32.mxu0 0.0
    %1278 = vmatmul.mubr.f32.gmra.mrb[0].mxu0 %v62
    %v1279 = vpop.f32.mrb[0].mxu0
    %v1280 = vadd.f32 0.0, %v1279
    %v1281 = vpop.f32.mrb[0].mxu0
    %1282 = vmatprep.mubr.f32.mxu0 0.0
    %1283 = vmatmul.mubr.f32.gmra.mrb[0].mxu0 %v65
    %v1284 = vpop.f32.mrb[0].mxu0
    %v1285 = vadd.f32 0.0, %v1284
    %v1286 = vpop.f32.mrb[0].mxu0
    %1287 = vmatprep.mubr.f32.mxu0 0.0
    %1288 = vmatmul.mubr.f32.gmra.mrb[0].mxu0 %v68
    %v1289 = vpop.f32.mrb[0].mxu0
    %v1290 = vadd.f32 0.0, %v1289
    %v1291 = vpop.f32.mrb[0].mxu0
    %1292 = vmatprep.mubr.f32.mxu0 0.0
    %1293 = vmatmul.mubr.f32.gmra.mrb[0].mxu0 %v71
    %v1294 = vpop.f32.mrb[0].mxu0
    %v1295 = vadd.f32 0.0, %v1294
    %v1296 = vpop.f32.mrb[0].mxu0
    %1297 = vmatprep.mubr.f32.mxu0 0.0
    %1298 = vmatmul.mubr.f32.gmra.mrb[0].mxu0 %v74
    %v1299 = vpop.f32.mrb[0].mxu0
    %v1300 = vadd.f32 0.0, %v1299
    %v1301 = vpop.f32.mrb[0].mxu0
    %1302 = vdwg.mxu0
    %s1303 = scalar_lea.vmem %s2, 128
    %v1304 = vld [vmem:[%s1303] sm:$0xff]
    %v1305 = vld [vmem:[%s1303 + $0x8] sm:$0xff]
    %v1306 = vld [vmem:[%s1303 + $0x10] sm:$0xff]
    %v1307 = vld [vmem:[%s1303 + $0x18] sm:$0xf]
    %v1309 = vsel %vm76, %v1307, 0
    %1311 = vmatprep.subr.mxu0 0.0
    %1312 = vmatpush1.msra.mxu0 %v1304
    %1313 = vmatprep.subr.mxu0 0.0
    %1314 = vmatpush1.msra.mxu0 %v1305
    %1315 = vmatprep.subr.mxu0 0.0
    %1316 = vmatpush1.msra.mxu0 %v1306
    %1317 = vmatprep.subr.mxu0 0.0
    %1318 = vmatpush1.msra.mxu0 %v1309
    %1319 = vmatprep.subr.mxu0 0.0
    %1320 = vmatpush1.msra.mxu0 0.0
    %1321 = vmatprep.subr.mxu0 0.0
    %1322 = vmatpush1.msra.mxu0 0.0
    %1323 = vmatprep.subr.mxu0 0.0
    %1324 = vmatpush1.msra.mxu0 0.0
    %1325 = vmatprep.subr.mxu0 0.0
    %1326 = vmatpush1.msra.mxu0 0.0
    %1327 = vmatprep.subr.mxu0 0.0
    %1328 = vmatpush1.msra.mxu0 0.0
    %1329 = vmatprep.subr.mxu0 0.0
    %1330 = vmatpush1.msra.mxu0 0.0
    %1331 = vmatprep.subr.mxu0 0.0
    %1332 = vmatpush1.msra.mxu0 0.0
    %1333 = vmatprep.subr.mxu0 0.0
    %1334 = vmatpush1.msra.mxu0 0.0
    %1335 = vmatprep.subr.mxu0 0.0
    %1336 = vmatpush1.msra.mxu0 0.0
    %1337 = vmatprep.subr.mxu0 0.0
    %1338 = vmatpush1.msra.mxu0 0.0
    %1339 = vmatprep.subr.mxu0 0.0
    %1340 = vmatpush1.msra.mxu0 0.0
    %1341 = vmatprep.subr.mxu0 0.0
    %1342 = vmatpush1.msra.mxu0 0.0
    %1343 = vmatprep.subr.mxu0 0.0
    %1344 = vmatpush1.msra.mxu0 0.0
    %1345 = vmatprep.subr.mxu0 0.0
    %1346 = vmatpush1.msra.mxu0 0.0
    %1347 = vmatprep.subr.mxu0 0.0
    %1348 = vmatpush1.msra.mxu0 0.0
    %1349 = vmatprep.subr.mxu0 0.0
    %1350 = vmatpush1.msra.mxu0 0.0
    %1351 = vmatprep.subr.mxu0 0.0
    %1352 = vmatpush1.msra.mxu0 0.0
    %1353 = vmatprep.subr.mxu0 0.0
    %1354 = vmatpush1.msra.mxu0 0.0
    %1355 = vmatprep.subr.mxu0 0.0
    %1356 = vmatpush1.msra.mxu0 0.0
    %1357 = vmatprep.subr.mxu0 0.0
    %1358 = vmatpush1.msra.mxu0 0.0
    %1359 = vmatprep.subr.mxu0 0.0
    %1360 = vmatpush1.msra.mxu0 0.0
    %1361 = vmatprep.subr.mxu0 0.0
    %1362 = vmatpush1.msra.mxu0 0.0
    %1363 = vmatprep.subr.mxu0 0.0
    %1364 = vmatpush1.msra.mxu0 0.0
    %1365 = vmatprep.subr.mxu0 0.0
    %1366 = vmatpush1.msra.mxu0 0.0
    %1367 = vmatprep.subr.mxu0 0.0
    %1368 = vmatpush1.msra.mxu0 0.0
    %1369 = vmatprep.subr.mxu0 0.0
    %1370 = vmatpush1.msra.mxu0 0.0
    %1371 = vmatprep.subr.mxu0 0.0
    %1372 = vmatpush1.msra.mxu0 0.0
    %1373 = vmatprep.subr.mxu0 0.0
    %1374 = vmatpush1.msra.mxu0 0.0
    %1375 = vmatprep.mubr.f32.mxu0 0.0
    %1376 = vmatmul.mubr.f32.gmra.mrb[0].mxu0 %v53
    %v1377 = vpop.f32.mrb[0].mxu0
    %v1378 = vadd.f32 0.0, %v1377
    %v1379 = vpop.f32.mrb[0].mxu0
    %1380 = vmatprep.mubr.f32.mxu0 0.0
    %1381 = vmatmul.mubr.f32.gmra.mrb[0].mxu0 %v56
    %v1382 = vpop.f32.mrb[0].mxu0
    %v1383 = vadd.f32 0.0, %v1382
    %v1384 = vpop.f32.mrb[0].mxu0
    %1385 = vmatprep.mubr.f32.mxu0 0.0
    %1386 = vmatmul.mubr.f32.gmra.mrb[0].mxu0 %v59
    %v1387 = vpop.f32.mrb[0].mxu0
    %v1388 = vadd.f32 0.0, %v1387
    %v1389 = vpop.f32.mrb[0].mxu0
    %1390 = vmatprep.mubr.f32.mxu0 0.0
    %1391 = vmatmul.mubr.f32.gmra.mrb[0].mxu0 %v62
    %v1392 = vpop.f32.mrb[0].mxu0
    %v1393 = vadd.f32 0.0, %v1392
    %v1394 = vpop.f32.mrb[0].mxu0
    %1395 = vmatprep.mubr.f32.mxu0 0.0
    %1396 = vmatmul.mubr.f32.gmra.mrb[0].mxu0 %v65
    %v1397 = vpop.f32.mrb[0].mxu0
    %v1398 = vadd.f32 0.0, %v1397
    %v1399 = vpop.f32.mrb[0].mxu0
    %1400 = vmatprep.mubr.f32.mxu0 0.0
    %1401 = vmatmul.mubr.f32.gmra.mrb[0].mxu0 %v68
    %v1402 = vpop.f32.mrb[0].mxu0
    %v1403 = vadd.f32 0.0, %v1402
    %v1404 = vpop.f32.mrb[0].mxu0
    %1405 = vmatprep.mubr.f32.mxu0 0.0
    %1406 = vmatmul.mubr.f32.gmra.mrb[0].mxu0 %v71
    %v1407 = vpop.f32.mrb[0].mxu0
    %v1408 = vadd.f32 0.0, %v1407
    %v1409 = vpop.f32.mrb[0].mxu0
    %1410 = vmatprep.mubr.f32.mxu0 0.0
    %1411 = vmatmul.mubr.f32.gmra.mrb[0].mxu0 %v74
    %v1412 = vpop.f32.mrb[0].mxu0
    %v1413 = vadd.f32 0.0, %v1412
    %v1414 = vpop.f32.mrb[0].mxu0
    %1415 = vdwg.mxu0
    %v1424 = vrot.slane %v1265, 4
    %v1425 = vrot.slane %v1270, 4
    %v1426 = vsel %vm76, %v1424, %v1425
    %v1427 = vrot.slane %v1275, 4
    %v1428 = vsel %vm76, %v1425, %v1427
    %v1429 = vrot.slane %v1280, 4
    %v1430 = vsel %vm76, %v1427, %v1429
    %v1431 = vrot.slane %v1285, 4
    %v1432 = vrot.slane %v1290, 4
    %v1433 = vsel %vm76, %v1431, %v1432
    %v1434 = vrot.slane %v1295, 4
    %v1435 = vsel %vm76, %v1432, %v1434
    %v1436 = vrot.slane %v1300, 4
    %v1437 = vsel %vm76, %v1434, %v1436
    %v1444 = vadd.f32 %v1150, %v1426
    %v1445 = vadd.f32 %v1151, %v1428
    %v1446 = vadd.f32 %v1152, %v1430
    %v1447 = vadd.f32 %v1153, %v1433
    %v1448 = vadd.f32 %v1154, %v1435
    %v1449 = vadd.f32 %v1155, %v1437
    %v1458 = vrot.slane %v1378, 4
    %v1459 = vrot.slane %v1383, 4
    %v1460 = vsel %vm76, %v1458, %v1459
    %v1461 = vrot.slane %v1388, 4
    %v1462 = vsel %vm76, %v1459, %v1461
    %v1463 = vrot.slane %v1393, 4
    %v1464 = vsel %vm76, %v1461, %v1463
    %v1465 = vrot.slane %v1398, 4
    %v1466 = vrot.slane %v1403, 4
    %v1467 = vsel %vm76, %v1465, %v1466
    %v1468 = vrot.slane %v1408, 4
    %v1469 = vsel %vm76, %v1466, %v1468
    %v1470 = vrot.slane %v1413, 4
    %v1471 = vsel %vm76, %v1468, %v1470
    %v1478 = vadd.f32 %v1184, %v1460
    %v1479 = vadd.f32 %v1185, %v1462
    %v1480 = vadd.f32 %v1186, %v1464
    %v1481 = vadd.f32 %v1187, %v1467
    %v1482 = vadd.f32 %v1188, %v1469
    %v1483 = vadd.f32 %v1189, %v1471
    %v1484 = vmax.f32 %v1444, %v1478
    %v1485 = vmax.f32 %v1445, %v1479
    %v1486 = vmax.f32 %v1446, %v1480
    %v1487 = vmax.f32 %v1447, %v1481
    %v1488 = vmax.f32 %v1448, %v1482
    %v1489 = vmax.f32 %v1449, %v1483
    %v1490 = vld [vmem:[%s3] sm:$0x1]
    %v1492 = vlaneseq
    %v1493 = vshrl.u32 %v1492, 7
    %v1494 = vsub.s32 0, %v1493
    %v1495 = vrot.slane %v1490, %v1494
    %v1497 = vadd.f32 %v1484, %v1495
    %v1498 = vadd.f32 %v1485, %v1495
    %v1499 = vadd.f32 %v1486, %v1495
    %v1500 = vadd.f32 %v1487, %v1495
    %v1501 = vadd.f32 %v1488, %v1495
    %v1502 = vadd.f32 %v1489, %v1495
    %v1509 = vcombine.high %v1497, %v1497
    %v1511 = vunpack.c.l.s4 1983009808
    %v1512 = vunpack.c.0.s8 %v1511
    %v1513 = vlaneseq
    %v1514 = vshrl.u32 %v1513, 7
    %v1515 = vsub.s32 %v1512, %v1514
    %v1516 = vrot.slane %v1497, %v1515
    %v1518 = vunpack.c.l.s4 1983009808
    %v1519 = vunpack.c.0.s8 %v1518
    %v1520 = vlaneseq
    %v1521 = vshrl.u32 %v1520, 7
    %v1522 = vsub.s32 %v1519, %v1521
    %v1523 = vrot.slane %v1509, %v1522
    %v1524 = vcombine.high %v1516, %v1516
    %v1525 = vcombine.high %v1523, %v1523
    %v1526 = vcombine.high %v1498, %v1498
    %v1528 = vunpack.c.l.s4 1983009808
    %v1529 = vunpack.c.0.s8 %v1528
    %v1530 = vlaneseq
    %v1531 = vshrl.u32 %v1530, 7
    %v1532 = vsub.s32 %v1529, %v1531
    %v1533 = vrot.slane %v1498, %v1532
    %v1535 = vunpack.c.l.s4 1983009808
    %v1536 = vunpack.c.0.s8 %v1535
    %v1537 = vlaneseq
    %v1538 = vshrl.u32 %v1537, 7
    %v1539 = vsub.s32 %v1536, %v1538
    %v1540 = vrot.slane %v1526, %v1539
    %v1541 = vcombine.high %v1533, %v1533
    %v1542 = vcombine.high %v1540, %v1540
    %v1543 = vcombine.high %v1499, %v1499
    %v1545 = vunpack.c.l.s4 1983009808
    %v1546 = vunpack.c.0.s8 %v1545
    %v1547 = vlaneseq
    %v1548 = vshrl.u32 %v1547, 7
    %v1549 = vsub.s32 %v1546, %v1548
    %v1550 = vrot.slane %v1499, %v1549
    %v1552 = vunpack.c.l.s4 1983009808
    %v1553 = vunpack.c.0.s8 %v1552
    %v1554 = vlaneseq
    %v1555 = vshrl.u32 %v1554, 7
    %v1556 = vsub.s32 %v1553, %v1555
    %v1557 = vrot.slane %v1543, %v1556
    %v1558 = vcombine.high %v1550, %v1550
    %v1559 = vcombine.high %v1557, %v1557
    %v1560 = vcombine.high %v1500, %v1500
    %v1562 = vunpack.c.l.s4 1983009808
    %v1563 = vunpack.c.0.s8 %v1562
    %v1564 = vlaneseq
    %v1565 = vshrl.u32 %v1564, 7
    %v1566 = vsub.s32 %v1563, %v1565
    %v1567 = vrot.slane %v1500, %v1566
    %v1569 = vunpack.c.l.s4 1983009808
    %v1570 = vunpack.c.0.s8 %v1569
    %v1571 = vlaneseq
    %v1572 = vshrl.u32 %v1571, 7
    %v1573 = vsub.s32 %v1570, %v1572
    %v1574 = vrot.slane %v1560, %v1573
    %v1575 = vcombine.high %v1567, %v1567
    %v1576 = vcombine.high %v1574, %v1574
    %v1577 = vcombine.high %v1501, %v1501
    %v1579 = vunpack.c.l.s4 1983009808
    %v1580 = vunpack.c.0.s8 %v1579
    %v1581 = vlaneseq
    %v1582 = vshrl.u32 %v1581, 7
    %v1583 = vsub.s32 %v1580, %v1582
    %v1584 = vrot.slane %v1501, %v1583
    %v1586 = vunpack.c.l.s4 1983009808
    %v1587 = vunpack.c.0.s8 %v1586
    %v1588 = vlaneseq
    %v1589 = vshrl.u32 %v1588, 7
    %v1590 = vsub.s32 %v1587, %v1589
    %v1591 = vrot.slane %v1577, %v1590
    %v1592 = vcombine.high %v1584, %v1584
    %v1593 = vcombine.high %v1591, %v1591
    %v1594 = vcombine.high %v1502, %v1502
    %v1596 = vunpack.c.l.s4 1983009808
    %v1597 = vunpack.c.0.s8 %v1596
    %v1598 = vlaneseq
    %v1599 = vshrl.u32 %v1598, 7
    %v1600 = vsub.s32 %v1597, %v1599
    %v1601 = vrot.slane %v1502, %v1600
    %v1603 = vunpack.c.l.s4 1983009808
    %v1604 = vunpack.c.0.s8 %v1603
    %v1605 = vlaneseq
    %v1606 = vshrl.u32 %v1605, 7
    %v1607 = vsub.s32 %v1604, %v1606
    %v1608 = vrot.slane %v1594, %v1607
    %v1609 = vcombine.high %v1601, %v1601
    %v1610 = vcombine.high %v1608, %v1608
    %v1635 = vrot.slane %v1516, 7
    %v1636 = vrot.slane %v1635, 2
    %v1637 = vrot.slane %v1524, 7
    %v1638 = vrot.slane %v1637, 2
    %v1639 = vrot.slane %v1523, 7
    %v1640 = vrot.slane %v1639, 2
    %v1641 = vrot.slane %v1525, 7
    %v1642 = vrot.slane %v1641, 2
    %v1643 = vrot.slane %v1533, 7
    %v1644 = vrot.slane %v1643, 2
    %v1645 = vrot.slane %v1541, 7
    %v1646 = vrot.slane %v1645, 2
    %v1647 = vrot.slane %v1540, 7
    %v1648 = vrot.slane %v1647, 2
    %v1649 = vrot.slane %v1542, 7
    %v1650 = vrot.slane %v1649, 2
    %v1651 = vrot.slane %v1550, 7
    %v1652 = vrot.slane %v1651, 2
    %v1653 = vrot.slane %v1558, 7
    %v1654 = vrot.slane %v1653, 2
    %v1655 = vrot.slane %v1557, 7
    %v1656 = vrot.slane %v1655, 2
    %v1657 = vrot.slane %v1559, 7
    %v1658 = vrot.slane %v1657, 2
    %v1659 = vrot.slane %v1567, 7
    %v1660 = vrot.slane %v1659, 2
    %v1661 = vrot.slane %v1575, 7
    %v1662 = vrot.slane %v1661, 2
    %v1663 = vrot.slane %v1574, 7
    %v1664 = vrot.slane %v1663, 2
    %v1665 = vrot.slane %v1576, 7
    %v1666 = vrot.slane %v1665, 2
    %v1667 = vrot.slane %v1584, 7
    %v1668 = vrot.slane %v1667, 2
    %v1669 = vrot.slane %v1592, 7
    %v1670 = vrot.slane %v1669, 2
    %v1671 = vrot.slane %v1591, 7
    %v1672 = vrot.slane %v1671, 2
    %v1673 = vrot.slane %v1593, 7
    %v1674 = vrot.slane %v1673, 2
    %v1675 = vrot.slane %v1601, 7
    %v1676 = vrot.slane %v1675, 2
    %v1677 = vrot.slane %v1609, 7
    %v1678 = vrot.slane %v1677, 2
    %v1679 = vrot.slane %v1608, 7
    %v1680 = vrot.slane %v1679, 2
    %v1681 = vrot.slane %v1610, 7
    %v1682 = vrot.slane %v1681, 2
    %v1707 = vmax.f32 %v1516, %v1636
    %v1708 = vmax.f32 %v1524, %v1638
    %v1709 = vmax.f32 %v1523, %v1640
    %v1710 = vmax.f32 %v1525, %v1642
    %v1711 = vmax.f32 %v1533, %v1644
    %v1712 = vmax.f32 %v1541, %v1646
    %v1713 = vmax.f32 %v1540, %v1648
    %v1714 = vmax.f32 %v1542, %v1650
    %v1715 = vmax.f32 %v1550, %v1652
    %v1716 = vmax.f32 %v1558, %v1654
    %v1717 = vmax.f32 %v1557, %v1656
    %v1718 = vmax.f32 %v1559, %v1658
    %v1719 = vmax.f32 %v1567, %v1660
    %v1720 = vmax.f32 %v1575, %v1662
    %v1721 = vmax.f32 %v1574, %v1664
    %v1722 = vmax.f32 %v1576, %v1666
    %v1723 = vmax.f32 %v1584, %v1668
    %v1724 = vmax.f32 %v1592, %v1670
    %v1725 = vmax.f32 %v1591, %v1672
    %v1726 = vmax.f32 %v1593, %v1674
    %v1727 = vmax.f32 %v1601, %v1676
    %v1728 = vmax.f32 %v1609, %v1678
    %v1729 = vmax.f32 %v1608, %v1680
    %v1730 = vmax.f32 %v1610, %v1682
    %v1731 = vmax.f32 %v1707, 0.0
    %v1732 = vmax.f32 %v1708, 0.0
    %v1733 = vmax.f32 %v1709, 0.0
    %v1734 = vmax.f32 %v1710, 0.0
    %v1735 = vmax.f32 %v1711, 0.0
    %v1736 = vmax.f32 %v1712, 0.0
    %v1737 = vmax.f32 %v1713, 0.0
    %v1738 = vmax.f32 %v1714, 0.0
    %v1739 = vmax.f32 %v1715, 0.0
    %v1740 = vmax.f32 %v1716, 0.0
    %v1741 = vmax.f32 %v1717, 0.0
    %v1742 = vmax.f32 %v1718, 0.0
    %v1743 = vmax.f32 %v1719, 0.0
    %v1744 = vmax.f32 %v1720, 0.0
    %v1745 = vmax.f32 %v1721, 0.0
    %v1746 = vmax.f32 %v1722, 0.0
    %v1747 = vmax.f32 %v1723, 0.0
    %v1748 = vmax.f32 %v1724, 0.0
    %v1749 = vmax.f32 %v1725, 0.0
    %v1750 = vmax.f32 %v1726, 0.0
    %v1751 = vmax.f32 %v1727, 0.0
    %v1752 = vmax.f32 %v1728, 0.0
    %v1753 = vmax.f32 %v1729, 0.0
    %v1754 = vmax.f32 %v1730, 0.0
    %v1755 = vld [vmem:[%s4] sm:$0xff]
    %v1756 = vld [vmem:[%s4 + $0x8] sm:$0xff]
    %v1757 = vld [vmem:[%s4 + $0x10] sm:$0xff]
    %v1758 = vld [vmem:[%s4 + $0x18] sm:$0xff]
    %v1759 = vld [vmem:[%s4 + $0x20] sm:$0xff]
    %v1760 = vld [vmem:[%s4 + $0x28] sm:$0xff]
    %v1761 = vld [vmem:[%s4 + $0x30] sm:$0xff]
    %v1762 = vld [vmem:[%s4 + $0x38] sm:$0xff]
    %v1763 = vld [vmem:[%s4 + $0x40] sm:$0xff]
    %v1764 = vld [vmem:[%s4 + $0x48] sm:$0xff]
    %v1765 = vld [vmem:[%s4 + $0x50] sm:$0xff]
    %v1766 = vld [vmem:[%s4 + $0x58] sm:$0xff]
    %v1767 = vld [vmem:[%s4 + $0x60] sm:$0xff]
    %v1768 = vld [vmem:[%s4 + $0x68] sm:$0xff]
    %v1769 = vld [vmem:[%s4 + $0x70] sm:$0xff]
    %v1770 = vld [vmem:[%s5] sm:$0xff]
    %v1771 = vld [vmem:[%s5 + $0x8] sm:$0xff]
    %v1772 = vld [vmem:[%s5 + $0x10] sm:$0xff]
    %v1773 = vld [vmem:[%s5 + $0x18] sm:$0xff]
    %v1774 = vld [vmem:[%s5 + $0x20] sm:$0xff]
    %v1775 = vld [vmem:[%s5 + $0x28] sm:$0xff]
    %v1776 = vld [vmem:[%s5 + $0x30] sm:$0xff]
    %v1777 = vld [vmem:[%s5 + $0x38] sm:$0xff]
    %v1778 = vld [vmem:[%s5 + $0x40] sm:$0xff]
    %v1779 = vld [vmem:[%s5 + $0x48] sm:$0xff]
    %v1780 = vld [vmem:[%s5 + $0x50] sm:$0xff]
    %v1781 = vld [vmem:[%s5 + $0x58] sm:$0xff]
    %v1782 = vld [vmem:[%s5 + $0x60] sm:$0xff]
    %v1783 = vld [vmem:[%s5 + $0x68] sm:$0xff]
    %v1784 = vld [vmem:[%s5 + $0x70] sm:$0xff]
    %s1785 = scalar_lea.vmem %s4, 120
    %v1786 = vld [vmem:[%s1785] sm:$0xff]
    %v1787 = vld [vmem:[%s1785 + $0x8] sm:$0xff]
    %v1788 = vld [vmem:[%s1785 + $0x10] sm:$0xff]
    %v1789 = vld [vmem:[%s1785 + $0x18] sm:$0xff]
    %v1790 = vld [vmem:[%s1785 + $0x20] sm:$0xff]
    %v1791 = vld [vmem:[%s1785 + $0x28] sm:$0xff]
    %v1792 = vld [vmem:[%s1785 + $0x30] sm:$0xff]
    %v1793 = vld [vmem:[%s1785 + $0x38] sm:$0xff]
    %v1794 = vld [vmem:[%s1785 + $0x40] sm:$0xff]
    %v1795 = vld [vmem:[%s1785 + $0x48] sm:$0xff]
    %v1796 = vld [vmem:[%s1785 + $0x50] sm:$0xff]
    %v1797 = vld [vmem:[%s1785 + $0x58] sm:$0xff]
    %v1798 = vld [vmem:[%s1785 + $0x60] sm:$0xff]
    %v1799 = vld [vmem:[%s1785 + $0x68] sm:$0xff]
    %v1800 = vld [vmem:[%s1785 + $0x70] sm:$0xff]
    %v1817 = vlaneseq
    %v1818 = vshrl.u32 %v1817, 7
    %v1819 = vsub.s32 0, %v1818
    %v1820 = vrot.slane %v1732, %v1819
    %v1821 = vlaneseq
    %v1822 = vshrl.u32 %v1821, 7
    %v1823 = vsub.s32 0, %v1822
    %v1824 = vrot.slane %v1733, %v1823
    %v1825 = vlaneseq
    %v1826 = vshrl.u32 %v1825, 7
    %v1827 = vsub.s32 0, %v1826
    %v1828 = vrot.slane %v1734, %v1827
    %v1829 = vlaneseq
    %v1830 = vshrl.u32 %v1829, 7
    %v1831 = vsub.s32 0, %v1830
    %v1832 = vrot.slane %v1735, %v1831
    %v1833 = vlaneseq
    %v1834 = vshrl.u32 %v1833, 7
    %v1835 = vsub.s32 0, %v1834
    %v1836 = vrot.slane %v1736, %v1835
    %v1837 = vlaneseq
    %v1838 = vshrl.u32 %v1837, 7
    %v1839 = vsub.s32 0, %v1838
    %v1840 = vrot.slane %v1737, %v1839
    %v1841 = vlaneseq
    %v1842 = vshrl.u32 %v1841, 7
    %v1843 = vsub.s32 0, %v1842
    %v1844 = vrot.slane %v1738, %v1843
    %v1845 = vlaneseq
    %v1846 = vshrl.u32 %v1845, 7
    %v1847 = vsub.s32 0, %v1846
    %v1848 = vrot.slane %v1739, %v1847
    %v1849 = vlaneseq
    %v1850 = vshrl.u32 %v1849, 7
    %v1851 = vsub.s32 0, %v1850
    %v1852 = vrot.slane %v1744, %v1851
    %v1853 = vlaneseq
    %v1854 = vshrl.u32 %v1853, 7
    %v1855 = vsub.s32 0, %v1854
    %v1856 = vrot.slane %v1745, %v1855
    %v1857 = vlaneseq
    %v1858 = vshrl.u32 %v1857, 7
    %v1859 = vsub.s32 0, %v1858
    %v1860 = vrot.slane %v1746, %v1859
    %v1861 = vlaneseq
    %v1862 = vshrl.u32 %v1861, 7
    %v1863 = vsub.s32 0, %v1862
    %v1864 = vrot.slane %v1747, %v1863
    %v1865 = vlaneseq
    %v1866 = vshrl.u32 %v1865, 7
    %v1867 = vsub.s32 0, %v1866
    %v1868 = vrot.slane %v1748, %v1867
    %v1869 = vlaneseq
    %v1870 = vshrl.u32 %v1869, 7
    %v1871 = vsub.s32 0, %v1870
    %v1872 = vrot.slane %v1749, %v1871
    %v1873 = vlaneseq
    %v1874 = vshrl.u32 %v1873, 7
    %v1875 = vsub.s32 0, %v1874
    %v1876 = vrot.slane %v1750, %v1875
    %v1877 = vlaneseq
    %v1878 = vshrl.u32 %v1877, 7
    %v1879 = vsub.s32 0, %v1878
    %v1880 = vrot.slane %v1751, %v1879
    %vm1881 = vcmask 1041409
    %v1882 = vsel %vm1881, %v1824, %v1820
    %vm1883 = vcmask 1042434
    %v1884 = vsel %vm1883, %v1828, %v1882
    %vm1885 = vcmask 1043459
    %v1886 = vsel %vm1885, %v1832, %v1884
    %vm1887 = vcmask 1044484
    %v1888 = vsel %vm1887, %v1836, %v1886
    %vm1889 = vcmask 1045509
    %v1890 = vsel %vm1889, %v1840, %v1888
    %vm1891 = vcmask 1046534
    %v1892 = vsel %vm1891, %v1844, %v1890
    %vm1893 = vcmask 1047559
    %v1894 = vsel %vm1893, %v1848, %v1892
    %v1895 = vsel %vm1881, %v1856, %v1852
    %v1896 = vsel %vm1883, %v1860, %v1895
    %v1897 = vsel %vm1885, %v1864, %v1896
    %v1898 = vsel %vm1887, %v1868, %v1897
    %v1899 = vsel %vm1889, %v1872, %v1898
    %v1900 = vsel %vm1891, %v1876, %v1899
    %v1901 = vsel %vm1893, %v1880, %v1900
    %vm1902 = vcmask 982016
    %v1903 = vsel %vm1902, %v1894, 0
    %v1905 = vsel %vm1902, %v1901, 0
    %1907 = vmatprep.subr.mxu0 0.0
    %1908 = vmatpush1.msra.mxu0 %v1786
    %1909 = vmatprep.subr.mxu0 0.0
    %1910 = vmatpush1.msra.mxu0 %v1787
    %1911 = vmatprep.subr.mxu0 0.0
    %1912 = vmatpush1.msra.mxu0 %v1788
    %1913 = vmatprep.subr.mxu0 0.0
    %1914 = vmatpush1.msra.mxu0 %v1789
    %1915 = vmatprep.subr.mxu0 0.0
    %1916 = vmatpush1.msra.mxu0 %v1790
    %1917 = vmatprep.subr.mxu0 0.0
    %1918 = vmatpush1.msra.mxu0 %v1791
    %1919 = vmatprep.subr.mxu0 0.0
    %1920 = vmatpush1.msra.mxu0 %v1792
    %1921 = vmatprep.subr.mxu0 0.0
    %1922 = vmatpush1.msra.mxu0 %v1793
    %1923 = vmatprep.subr.mxu0 0.0
    %1924 = vmatpush1.msra.mxu0 %v1794
    %1925 = vmatprep.subr.mxu0 0.0
    %1926 = vmatpush1.msra.mxu0 %v1795
    %1927 = vmatprep.subr.mxu0 0.0
    %1928 = vmatpush1.msra.mxu0 %v1796
    %1929 = vmatprep.subr.mxu0 0.0
    %1930 = vmatpush1.msra.mxu0 %v1797
    %1931 = vmatprep.subr.mxu0 0.0
    %1932 = vmatpush1.msra.mxu0 %v1798
    %1933 = vmatprep.subr.mxu0 0.0
    %1934 = vmatpush1.msra.mxu0 %v1799
    %1935 = vmatprep.subr.mxu0 0.0
    %1936 = vmatpush1.msra.mxu0 %v1800
    %1937 = vmatprep.subr.mxu0 0.0
    %1938 = vmatpush1.msra.mxu0 0.0
    %1939 = vmatprep.subr.mxu0 0.0
    %1940 = vmatpush1.msra.mxu0 0.0
    %1941 = vmatprep.subr.mxu0 0.0
    %1942 = vmatpush1.msra.mxu0 0.0
    %1943 = vmatprep.subr.mxu0 0.0
    %1944 = vmatpush1.msra.mxu0 0.0
    %1945 = vmatprep.subr.mxu0 0.0
    %1946 = vmatpush1.msra.mxu0 0.0
    %1947 = vmatprep.subr.mxu0 0.0
    %1948 = vmatpush1.msra.mxu0 0.0
    %1949 = vmatprep.subr.mxu0 0.0
    %1950 = vmatpush1.msra.mxu0 0.0
    %1951 = vmatprep.subr.mxu0 0.0
    %1952 = vmatpush1.msra.mxu0 0.0
    %1953 = vmatprep.subr.mxu0 0.0
    %1954 = vmatpush1.msra.mxu0 0.0
    %1955 = vmatprep.subr.mxu0 0.0
    %1956 = vmatpush1.msra.mxu0 0.0
    %1957 = vmatprep.subr.mxu0 0.0
    %1958 = vmatpush1.msra.mxu0 0.0
    %1959 = vmatprep.subr.mxu0 0.0
    %1960 = vmatpush1.msra.mxu0 0.0
    %1961 = vmatprep.subr.mxu0 0.0
    %1962 = vmatpush1.msra.mxu0 0.0
    %1963 = vmatprep.subr.mxu0 0.0
    %1964 = vmatpush1.msra.mxu0 0.0
    %1965 = vmatprep.subr.mxu0 0.0
    %1966 = vmatpush1.msra.mxu0 0.0
    %1967 = vmatprep.subr.mxu0 0.0
    %1968 = vmatpush1.msra.mxu0 0.0
    %1969 = vmatprep.subr.mxu0 0.0
    %1970 = vmatpush1.msra.mxu0 0.0
    %1971 = vmatprep.mubr.f32.mxu0 0.0
    %1972 = vmatmul.mubr.f32.gmra.mrb[0].mxu0 %v1903
    %v1973 = vpop.f32.mrb[0].mxu0
    %v1974 = vadd.f32 0.0, %v1973
    %v1975 = vpop.f32.mrb[0].mxu0
    %1976 = vmatprep.mubr.f32.mxu0 0.0
    %1977 = vmatmul.mubr.f32.gmra.mrb[0].mxu0 %v1905
    %v1978 = vpop.f32.mrb[0].mxu0
    %v1979 = vadd.f32 0.0, %v1978
    %v1980 = vpop.f32.mrb[0].mxu0
    %1981 = vdwg.mxu0
    %v1984 = vlaneseq
    %v1985 = vshrl.u32 %v1984, 7
    %v1986 = vsub.s32 0, %v1985
    %v1987 = vrot.slane %v1731, %v1986
    %v1988 = vlaneseq
    %v1989 = vshrl.u32 %v1988, 7
    %v1990 = vsub.s32 0, %v1989
    %v1991 = vrot.slane %v1743, %v1990
    %v1992 = vsel %vm1881, %v1820, %v1987
    %v1993 = vsel %vm1883, %v1824, %v1992
    %v1994 = vsel %vm1885, %v1828, %v1993
    %v1995 = vsel %vm1887, %v1832, %v1994
    %v1996 = vsel %vm1889, %v1836, %v1995
    %v1997 = vsel %vm1891, %v1840, %v1996
    %v1998 = vsel %vm1893, %v1844, %v1997
    %v1999 = vsel %vm1881, %v1852, %v1991
    %v2000 = vsel %vm1883, %v1856, %v1999
    %v2001 = vsel %vm1885, %v1860, %v2000
    %v2002 = vsel %vm1887, %v1864, %v2001
    %v2003 = vsel %vm1889, %v1868, %v2002
    %v2004 = vsel %vm1891, %v1872, %v2003
    %v2005 = vsel %vm1893, %v1876, %v2004
    %v2006 = vsel %vm1902, %v1998, 0
    %v2008 = vsel %vm1902, %v2005, 0
    %2010 = vmatprep.subr.mxu0 0.0
    %2011 = vmatpush1.msra.mxu0 %v1755
    %2012 = vmatprep.subr.mxu0 0.0
    %2013 = vmatpush1.msra.mxu0 %v1756
    %2014 = vmatprep.subr.mxu0 0.0
    %2015 = vmatpush1.msra.mxu0 %v1757
    %2016 = vmatprep.subr.mxu0 0.0
    %2017 = vmatpush1.msra.mxu0 %v1758
    %2018 = vmatprep.subr.mxu0 0.0
    %2019 = vmatpush1.msra.mxu0 %v1759
    %2020 = vmatprep.subr.mxu0 0.0
    %2021 = vmatpush1.msra.mxu0 %v1760
    %2022 = vmatprep.subr.mxu0 0.0
    %2023 = vmatpush1.msra.mxu0 %v1761
    %2024 = vmatprep.subr.mxu0 0.0
    %2025 = vmatpush1.msra.mxu0 %v1762
    %2026 = vmatprep.subr.mxu0 0.0
    %2027 = vmatpush1.msra.mxu0 %v1763
    %2028 = vmatprep.subr.mxu0 0.0
    %2029 = vmatpush1.msra.mxu0 %v1764
    %2030 = vmatprep.subr.mxu0 0.0
    %2031 = vmatpush1.msra.mxu0 %v1765
    %2032 = vmatprep.subr.mxu0 0.0
    %2033 = vmatpush1.msra.mxu0 %v1766
    %2034 = vmatprep.subr.mxu0 0.0
    %2035 = vmatpush1.msra.mxu0 %v1767
    %2036 = vmatprep.subr.mxu0 0.0
    %2037 = vmatpush1.msra.mxu0 %v1768
    %2038 = vmatprep.subr.mxu0 0.0
    %2039 = vmatpush1.msra.mxu0 %v1769
    %2040 = vmatprep.subr.mxu0 0.0
    %2041 = vmatpush1.msra.mxu0 0.0
    %2042 = vmatprep.subr.mxu0 0.0
    %2043 = vmatpush1.msra.mxu0 0.0
    %2044 = vmatprep.subr.mxu0 0.0
    %2045 = vmatpush1.msra.mxu0 0.0
    %2046 = vmatprep.subr.mxu0 0.0
    %2047 = vmatpush1.msra.mxu0 0.0
    %2048 = vmatprep.subr.mxu0 0.0
    %2049 = vmatpush1.msra.mxu0 0.0
    %2050 = vmatprep.subr.mxu0 0.0
    %2051 = vmatpush1.msra.mxu0 0.0
    %2052 = vmatprep.subr.mxu0 0.0
    %2053 = vmatpush1.msra.mxu0 0.0
    %2054 = vmatprep.subr.mxu0 0.0
    %2055 = vmatpush1.msra.mxu0 0.0
    %2056 = vmatprep.subr.mxu0 0.0
    %2057 = vmatpush1.msra.mxu0 0.0
    %2058 = vmatprep.subr.mxu0 0.0
    %2059 = vmatpush1.msra.mxu0 0.0
    %2060 = vmatprep.subr.mxu0 0.0
    %2061 = vmatpush1.msra.mxu0 0.0
    %2062 = vmatprep.subr.mxu0 0.0
    %2063 = vmatpush1.msra.mxu0 0.0
    %2064 = vmatprep.subr.mxu0 0.0
    %2065 = vmatpush1.msra.mxu0 0.0
    %2066 = vmatprep.subr.mxu0 0.0
    %2067 = vmatpush1.msra.mxu0 0.0
    %2068 = vmatprep.subr.mxu0 0.0
    %2069 = vmatpush1.msra.mxu0 0.0
    %2070 = vmatprep.subr.mxu0 0.0
    %2071 = vmatpush1.msra.mxu0 0.0
    %2072 = vmatprep.subr.mxu0 0.0
    %2073 = vmatpush1.msra.mxu0 0.0
    %2074 = vmatprep.mubr.f32.mxu0 0.0
    %2075 = vmatmul.mubr.f32.gmra.mrb[0].mxu0 %v2006
    %v2076 = vpop.f32.mrb[0].mxu0
    %v2077 = vadd.f32 %v1974, %v2076
    %v2078 = vpop.f32.mrb[0].mxu0
    %2079 = vmatprep.mubr.f32.mxu0 0.0
    %2080 = vmatmul.mubr.f32.gmra.mrb[0].mxu0 %v2008
    %v2081 = vpop.f32.mrb[0].mxu0
    %v2082 = vadd.f32 %v1979, %v2081
    %v2083 = vpop.f32.mrb[0].mxu0
    %2084 = vdwg.mxu0
    %s2085 = scalar_lea.vmem %s5, 120
    %v2086 = vld [vmem:[%s2085] sm:$0xff]
    %v2087 = vld [vmem:[%s2085 + $0x8] sm:$0xff]
    %v2088 = vld [vmem:[%s2085 + $0x10] sm:$0xff]
    %v2089 = vld [vmem:[%s2085 + $0x18] sm:$0xff]
    %v2090 = vld [vmem:[%s2085 + $0x20] sm:$0xff]
    %v2091 = vld [vmem:[%s2085 + $0x28] sm:$0xff]
    %v2092 = vld [vmem:[%s2085 + $0x30] sm:$0xff]
    %v2093 = vld [vmem:[%s2085 + $0x38] sm:$0xff]
    %v2094 = vld [vmem:[%s2085 + $0x40] sm:$0xff]
    %v2095 = vld [vmem:[%s2085 + $0x48] sm:$0xff]
    %v2096 = vld [vmem:[%s2085 + $0x50] sm:$0xff]
    %v2097 = vld [vmem:[%s2085 + $0x58] sm:$0xff]
    %v2098 = vld [vmem:[%s2085 + $0x60] sm:$0xff]
    %v2099 = vld [vmem:[%s2085 + $0x68] sm:$0xff]
    %v2100 = vld [vmem:[%s2085 + $0x70] sm:$0xff]
    %2101 = vmatprep.subr.mxu0 0.0
    %2102 = vmatpush1.msra.mxu0 %v2086
    %2103 = vmatprep.subr.mxu0 0.0
    %2104 = vmatpush1.msra.mxu0 %v2087
    %2105 = vmatprep.subr.mxu0 0.0
    %2106 = vmatpush1.msra.mxu0 %v2088
    %2107 = vmatprep.subr.mxu0 0.0
    %2108 = vmatpush1.msra.mxu0 %v2089
    %2109 = vmatprep.subr.mxu0 0.0
    %2110 = vmatpush1.msra.mxu0 %v2090
    %2111 = vmatprep.subr.mxu0 0.0
    %2112 = vmatpush1.msra.mxu0 %v2091
    %2113 = vmatprep.subr.mxu0 0.0
    %2114 = vmatpush1.msra.mxu0 %v2092
    %2115 = vmatprep.subr.mxu0 0.0
    %2116 = vmatpush1.msra.mxu0 %v2093
    %2117 = vmatprep.subr.mxu0 0.0
    %2118 = vmatpush1.msra.mxu0 %v2094
    %2119 = vmatprep.subr.mxu0 0.0
    %2120 = vmatpush1.msra.mxu0 %v2095
    %2121 = vmatprep.subr.mxu0 0.0
    %2122 = vmatpush1.msra.mxu0 %v2096
    %2123 = vmatprep.subr.mxu0 0.0
    %2124 = vmatpush1.msra.mxu0 %v2097
    %2125 = vmatprep.subr.mxu0 0.0
    %2126 = vmatpush1.msra.mxu0 %v2098
    %2127 = vmatprep.subr.mxu0 0.0
    %2128 = vmatpush1.msra.mxu0 %v2099
    %2129 = vmatprep.subr.mxu0 0.0
    %2130 = vmatpush1.msra.mxu0 %v2100
    %2131 = vmatprep.subr.mxu0 0.0
    %2132 = vmatpush1.msra.mxu0 0.0
    %2133 = vmatprep.subr.mxu0 0.0
    %2134 = vmatpush1.msra.mxu0 0.0
    %2135 = vmatprep.subr.mxu0 0.0
    %2136 = vmatpush1.msra.mxu0 0.0
    %2137 = vmatprep.subr.mxu0 0.0
    %2138 = vmatpush1.msra.mxu0 0.0
    %2139 = vmatprep.subr.mxu0 0.0
    %2140 = vmatpush1.msra.mxu0 0.0
    %2141 = vmatprep.subr.mxu0 0.0
    %2142 = vmatpush1.msra.mxu0 0.0
    %2143 = vmatprep.subr.mxu0 0.0
    %2144 = vmatpush1.msra.mxu0 0.0
    %2145 = vmatprep.subr.mxu0 0.0
    %2146 = vmatpush1.msra.mxu0 0.0
    %2147 = vmatprep.subr.mxu0 0.0
    %2148 = vmatpush1.msra.mxu0 0.0
    %2149 = vmatprep.subr.mxu0 0.0
    %2150 = vmatpush1.msra.mxu0 0.0
    %2151 = vmatprep.subr.mxu0 0.0
    %2152 = vmatpush1.msra.mxu0 0.0
    %2153 = vmatprep.subr.mxu0 0.0
    %2154 = vmatpush1.msra.mxu0 0.0
    %2155 = vmatprep.subr.mxu0 0.0
    %2156 = vmatpush1.msra.mxu0 0.0
    %2157 = vmatprep.subr.mxu0 0.0
    %2158 = vmatpush1.msra.mxu0 0.0
    %2159 = vmatprep.subr.mxu0 0.0
    %2160 = vmatpush1.msra.mxu0 0.0
    %2161 = vmatprep.subr.mxu0 0.0
    %2162 = vmatpush1.msra.mxu0 0.0
    %2163 = vmatprep.subr.mxu0 0.0
    %2164 = vmatpush1.msra.mxu0 0.0
    %2165 = vmatprep.mubr.f32.mxu0 0.0
    %2166 = vmatmul.mubr.f32.gmra.mrb[0].mxu0 %v1903
    %v2167 = vpop.f32.mrb[0].mxu0
    %v2168 = vadd.f32 0.0, %v2167
    %v2169 = vpop.f32.mrb[0].mxu0
    %2170 = vmatprep.mubr.f32.mxu0 0.0
    %2171 = vmatmul.mubr.f32.gmra.mrb[0].mxu0 %v1905
    %v2172 = vpop.f32.mrb[0].mxu0
    %v2173 = vadd.f32 0.0, %v2172
    %v2174 = vpop.f32.mrb[0].mxu0
    %2175 = vdwg.mxu0
    %2176 = vmatprep.subr.mxu0 0.0
    %2177 = vmatpush1.msra.mxu0 %v1770
    %2178 = vmatprep.subr.mxu0 0.0
    %2179 = vmatpush1.msra.mxu0 %v1771
    %2180 = vmatprep.subr.mxu0 0.0
    %2181 = vmatpush1.msra.mxu0 %v1772
    %2182 = vmatprep.subr.mxu0 0.0
    %2183 = vmatpush1.msra.mxu0 %v1773
    %2184 = vmatprep.subr.mxu0 0.0
    %2185 = vmatpush1.msra.mxu0 %v1774
    %2186 = vmatprep.subr.mxu0 0.0
    %2187 = vmatpush1.msra.mxu0 %v1775
    %2188 = vmatprep.subr.mxu0 0.0
    %2189 = vmatpush1.msra.mxu0 %v1776
    %2190 = vmatprep.subr.mxu0 0.0
    %2191 = vmatpush1.msra.mxu0 %v1777
    %2192 = vmatprep.subr.mxu0 0.0
    %2193 = vmatpush1.msra.mxu0 %v1778
    %2194 = vmatprep.subr.mxu0 0.0
    %2195 = vmatpush1.msra.mxu0 %v1779
    %2196 = vmatprep.subr.mxu0 0.0
    %2197 = vmatpush1.msra.mxu0 %v1780
    %2198 = vmatprep.subr.mxu0 0.0
    %2199 = vmatpush1.msra.mxu0 %v1781
    %2200 = vmatprep.subr.mxu0 0.0
    %2201 = vmatpush1.msra.mxu0 %v1782
    %2202 = vmatprep.subr.mxu0 0.0
    %2203 = vmatpush1.msra.mxu0 %v1783
    %2204 = vmatprep.subr.mxu0 0.0
    %2205 = vmatpush1.msra.mxu0 %v1784
    %2206 = vmatprep.subr.mxu0 0.0
    %2207 = vmatpush1.msra.mxu0 0.0
    %2208 = vmatprep.subr.mxu0 0.0
    %2209 = vmatpush1.msra.mxu0 0.0
    %2210 = vmatprep.subr.mxu0 0.0
    %2211 = vmatpush1.msra.mxu0 0.0
    %2212 = vmatprep.subr.mxu0 0.0
    %2213 = vmatpush1.msra.mxu0 0.0
    %2214 = vmatprep.subr.mxu0 0.0
    %2215 = vmatpush1.msra.mxu0 0.0
    %2216 = vmatprep.subr.mxu0 0.0
    %2217 = vmatpush1.msra.mxu0 0.0
    %2218 = vmatprep.subr.mxu0 0.0
    %2219 = vmatpush1.msra.mxu0 0.0
    %2220 = vmatprep.subr.mxu0 0.0
    %2221 = vmatpush1.msra.mxu0 0.0
    %2222 = vmatprep.subr.mxu0 0.0
    %2223 = vmatpush1.msra.mxu0 0.0
    %2224 = vmatprep.subr.mxu0 0.0
    %2225 = vmatpush1.msra.mxu0 0.0
    %2226 = vmatprep.subr.mxu0 0.0
    %2227 = vmatpush1.msra.mxu0 0.0
    %2228 = vmatprep.subr.mxu0 0.0
    %2229 = vmatpush1.msra.mxu0 0.0
    %2230 = vmatprep.subr.mxu0 0.0
    %2231 = vmatpush1.msra.mxu0 0.0
    %2232 = vmatprep.subr.mxu0 0.0
    %2233 = vmatpush1.msra.mxu0 0.0
    %2234 = vmatprep.subr.mxu0 0.0
    %2235 = vmatpush1.msra.mxu0 0.0
    %2236 = vmatprep.subr.mxu0 0.0
    %2237 = vmatpush1.msra.mxu0 0.0
    %2238 = vmatprep.subr.mxu0 0.0
    %2239 = vmatpush1.msra.mxu0 0.0
    %2240 = vmatprep.mubr.f32.mxu0 0.0
    %2241 = vmatmul.mubr.f32.gmra.mrb[0].mxu0 %v2006
    %v2242 = vpop.f32.mrb[0].mxu0
    %v2243 = vadd.f32 %v2168, %v2242
    %v2244 = vpop.f32.mrb[0].mxu0
    %2245 = vmatprep.mubr.f32.mxu0 0.0
    %2246 = vmatmul.mubr.f32.gmra.mrb[0].mxu0 %v2008
    %v2247 = vpop.f32.mrb[0].mxu0
    %v2248 = vadd.f32 %v2173, %v2247
    %v2249 = vpop.f32.mrb[0].mxu0
    %2250 = vdwg.mxu0
    %s2251 = scalar_lea.vmem %s4, 240
    %v2252 = vld [vmem:[%s2251] sm:$0xff]
    %v2253 = vld [vmem:[%s2251 + $0x8] sm:$0xff]
    %v2254 = vld [vmem:[%s2251 + $0x10] sm:$0xff]
    %v2255 = vld [vmem:[%s2251 + $0x18] sm:$0xff]
    %v2256 = vld [vmem:[%s2251 + $0x20] sm:$0xff]
    %v2257 = vld [vmem:[%s2251 + $0x28] sm:$0xff]
    %v2258 = vld [vmem:[%s2251 + $0x30] sm:$0xff]
    %v2259 = vld [vmem:[%s2251 + $0x38] sm:$0xff]
    %v2260 = vld [vmem:[%s2251 + $0x40] sm:$0xff]
    %v2261 = vld [vmem:[%s2251 + $0x48] sm:$0xff]
    %v2262 = vld [vmem:[%s2251 + $0x50] sm:$0xff]
    %v2263 = vld [vmem:[%s2251 + $0x58] sm:$0xff]
    %v2264 = vld [vmem:[%s2251 + $0x60] sm:$0xff]
    %v2265 = vld [vmem:[%s2251 + $0x68] sm:$0xff]
    %v2266 = vld [vmem:[%s2251 + $0x70] sm:$0xff]
    %v2269 = vlaneseq
    %v2270 = vshrl.u32 %v2269, 7
    %v2271 = vsub.s32 0, %v2270
    %v2272 = vrot.slane %v1740, %v2271
    %v2273 = vlaneseq
    %v2274 = vshrl.u32 %v2273, 7
    %v2275 = vsub.s32 0, %v2274
    %v2276 = vrot.slane %v1752, %v2275
    %v2277 = vsel %vm1881, %v1828, %v1824
    %v2278 = vsel %vm1883, %v1832, %v2277
    %v2279 = vsel %vm1885, %v1836, %v2278
    %v2280 = vsel %vm1887, %v1840, %v2279
    %v2281 = vsel %vm1889, %v1844, %v2280
    %v2282 = vsel %vm1891, %v1848, %v2281
    %v2283 = vsel %vm1893, %v2272, %v2282
    %v2284 = vsel %vm1881, %v1860, %v1856
    %v2285 = vsel %vm1883, %v1864, %v2284
    %v2286 = vsel %vm1885, %v1868, %v2285
    %v2287 = vsel %vm1887, %v1872, %v2286
    %v2288 = vsel %vm1889, %v1876, %v2287
    %v2289 = vsel %vm1891, %v1880, %v2288
    %v2290 = vsel %vm1893, %v2276, %v2289
    %v2291 = vsel %vm1902, %v2283, 0
    %v2293 = vsel %vm1902, %v2290, 0
    %2295 = vmatprep.subr.mxu0 0.0
    %2296 = vmatpush1.msra.mxu0 %v2252
    %2297 = vmatprep.subr.mxu0 0.0
    %2298 = vmatpush1.msra.mxu0 %v2253
    %2299 = vmatprep.subr.mxu0 0.0
    %2300 = vmatpush1.msra.mxu0 %v2254
    %2301 = vmatprep.subr.mxu0 0.0
    %2302 = vmatpush1.msra.mxu0 %v2255
    %2303 = vmatprep.subr.mxu0 0.0
    %2304 = vmatpush1.msra.mxu0 %v2256
    %2305 = vmatprep.subr.mxu0 0.0
    %2306 = vmatpush1.msra.mxu0 %v2257
    %2307 = vmatprep.subr.mxu0 0.0
    %2308 = vmatpush1.msra.mxu0 %v2258
    %2309 = vmatprep.subr.mxu0 0.0
    %2310 = vmatpush1.msra.mxu0 %v2259
    %2311 = vmatprep.subr.mxu0 0.0
    %2312 = vmatpush1.msra.mxu0 %v2260
    %2313 = vmatprep.subr.mxu0 0.0
    %2314 = vmatpush1.msra.mxu0 %v2261
    %2315 = vmatprep.subr.mxu0 0.0
    %2316 = vmatpush1.msra.mxu0 %v2262
    %2317 = vmatprep.subr.mxu0 0.0
    %2318 = vmatpush1.msra.mxu0 %v2263
    %2319 = vmatprep.subr.mxu0 0.0
    %2320 = vmatpush1.msra.mxu0 %v2264
    %2321 = vmatprep.subr.mxu0 0.0
    %2322 = vmatpush1.msra.mxu0 %v2265
    %2323 = vmatprep.subr.mxu0 0.0
    %2324 = vmatpush1.msra.mxu0 %v2266
    %2325 = vmatprep.subr.mxu0 0.0
    %2326 = vmatpush1.msra.mxu0 0.0
    %2327 = vmatprep.subr.mxu0 0.0
    %2328 = vmatpush1.msra.mxu0 0.0
    %2329 = vmatprep.subr.mxu0 0.0
    %2330 = vmatpush1.msra.mxu0 0.0
    %2331 = vmatprep.subr.mxu0 0.0
    %2332 = vmatpush1.msra.mxu0 0.0
    %2333 = vmatprep.subr.mxu0 0.0
    %2334 = vmatpush1.msra.mxu0 0.0
    %2335 = vmatprep.subr.mxu0 0.0
    %2336 = vmatpush1.msra.mxu0 0.0
    %2337 = vmatprep.subr.mxu0 0.0
    %2338 = vmatpush1.msra.mxu0 0.0
    %2339 = vmatprep.subr.mxu0 0.0
    %2340 = vmatpush1.msra.mxu0 0.0
    %2341 = vmatprep.subr.mxu0 0.0
    %2342 = vmatpush1.msra.mxu0 0.0
    %2343 = vmatprep.subr.mxu0 0.0
    %2344 = vmatpush1.msra.mxu0 0.0
    %2345 = vmatprep.subr.mxu0 0.0
    %2346 = vmatpush1.msra.mxu0 0.0
    %2347 = vmatprep.subr.mxu0 0.0
    %2348 = vmatpush1.msra.mxu0 0.0
    %2349 = vmatprep.subr.mxu0 0.0
    %2350 = vmatpush1.msra.mxu0 0.0
    %2351 = vmatprep.subr.mxu0 0.0
    %2352 = vmatpush1.msra.mxu0 0.0
    %2353 = vmatprep.subr.mxu0 0.0
    %2354 = vmatpush1.msra.mxu0 0.0
    %2355 = vmatprep.subr.mxu0 0.0
    %2356 = vmatpush1.msra.mxu0 0.0
    %2357 = vmatprep.subr.mxu0 0.0
    %2358 = vmatpush1.msra.mxu0 0.0
    %2359 = vmatprep.mubr.f32.mxu0 0.0
    %2360 = vmatmul.mubr.f32.gmra.mrb[0].mxu0 %v2291
    %v2361 = vpop.f32.mrb[0].mxu0
    %v2362 = vadd.f32 0.0, %v2361
    %v2363 = vpop.f32.mrb[0].mxu0
    %2364 = vmatprep.mubr.f32.mxu0 0.0
    %2365 = vmatmul.mubr.f32.gmra.mrb[0].mxu0 %v2293
    %v2366 = vpop.f32.mrb[0].mxu0
    %v2367 = vadd.f32 0.0, %v2366
    %v2368 = vpop.f32.mrb[0].mxu0
    %2369 = vdwg.mxu0
    %v2370 = vadd.f32 %v2077, %v2362
    %v2371 = vadd.f32 %v2082, %v2367
    %s2372 = scalar_lea.vmem %s5, 240
    %v2373 = vld [vmem:[%s2372] sm:$0xff]
    %v2374 = vld [vmem:[%s2372 + $0x8] sm:$0xff]
    %v2375 = vld [vmem:[%s2372 + $0x10] sm:$0xff]
    %v2376 = vld [vmem:[%s2372 + $0x18] sm:$0xff]
    %v2377 = vld [vmem:[%s2372 + $0x20] sm:$0xff]
    %v2378 = vld [vmem:[%s2372 + $0x28] sm:$0xff]
    %v2379 = vld [vmem:[%s2372 + $0x30] sm:$0xff]
    %v2380 = vld [vmem:[%s2372 + $0x38] sm:$0xff]
    %v2381 = vld [vmem:[%s2372 + $0x40] sm:$0xff]
    %v2382 = vld [vmem:[%s2372 + $0x48] sm:$0xff]
    %v2383 = vld [vmem:[%s2372 + $0x50] sm:$0xff]
    %v2384 = vld [vmem:[%s2372 + $0x58] sm:$0xff]
    %v2385 = vld [vmem:[%s2372 + $0x60] sm:$0xff]
    %v2386 = vld [vmem:[%s2372 + $0x68] sm:$0xff]
    %v2387 = vld [vmem:[%s2372 + $0x70] sm:$0xff]
    %2388 = vmatprep.subr.mxu0 0.0
    %2389 = vmatpush1.msra.mxu0 %v2373
    %2390 = vmatprep.subr.mxu0 0.0
    %2391 = vmatpush1.msra.mxu0 %v2374
    %2392 = vmatprep.subr.mxu0 0.0
    %2393 = vmatpush1.msra.mxu0 %v2375
    %2394 = vmatprep.subr.mxu0 0.0
    %2395 = vmatpush1.msra.mxu0 %v2376
    %2396 = vmatprep.subr.mxu0 0.0
    %2397 = vmatpush1.msra.mxu0 %v2377
    %2398 = vmatprep.subr.mxu0 0.0
    %2399 = vmatpush1.msra.mxu0 %v2378
    %2400 = vmatprep.subr.mxu0 0.0
    %2401 = vmatpush1.msra.mxu0 %v2379
    %2402 = vmatprep.subr.mxu0 0.0
    %2403 = vmatpush1.msra.mxu0 %v2380
    %2404 = vmatprep.subr.mxu0 0.0
    %2405 = vmatpush1.msra.mxu0 %v2381
    %2406 = vmatprep.subr.mxu0 0.0
    %2407 = vmatpush1.msra.mxu0 %v2382
    %2408 = vmatprep.subr.mxu0 0.0
    %2409 = vmatpush1.msra.mxu0 %v2383
    %2410 = vmatprep.subr.mxu0 0.0
    %2411 = vmatpush1.msra.mxu0 %v2384
    %2412 = vmatprep.subr.mxu0 0.0
    %2413 = vmatpush1.msra.mxu0 %v2385
    %2414 = vmatprep.subr.mxu0 0.0
    %2415 = vmatpush1.msra.mxu0 %v2386
    %2416 = vmatprep.subr.mxu0 0.0
    %2417 = vmatpush1.msra.mxu0 %v2387
    %2418 = vmatprep.subr.mxu0 0.0
    %2419 = vmatpush1.msra.mxu0 0.0
    %2420 = vmatprep.subr.mxu0 0.0
    %2421 = vmatpush1.msra.mxu0 0.0
    %2422 = vmatprep.subr.mxu0 0.0
    %2423 = vmatpush1.msra.mxu0 0.0
    %2424 = vmatprep.subr.mxu0 0.0
    %2425 = vmatpush1.msra.mxu0 0.0
    %2426 = vmatprep.subr.mxu0 0.0
    %2427 = vmatpush1.msra.mxu0 0.0
    %2428 = vmatprep.subr.mxu0 0.0
    %2429 = vmatpush1.msra.mxu0 0.0
    %2430 = vmatprep.subr.mxu0 0.0
    %2431 = vmatpush1.msra.mxu0 0.0
    %2432 = vmatprep.subr.mxu0 0.0
    %2433 = vmatpush1.msra.mxu0 0.0
    %2434 = vmatprep.subr.mxu0 0.0
    %2435 = vmatpush1.msra.mxu0 0.0
    %2436 = vmatprep.subr.mxu0 0.0
    %2437 = vmatpush1.msra.mxu0 0.0
    %2438 = vmatprep.subr.mxu0 0.0
    %2439 = vmatpush1.msra.mxu0 0.0
    %2440 = vmatprep.subr.mxu0 0.0
    %2441 = vmatpush1.msra.mxu0 0.0
    %2442 = vmatprep.subr.mxu0 0.0
    %2443 = vmatpush1.msra.mxu0 0.0
    %2444 = vmatprep.subr.mxu0 0.0
    %2445 = vmatpush1.msra.mxu0 0.0
    %2446 = vmatprep.subr.mxu0 0.0
    %2447 = vmatpush1.msra.mxu0 0.0
    %2448 = vmatprep.subr.mxu0 0.0
    %2449 = vmatpush1.msra.mxu0 0.0
    %2450 = vmatprep.subr.mxu0 0.0
    %2451 = vmatpush1.msra.mxu0 0.0
    %2452 = vmatprep.mubr.f32.mxu0 0.0
    %2453 = vmatmul.mubr.f32.gmra.mrb[0].mxu0 %v2291
    %v2454 = vpop.f32.mrb[0].mxu0
    %v2455 = vadd.f32 0.0, %v2454
    %v2456 = vpop.f32.mrb[0].mxu0
    %2457 = vmatprep.mubr.f32.mxu0 0.0
    %2458 = vmatmul.mubr.f32.gmra.mrb[0].mxu0 %v2293
    %v2459 = vpop.f32.mrb[0].mxu0
    %v2460 = vadd.f32 0.0, %v2459
    %v2461 = vpop.f32.mrb[0].mxu0
    %2462 = vdwg.mxu0
    %v2463 = vadd.f32 %v2243, %v2455
    %v2464 = vadd.f32 %v2248, %v2460
    %s2465 = scalar_lea.vmem %s4, 360
    %v2466 = vld [vmem:[%s2465] sm:$0xff]
    %v2467 = vld [vmem:[%s2465 + $0x8] sm:$0xff]
    %v2468 = vld [vmem:[%s2465 + $0x10] sm:$0xff]
    %v2469 = vld [vmem:[%s2465 + $0x18] sm:$0xff]
    %v2470 = vld [vmem:[%s2465 + $0x20] sm:$0xff]
    %v2471 = vld [vmem:[%s2465 + $0x28] sm:$0xff]
    %v2472 = vld [vmem:[%s2465 + $0x30] sm:$0xff]
    %v2473 = vld [vmem:[%s2465 + $0x38] sm:$0xff]
    %v2474 = vld [vmem:[%s2465 + $0x40] sm:$0xff]
    %v2475 = vld [vmem:[%s2465 + $0x48] sm:$0xff]
    %v2476 = vld [vmem:[%s2465 + $0x50] sm:$0xff]
    %v2477 = vld [vmem:[%s2465 + $0x58] sm:$0xff]
    %v2478 = vld [vmem:[%s2465 + $0x60] sm:$0xff]
    %v2479 = vld [vmem:[%s2465 + $0x68] sm:$0xff]
    %v2480 = vld [vmem:[%s2465 + $0x70] sm:$0xff]
    %v2483 = vlaneseq
    %v2484 = vshrl.u32 %v2483, 7
    %v2485 = vsub.s32 0, %v2484
    %v2486 = vrot.slane %v1741, %v2485
    %v2487 = vlaneseq
    %v2488 = vshrl.u32 %v2487, 7
    %v2489 = vsub.s32 0, %v2488
    %v2490 = vrot.slane %v1753, %v2489
    %v2491 = vsel %vm1881, %v1832, %v1828
    %v2492 = vsel %vm1883, %v1836, %v2491
    %v2493 = vsel %vm1885, %v1840, %v2492
    %v2494 = vsel %vm1887, %v1844, %v2493
    %v2495 = vsel %vm1889, %v1848, %v2494
    %v2496 = vsel %vm1891, %v2272, %v2495
    %v2497 = vsel %vm1893, %v2486, %v2496
    %v2498 = vsel %vm1881, %v1864, %v1860
    %v2499 = vsel %vm1883, %v1868, %v2498
    %v2500 = vsel %vm1885, %v1872, %v2499
    %v2501 = vsel %vm1887, %v1876, %v2500
    %v2502 = vsel %vm1889, %v1880, %v2501
    %v2503 = vsel %vm1891, %v2276, %v2502
    %v2504 = vsel %vm1893, %v2490, %v2503
    %v2505 = vsel %vm1902, %v2497, 0
    %v2507 = vsel %vm1902, %v2504, 0
    %2509 = vmatprep.subr.mxu0 0.0
    %2510 = vmatpush1.msra.mxu0 %v2466
    %2511 = vmatprep.subr.mxu0 0.0
    %2512 = vmatpush1.msra.mxu0 %v2467
    %2513 = vmatprep.subr.mxu0 0.0
    %2514 = vmatpush1.msra.mxu0 %v2468
    %2515 = vmatprep.subr.mxu0 0.0
    %2516 = vmatpush1.msra.mxu0 %v2469
    %2517 = vmatprep.subr.mxu0 0.0
    %2518 = vmatpush1.msra.mxu0 %v2470
    %2519 = vmatprep.subr.mxu0 0.0
    %2520 = vmatpush1.msra.mxu0 %v2471
    %2521 = vmatprep.subr.mxu0 0.0
    %2522 = vmatpush1.msra.mxu0 %v2472
    %2523 = vmatprep.subr.mxu0 0.0
    %2524 = vmatpush1.msra.mxu0 %v2473
    %2525 = vmatprep.subr.mxu0 0.0
    %2526 = vmatpush1.msra.mxu0 %v2474
    %2527 = vmatprep.subr.mxu0 0.0
    %2528 = vmatpush1.msra.mxu0 %v2475
    %2529 = vmatprep.subr.mxu0 0.0
    %2530 = vmatpush1.msra.mxu0 %v2476
    %2531 = vmatprep.subr.mxu0 0.0
    %2532 = vmatpush1.msra.mxu0 %v2477
    %2533 = vmatprep.subr.mxu0 0.0
    %2534 = vmatpush1.msra.mxu0 %v2478
    %2535 = vmatprep.subr.mxu0 0.0
    %2536 = vmatpush1.msra.mxu0 %v2479
    %2537 = vmatprep.subr.mxu0 0.0
    %2538 = vmatpush1.msra.mxu0 %v2480
    %2539 = vmatprep.subr.mxu0 0.0
    %2540 = vmatpush1.msra.mxu0 0.0
    %2541 = vmatprep.subr.mxu0 0.0
    %2542 = vmatpush1.msra.mxu0 0.0
    %2543 = vmatprep.subr.mxu0 0.0
    %2544 = vmatpush1.msra.mxu0 0.0
    %2545 = vmatprep.subr.mxu0 0.0
    %2546 = vmatpush1.msra.mxu0 0.0
    %2547 = vmatprep.subr.mxu0 0.0
    %2548 = vmatpush1.msra.mxu0 0.0
    %2549 = vmatprep.subr.mxu0 0.0
    %2550 = vmatpush1.msra.mxu0 0.0
    %2551 = vmatprep.subr.mxu0 0.0
    %2552 = vmatpush1.msra.mxu0 0.0
    %2553 = vmatprep.subr.mxu0 0.0
    %2554 = vmatpush1.msra.mxu0 0.0
    %2555 = vmatprep.subr.mxu0 0.0
    %2556 = vmatpush1.msra.mxu0 0.0
    %2557 = vmatprep.subr.mxu0 0.0
    %2558 = vmatpush1.msra.mxu0 0.0
    %2559 = vmatprep.subr.mxu0 0.0
    %2560 = vmatpush1.msra.mxu0 0.0
    %2561 = vmatprep.subr.mxu0 0.0
    %2562 = vmatpush1.msra.mxu0 0.0
    %2563 = vmatprep.subr.mxu0 0.0
    %2564 = vmatpush1.msra.mxu0 0.0
    %2565 = vmatprep.subr.mxu0 0.0
    %2566 = vmatpush1.msra.mxu0 0.0
    %2567 = vmatprep.subr.mxu0 0.0
    %2568 = vmatpush1.msra.mxu0 0.0
    %2569 = vmatprep.subr.mxu0 0.0
    %2570 = vmatpush1.msra.mxu0 0.0
    %2571 = vmatprep.subr.mxu0 0.0
    %2572 = vmatpush1.msra.mxu0 0.0
    %2573 = vmatprep.mubr.f32.mxu0 0.0
    %2574 = vmatmul.mubr.f32.gmra.mrb[0].mxu0 %v2505
    %v2575 = vpop.f32.mrb[0].mxu0
    %v2576 = vadd.f32 0.0, %v2575
    %v2577 = vpop.f32.mrb[0].mxu0
    %2578 = vmatprep.mubr.f32.mxu0 0.0
    %2579 = vmatmul.mubr.f32.gmra.mrb[0].mxu0 %v2507
    %v2580 = vpop.f32.mrb[0].mxu0
    %v2581 = vadd.f32 0.0, %v2580
    %v2582 = vpop.f32.mrb[0].mxu0
    %2583 = vdwg.mxu0
    %v2584 = vadd.f32 %v2370, %v2576
    %v2585 = vadd.f32 %v2371, %v2581
    %s2586 = scalar_lea.vmem %s5, 360
    %v2587 = vld [vmem:[%s2586] sm:$0xff]
    %v2588 = vld [vmem:[%s2586 + $0x8] sm:$0xff]
    %v2589 = vld [vmem:[%s2586 + $0x10] sm:$0xff]
    %v2590 = vld [vmem:[%s2586 + $0x18] sm:$0xff]
    %v2591 = vld [vmem:[%s2586 + $0x20] sm:$0xff]
    %v2592 = vld [vmem:[%s2586 + $0x28] sm:$0xff]
    %v2593 = vld [vmem:[%s2586 + $0x30] sm:$0xff]
    %v2594 = vld [vmem:[%s2586 + $0x38] sm:$0xff]
    %v2595 = vld [vmem:[%s2586 + $0x40] sm:$0xff]
    %v2596 = vld [vmem:[%s2586 + $0x48] sm:$0xff]
    %v2597 = vld [vmem:[%s2586 + $0x50] sm:$0xff]
    %v2598 = vld [vmem:[%s2586 + $0x58] sm:$0xff]
    %v2599 = vld [vmem:[%s2586 + $0x60] sm:$0xff]
    %v2600 = vld [vmem:[%s2586 + $0x68] sm:$0xff]
    %v2601 = vld [vmem:[%s2586 + $0x70] sm:$0xff]
    %2602 = vmatprep.subr.mxu0 0.0
    %2603 = vmatpush1.msra.mxu0 %v2587
    %2604 = vmatprep.subr.mxu0 0.0
    %2605 = vmatpush1.msra.mxu0 %v2588
    %2606 = vmatprep.subr.mxu0 0.0
    %2607 = vmatpush1.msra.mxu0 %v2589
    %2608 = vmatprep.subr.mxu0 0.0
    %2609 = vmatpush1.msra.mxu0 %v2590
    %2610 = vmatprep.subr.mxu0 0.0
    %2611 = vmatpush1.msra.mxu0 %v2591
    %2612 = vmatprep.subr.mxu0 0.0
    %2613 = vmatpush1.msra.mxu0 %v2592
    %2614 = vmatprep.subr.mxu0 0.0
    %2615 = vmatpush1.msra.mxu0 %v2593
    %2616 = vmatprep.subr.mxu0 0.0
    %2617 = vmatpush1.msra.mxu0 %v2594
    %2618 = vmatprep.subr.mxu0 0.0
    %2619 = vmatpush1.msra.mxu0 %v2595
    %2620 = vmatprep.subr.mxu0 0.0
    %2621 = vmatpush1.msra.mxu0 %v2596
    %2622 = vmatprep.subr.mxu0 0.0
    %2623 = vmatpush1.msra.mxu0 %v2597
    %2624 = vmatprep.subr.mxu0 0.0
    %2625 = vmatpush1.msra.mxu0 %v2598
    %2626 = vmatprep.subr.mxu0 0.0
    %2627 = vmatpush1.msra.mxu0 %v2599
    %2628 = vmatprep.subr.mxu0 0.0
    %2629 = vmatpush1.msra.mxu0 %v2600
    %2630 = vmatprep.subr.mxu0 0.0
    %2631 = vmatpush1.msra.mxu0 %v2601
    %2632 = vmatprep.subr.mxu0 0.0
    %2633 = vmatpush1.msra.mxu0 0.0
    %2634 = vmatprep.subr.mxu0 0.0
    %2635 = vmatpush1.msra.mxu0 0.0
    %2636 = vmatprep.subr.mxu0 0.0
    %2637 = vmatpush1.msra.mxu0 0.0
    %2638 = vmatprep.subr.mxu0 0.0
    %2639 = vmatpush1.msra.mxu0 0.0
    %2640 = vmatprep.subr.mxu0 0.0
    %2641 = vmatpush1.msra.mxu0 0.0
    %2642 = vmatprep.subr.mxu0 0.0
    %2643 = vmatpush1.msra.mxu0 0.0
    %2644 = vmatprep.subr.mxu0 0.0
    %2645 = vmatpush1.msra.mxu0 0.0
    %2646 = vmatprep.subr.mxu0 0.0
    %2647 = vmatpush1.msra.mxu0 0.0
    %2648 = vmatprep.subr.mxu0 0.0
    %2649 = vmatpush1.msra.mxu0 0.0
    %2650 = vmatprep.subr.mxu0 0.0
    %2651 = vmatpush1.msra.mxu0 0.0
    %2652 = vmatprep.subr.mxu0 0.0
    %2653 = vmatpush1.msra.mxu0 0.0
    %2654 = vmatprep.subr.mxu0 0.0
    %2655 = vmatpush1.msra.mxu0 0.0
    %2656 = vmatprep.subr.mxu0 0.0
    %2657 = vmatpush1.msra.mxu0 0.0
    %2658 = vmatprep.subr.mxu0 0.0
    %2659 = vmatpush1.msra.mxu0 0.0
    %2660 = vmatprep.subr.mxu0 0.0
    %2661 = vmatpush1.msra.mxu0 0.0
    %2662 = vmatprep.subr.mxu0 0.0
    %2663 = vmatpush1.msra.mxu0 0.0
    %2664 = vmatprep.subr.mxu0 0.0
    %2665 = vmatpush1.msra.mxu0 0.0
    %2666 = vmatprep.mubr.f32.mxu0 0.0
    %2667 = vmatmul.mubr.f32.gmra.mrb[0].mxu0 %v2505
    %v2668 = vpop.f32.mrb[0].mxu0
    %v2669 = vadd.f32 0.0, %v2668
    %v2670 = vpop.f32.mrb[0].mxu0
    %2671 = vmatprep.mubr.f32.mxu0 0.0
    %2672 = vmatmul.mubr.f32.gmra.mrb[0].mxu0 %v2507
    %v2673 = vpop.f32.mrb[0].mxu0
    %v2674 = vadd.f32 0.0, %v2673
    %v2675 = vpop.f32.mrb[0].mxu0
    %2676 = vdwg.mxu0
    %v2677 = vadd.f32 %v2463, %v2669
    %v2678 = vadd.f32 %v2464, %v2674
    %s2679 = scalar_lea.vmem %s4, 480
    %v2680 = vld [vmem:[%s2679] sm:$0xff]
    %v2681 = vld [vmem:[%s2679 + $0x8] sm:$0xff]
    %v2682 = vld [vmem:[%s2679 + $0x10] sm:$0xff]
    %v2683 = vld [vmem:[%s2679 + $0x18] sm:$0xff]
    %v2684 = vld [vmem:[%s2679 + $0x20] sm:$0xff]
    %v2685 = vld [vmem:[%s2679 + $0x28] sm:$0xff]
    %v2686 = vld [vmem:[%s2679 + $0x30] sm:$0xff]
    %v2687 = vld [vmem:[%s2679 + $0x38] sm:$0xff]
    %v2688 = vld [vmem:[%s2679 + $0x40] sm:$0xff]
    %v2689 = vld [vmem:[%s2679 + $0x48] sm:$0xff]
    %v2690 = vld [vmem:[%s2679 + $0x50] sm:$0xff]
    %v2691 = vld [vmem:[%s2679 + $0x58] sm:$0xff]
    %v2692 = vld [vmem:[%s2679 + $0x60] sm:$0xff]
    %v2693 = vld [vmem:[%s2679 + $0x68] sm:$0xff]
    %v2694 = vld [vmem:[%s2679 + $0x70] sm:$0xff]
    %v2697 = vlaneseq
    %v2698 = vshrl.u32 %v2697, 7
    %v2699 = vsub.s32 0, %v2698
    %v2700 = vrot.slane %v1742, %v2699
    %v2701 = vlaneseq
    %v2702 = vshrl.u32 %v2701, 7
    %v2703 = vsub.s32 0, %v2702
    %v2704 = vrot.slane %v1754, %v2703
    %v2705 = vsel %vm1881, %v1836, %v1832
    %v2706 = vsel %vm1883, %v1840, %v2705
    %v2707 = vsel %vm1885, %v1844, %v2706
    %v2708 = vsel %vm1887, %v1848, %v2707
    %v2709 = vsel %vm1889, %v2272, %v2708
    %v2710 = vsel %vm1891, %v2486, %v2709
    %v2711 = vsel %vm1893, %v2700, %v2710
    %v2712 = vsel %vm1881, %v1868, %v1864
    %v2713 = vsel %vm1883, %v1872, %v2712
    %v2714 = vsel %vm1885, %v1876, %v2713
    %v2715 = vsel %vm1887, %v1880, %v2714
    %v2716 = vsel %vm1889, %v2276, %v2715
    %v2717 = vsel %vm1891, %v2490, %v2716
    %v2718 = vsel %vm1893, %v2704, %v2717
    %v2719 = vsel %vm1902, %v2711, 0
    %v2721 = vsel %vm1902, %v2718, 0
    %2723 = vmatprep.subr.mxu0 0.0
    %2724 = vmatpush1.msra.mxu0 %v2680
    %2725 = vmatprep.subr.mxu0 0.0
    %2726 = vmatpush1.msra.mxu0 %v2681
    %2727 = vmatprep.subr.mxu0 0.0
    %2728 = vmatpush1.msra.mxu0 %v2682
    %2729 = vmatprep.subr.mxu0 0.0
    %2730 = vmatpush1.msra.mxu0 %v2683
    %2731 = vmatprep.subr.mxu0 0.0
    %2732 = vmatpush1.msra.mxu0 %v2684
    %2733 = vmatprep.subr.mxu0 0.0
    %2734 = vmatpush1.msra.mxu0 %v2685
    %2735 = vmatprep.subr.mxu0 0.0
    %2736 = vmatpush1.msra.mxu0 %v2686
    %2737 = vmatprep.subr.mxu0 0.0
    %2738 = vmatpush1.msra.mxu0 %v2687
    %2739 = vmatprep.subr.mxu0 0.0
    %2740 = vmatpush1.msra.mxu0 %v2688
    %2741 = vmatprep.subr.mxu0 0.0
    %2742 = vmatpush1.msra.mxu0 %v2689
    %2743 = vmatprep.subr.mxu0 0.0
    %2744 = vmatpush1.msra.mxu0 %v2690
    %2745 = vmatprep.subr.mxu0 0.0
    %2746 = vmatpush1.msra.mxu0 %v2691
    %2747 = vmatprep.subr.mxu0 0.0
    %2748 = vmatpush1.msra.mxu0 %v2692
    %2749 = vmatprep.subr.mxu0 0.0
    %2750 = vmatpush1.msra.mxu0 %v2693
    %2751 = vmatprep.subr.mxu0 0.0
    %2752 = vmatpush1.msra.mxu0 %v2694
    %2753 = vmatprep.subr.mxu0 0.0
    %2754 = vmatpush1.msra.mxu0 0.0
    %2755 = vmatprep.subr.mxu0 0.0
    %2756 = vmatpush1.msra.mxu0 0.0
    %2757 = vmatprep.subr.mxu0 0.0
    %2758 = vmatpush1.msra.mxu0 0.0
    %2759 = vmatprep.subr.mxu0 0.0
    %2760 = vmatpush1.msra.mxu0 0.0
    %2761 = vmatprep.subr.mxu0 0.0
    %2762 = vmatpush1.msra.mxu0 0.0
    %2763 = vmatprep.subr.mxu0 0.0
    %2764 = vmatpush1.msra.mxu0 0.0
    %2765 = vmatprep.subr.mxu0 0.0
    %2766 = vmatpush1.msra.mxu0 0.0
    %2767 = vmatprep.subr.mxu0 0.0
    %2768 = vmatpush1.msra.mxu0 0.0
    %2769 = vmatprep.subr.mxu0 0.0
    %2770 = vmatpush1.msra.mxu0 0.0
    %2771 = vmatprep.subr.mxu0 0.0
    %2772 = vmatpush1.msra.mxu0 0.0
    %2773 = vmatprep.subr.mxu0 0.0
    %2774 = vmatpush1.msra.mxu0 0.0
    %2775 = vmatprep.subr.mxu0 0.0
    %2776 = vmatpush1.msra.mxu0 0.0
    %2777 = vmatprep.subr.mxu0 0.0
    %2778 = vmatpush1.msra.mxu0 0.0
    %2779 = vmatprep.subr.mxu0 0.0
    %2780 = vmatpush1.msra.mxu0 0.0
    %2781 = vmatprep.subr.mxu0 0.0
    %2782 = vmatpush1.msra.mxu0 0.0
    %2783 = vmatprep.subr.mxu0 0.0
    %2784 = vmatpush1.msra.mxu0 0.0
    %2785 = vmatprep.subr.mxu0 0.0
    %2786 = vmatpush1.msra.mxu0 0.0
    %2787 = vmatprep.mubr.f32.mxu0 0.0
    %2788 = vmatmul.mubr.f32.gmra.mrb[0].mxu0 %v2719
    %v2789 = vpop.f32.mrb[0].mxu0
    %v2790 = vadd.f32 0.0, %v2789
    %v2791 = vpop.f32.mrb[0].mxu0
    %2792 = vmatprep.mubr.f32.mxu0 0.0
    %2793 = vmatmul.mubr.f32.gmra.mrb[0].mxu0 %v2721
    %v2794 = vpop.f32.mrb[0].mxu0
    %v2795 = vadd.f32 0.0, %v2794
    %v2796 = vpop.f32.mrb[0].mxu0
    %2797 = vdwg.mxu0
    %v2798 = vadd.f32 %v2584, %v2790
    %v2799 = vadd.f32 %v2585, %v2795
    %s2800 = scalar_lea.vmem %s5, 480
    %v2801 = vld [vmem:[%s2800] sm:$0xff]
    %v2802 = vld [vmem:[%s2800 + $0x8] sm:$0xff]
    %v2803 = vld [vmem:[%s2800 + $0x10] sm:$0xff]
    %v2804 = vld [vmem:[%s2800 + $0x18] sm:$0xff]
    %v2805 = vld [vmem:[%s2800 + $0x20] sm:$0xff]
    %v2806 = vld [vmem:[%s2800 + $0x28] sm:$0xff]
    %v2807 = vld [vmem:[%s2800 + $0x30] sm:$0xff]
    %v2808 = vld [vmem:[%s2800 + $0x38] sm:$0xff]
    %v2809 = vld [vmem:[%s2800 + $0x40] sm:$0xff]
    %v2810 = vld [vmem:[%s2800 + $0x48] sm:$0xff]
    %v2811 = vld [vmem:[%s2800 + $0x50] sm:$0xff]
    %v2812 = vld [vmem:[%s2800 + $0x58] sm:$0xff]
    %v2813 = vld [vmem:[%s2800 + $0x60] sm:$0xff]
    %v2814 = vld [vmem:[%s2800 + $0x68] sm:$0xff]
    %v2815 = vld [vmem:[%s2800 + $0x70] sm:$0xff]
    %2816 = vmatprep.subr.mxu0 0.0
    %2817 = vmatpush1.msra.mxu0 %v2801
    %2818 = vmatprep.subr.mxu0 0.0
    %2819 = vmatpush1.msra.mxu0 %v2802
    %2820 = vmatprep.subr.mxu0 0.0
    %2821 = vmatpush1.msra.mxu0 %v2803
    %2822 = vmatprep.subr.mxu0 0.0
    %2823 = vmatpush1.msra.mxu0 %v2804
    %2824 = vmatprep.subr.mxu0 0.0
    %2825 = vmatpush1.msra.mxu0 %v2805
    %2826 = vmatprep.subr.mxu0 0.0
    %2827 = vmatpush1.msra.mxu0 %v2806
    %2828 = vmatprep.subr.mxu0 0.0
    %2829 = vmatpush1.msra.mxu0 %v2807
    %2830 = vmatprep.subr.mxu0 0.0
    %2831 = vmatpush1.msra.mxu0 %v2808
    %2832 = vmatprep.subr.mxu0 0.0
    %2833 = vmatpush1.msra.mxu0 %v2809
    %2834 = vmatprep.subr.mxu0 0.0
    %2835 = vmatpush1.msra.mxu0 %v2810
    %2836 = vmatprep.subr.mxu0 0.0
    %2837 = vmatpush1.msra.mxu0 %v2811
    %2838 = vmatprep.subr.mxu0 0.0
    %2839 = vmatpush1.msra.mxu0 %v2812
    %2840 = vmatprep.subr.mxu0 0.0
    %2841 = vmatpush1.msra.mxu0 %v2813
    %2842 = vmatprep.subr.mxu0 0.0
    %2843 = vmatpush1.msra.mxu0 %v2814
    %2844 = vmatprep.subr.mxu0 0.0
    %2845 = vmatpush1.msra.mxu0 %v2815
    %2846 = vmatprep.subr.mxu0 0.0
    %2847 = vmatpush1.msra.mxu0 0.0
    %2848 = vmatprep.subr.mxu0 0.0
    %2849 = vmatpush1.msra.mxu0 0.0
    %2850 = vmatprep.subr.mxu0 0.0
    %2851 = vmatpush1.msra.mxu0 0.0
    %2852 = vmatprep.subr.mxu0 0.0
    %2853 = vmatpush1.msra.mxu0 0.0
    %2854 = vmatprep.subr.mxu0 0.0
    %2855 = vmatpush1.msra.mxu0 0.0
    %2856 = vmatprep.subr.mxu0 0.0
    %2857 = vmatpush1.msra.mxu0 0.0
    %2858 = vmatprep.subr.mxu0 0.0
    %2859 = vmatpush1.msra.mxu0 0.0
    %2860 = vmatprep.subr.mxu0 0.0
    %2861 = vmatpush1.msra.mxu0 0.0
    %2862 = vmatprep.subr.mxu0 0.0
    %2863 = vmatpush1.msra.mxu0 0.0
    %2864 = vmatprep.subr.mxu0 0.0
    %2865 = vmatpush1.msra.mxu0 0.0
    %2866 = vmatprep.subr.mxu0 0.0
    %2867 = vmatpush1.msra.mxu0 0.0
    %2868 = vmatprep.subr.mxu0 0.0
    %2869 = vmatpush1.msra.mxu0 0.0
    %2870 = vmatprep.subr.mxu0 0.0
    %2871 = vmatpush1.msra.mxu0 0.0
    %2872 = vmatprep.subr.mxu0 0.0
    %2873 = vmatpush1.msra.mxu0 0.0
    %2874 = vmatprep.subr.mxu0 0.0
    %2875 = vmatpush1.msra.mxu0 0.0
    %2876 = vmatprep.subr.mxu0 0.0
    %2877 = vmatpush1.msra.mxu0 0.0
    %2878 = vmatprep.subr.mxu0 0.0
    %2879 = vmatpush1.msra.mxu0 0.0
    %2880 = vmatprep.mubr.f32.mxu0 0.0
    %2881 = vmatmul.mubr.f32.gmra.mrb[0].mxu0 %v2719
    %v2882 = vpop.f32.mrb[0].mxu0
    %v2883 = vadd.f32 0.0, %v2882
    %v2884 = vpop.f32.mrb[0].mxu0
    %2885 = vmatprep.mubr.f32.mxu0 0.0
    %2886 = vmatmul.mubr.f32.gmra.mrb[0].mxu0 %v2721
    %v2887 = vpop.f32.mrb[0].mxu0
    %v2888 = vadd.f32 0.0, %v2887
    %v2889 = vpop.f32.mrb[0].mxu0
    %2890 = vdwg.mxu0
    %v2891 = vadd.f32 %v2677, %v2883
    %v2892 = vadd.f32 %v2678, %v2888
    %v2893 = vmax.f32 %v2798, %v2891
    %v2894 = vmax.f32 %v2799, %v2892
    %v2895 = vld [vmem:[%s6] sm:$0x1]
    %v2897 = vlaneseq
    %v2898 = vshrl.u32 %v2897, 7
    %v2899 = vsub.s32 0, %v2898
    %v2900 = vrot.slane %v2895, %v2899
    %v2902 = vadd.f32 %v2893, %v2900
    %v2903 = vadd.f32 %v2894, %v2900
    %v2906 = vcombine.high %v2902, %v2902
    %v2908 = vunpack.c.l.s4 1983009808
    %v2909 = vunpack.c.0.s8 %v2908
    %v2910 = vlaneseq
    %v2911 = vshrl.u32 %v2910, 7
    %v2912 = vsub.s32 %v2909, %v2911
    %v2913 = vrot.slane %v2902, %v2912
    %v2915 = vunpack.c.l.s4 1983009808
    %v2916 = vunpack.c.0.s8 %v2915
    %v2917 = vlaneseq
    %v2918 = vshrl.u32 %v2917, 7
    %v2919 = vsub.s32 %v2916, %v2918
    %v2920 = vrot.slane %v2906, %v2919
    %v2921 = vcombine.high %v2913, %v2913
    %v2922 = vcombine.high %v2920, %v2920
    %v2923 = vcombine.high %v2903, %v2903
    %v2925 = vunpack.c.l.s4 1983009808
    %v2926 = vunpack.c.0.s8 %v2925
    %v2927 = vlaneseq
    %v2928 = vshrl.u32 %v2927, 7
    %v2929 = vsub.s32 %v2926, %v2928
    %v2930 = vrot.slane %v2903, %v2929
    %v2932 = vunpack.c.l.s4 1983009808
    %v2933 = vunpack.c.0.s8 %v2932
    %v2934 = vlaneseq
    %v2935 = vshrl.u32 %v2934, 7
    %v2936 = vsub.s32 %v2933, %v2935
    %v2937 = vrot.slane %v2923, %v2936
    %v2938 = vcombine.high %v2930, %v2930
    %v2939 = vcombine.high %v2937, %v2937
    %v2948 = vrot.slane %v2913, 7
    %v2949 = vrot.slane %v2948, 2
    %v2950 = vrot.slane %v2921, 7
    %v2951 = vrot.slane %v2950, 2
    %v2952 = vrot.slane %v2920, 7
    %v2953 = vrot.slane %v2952, 2
    %v2954 = vrot.slane %v2922, 7
    %v2955 = vrot.slane %v2954, 2
    %v2956 = vrot.slane %v2930, 7
    %v2957 = vrot.slane %v2956, 2
    %v2958 = vrot.slane %v2938, 7
    %v2959 = vrot.slane %v2958, 2
    %v2960 = vrot.slane %v2937, 7
    %v2961 = vrot.slane %v2960, 2
    %v2962 = vrot.slane %v2939, 7
    %v2963 = vrot.slane %v2962, 2
    %v2972 = vmax.f32 %v2913, %v2949
    %v2973 = vmax.f32 %v2921, %v2951
    %v2974 = vmax.f32 %v2920, %v2953
    %v2975 = vmax.f32 %v2922, %v2955
    %v2976 = vmax.f32 %v2930, %v2957
    %v2977 = vmax.f32 %v2938, %v2959
    %v2978 = vmax.f32 %v2937, %v2961
    %v2979 = vmax.f32 %v2939, %v2963
    %v2980 = vmax.f32 %v2972, 0.0
    %v2981 = vmax.f32 %v2973, 0.0
    %v2982 = vmax.f32 %v2974, 0.0
    %v2983 = vmax.f32 %v2975, 0.0
    %v2984 = vmax.f32 %v2976, 0.0
    %v2985 = vmax.f32 %v2977, 0.0
    %v2986 = vmax.f32 %v2978, 0.0
    %v2987 = vmax.f32 %v2979, 0.0
    %v2988 = vld [vmem:[%s7] sm:$0xff]
    %v2989 = vld [vmem:[%s7 + $0x8] sm:$0xff]
    %v2990 = vld [vmem:[%s7 + $0x10] sm:$0xff]
    %v2991 = vld [vmem:[%s7 + $0x18] sm:$0xff]
    %v2992 = vld [vmem:[%s7 + $0x20] sm:$0xff]
    %v2993 = vld [vmem:[%s7 + $0x28] sm:$0xff]
    %v2994 = vld [vmem:[%s7 + $0x30] sm:$0xff]
    %v2995 = vld [vmem:[%s7 + $0x38] sm:$0xff]
    %v2996 = vld [vmem:[%s7 + $0x40] sm:$0xff]
    %v2997 = vld [vmem:[%s7 + $0x48] sm:$0xff]
    %s2998 = scalar_lea.vmem %s7, 80
    %v2999 = vld [vmem:[%s2998] sm:$0xff]
    %v3000 = vld [vmem:[%s2998 + $0x8] sm:$0xff]
    %v3001 = vld [vmem:[%s2998 + $0x10] sm:$0xff]
    %v3002 = vld [vmem:[%s2998 + $0x18] sm:$0xff]
    %v3003 = vld [vmem:[%s2998 + $0x20] sm:$0xff]
    %v3004 = vld [vmem:[%s2998 + $0x28] sm:$0xff]
    %v3005 = vld [vmem:[%s2998 + $0x30] sm:$0xff]
    %v3006 = vld [vmem:[%s2998 + $0x38] sm:$0xff]
    %v3007 = vld [vmem:[%s2998 + $0x40] sm:$0xff]
    %v3008 = vld [vmem:[%s2998 + $0x48] sm:$0xff]
    %v3011 = vlaneseq
    %v3012 = vshrl.u32 %v3011, 7
    %v3013 = vsub.s32 0, %v3012
    %v3014 = vrot.slane %v2981, %v3013
    %v3015 = vlaneseq
    %v3016 = vshrl.u32 %v3015, 7
    %v3017 = vsub.s32 0, %v3016
    %v3018 = vrot.slane %v2985, %v3017
    %v3019 = vsel %vm1881, %v3018, %v3014
    %vm3020 = vcmask 654336
    %v3021 = vsel %vm3020, %v3019, 0
    %3023 = vmatprep.subr.mxu0 0.0
    %3024 = vmatpush1.msra.mxu0 %v2999
    %3025 = vmatprep.subr.mxu0 0.0
    %3026 = vmatpush1.msra.mxu0 %v3000
    %3027 = vmatprep.subr.mxu0 0.0
    %3028 = vmatpush1.msra.mxu0 %v3001
    %3029 = vmatprep.subr.mxu0 0.0
    %3030 = vmatpush1.msra.mxu0 %v3002
    %3031 = vmatprep.subr.mxu0 0.0
    %3032 = vmatpush1.msra.mxu0 %v3003
    %3033 = vmatprep.subr.mxu0 0.0
    %3034 = vmatpush1.msra.mxu0 %v3004
    %3035 = vmatprep.subr.mxu0 0.0
    %3036 = vmatpush1.msra.mxu0 %v3005
    %3037 = vmatprep.subr.mxu0 0.0
    %3038 = vmatpush1.msra.mxu0 %v3006
    %3039 = vmatprep.subr.mxu0 0.0
    %3040 = vmatpush1.msra.mxu0 %v3007
    %3041 = vmatprep.subr.mxu0 0.0
    %3042 = vmatpush1.msra.mxu0 %v3008
    %3043 = vmatprep.subr.mxu0 0.0
    %3044 = vmatpush1.msra.mxu0 0.0
    %3045 = vmatprep.subr.mxu0 0.0
    %3046 = vmatpush1.msra.mxu0 0.0
    %3047 = vmatprep.subr.mxu0 0.0
    %3048 = vmatpush1.msra.mxu0 0.0
    %3049 = vmatprep.subr.mxu0 0.0
    %3050 = vmatpush1.msra.mxu0 0.0
    %3051 = vmatprep.subr.mxu0 0.0
    %3052 = vmatpush1.msra.mxu0 0.0
    %3053 = vmatprep.subr.mxu0 0.0
    %3054 = vmatpush1.msra.mxu0 0.0
    %3055 = vmatprep.subr.mxu0 0.0
    %3056 = vmatpush1.msra.mxu0 0.0
    %3057 = vmatprep.subr.mxu0 0.0
    %3058 = vmatpush1.msra.mxu0 0.0
    %3059 = vmatprep.subr.mxu0 0.0
    %3060 = vmatpush1.msra.mxu0 0.0
    %3061 = vmatprep.subr.mxu0 0.0
    %3062 = vmatpush1.msra.mxu0 0.0
    %3063 = vmatprep.subr.mxu0 0.0
    %3064 = vmatpush1.msra.mxu0 0.0
    %3065 = vmatprep.subr.mxu0 0.0
    %3066 = vmatpush1.msra.mxu0 0.0
    %3067 = vmatprep.subr.mxu0 0.0
    %3068 = vmatpush1.msra.mxu0 0.0
    %3069 = vmatprep.subr.mxu0 0.0
    %3070 = vmatpush1.msra.mxu0 0.0
    %3071 = vmatprep.subr.mxu0 0.0
    %3072 = vmatpush1.msra.mxu0 0.0
    %3073 = vmatprep.subr.mxu0 0.0
    %3074 = vmatpush1.msra.mxu0 0.0
    %3075 = vmatprep.subr.mxu0 0.0
    %3076 = vmatpush1.msra.mxu0 0.0
    %3077 = vmatprep.subr.mxu0 0.0
    %3078 = vmatpush1.msra.mxu0 0.0
    %3079 = vmatprep.subr.mxu0 0.0
    %3080 = vmatpush1.msra.mxu0 0.0
    %3081 = vmatprep.subr.mxu0 0.0
    %3082 = vmatpush1.msra.mxu0 0.0
    %3083 = vmatprep.subr.mxu0 0.0
    %3084 = vmatpush1.msra.mxu0 0.0
    %3085 = vmatprep.subr.mxu0 0.0
    %3086 = vmatpush1.msra.mxu0 0.0
    %3087 = vmatprep.mubr.f32.mxu0 0.0
    %3088 = vmatmul.mubr.f32.gmra.mrb[0].mxu0 %v3021
    %v3089 = vpop.f32.mrb[0].mxu0
    %v3090 = vadd.f32 0.0, %v3089
    %v3091 = vpop.f32.mrb[0].mxu0
    %3092 = vdwg.mxu0
    %v3095 = vlaneseq
    %v3096 = vshrl.u32 %v3095, 7
    %v3097 = vsub.s32 0, %v3096
    %v3098 = vrot.slane %v2980, %v3097
    %v3099 = vlaneseq
    %v3100 = vshrl.u32 %v3099, 7
    %v3101 = vsub.s32 0, %v3100
    %v3102 = vrot.slane %v2984, %v3101
    %v3103 = vsel %vm1881, %v3102, %v3098
    %v3104 = vsel %vm3020, %v3103, 0
    %3106 = vmatprep.subr.mxu0 0.0
    %3107 = vmatpush1.msra.mxu0 %v2988
    %3108 = vmatprep.subr.mxu0 0.0
    %3109 = vmatpush1.msra.mxu0 %v2989
    %3110 = vmatprep.subr.mxu0 0.0
    %3111 = vmatpush1.msra.mxu0 %v2990
    %3112 = vmatprep.subr.mxu0 0.0
    %3113 = vmatpush1.msra.mxu0 %v2991
    %3114 = vmatprep.subr.mxu0 0.0
    %3115 = vmatpush1.msra.mxu0 %v2992
    %3116 = vmatprep.subr.mxu0 0.0
    %3117 = vmatpush1.msra.mxu0 %v2993
    %3118 = vmatprep.subr.mxu0 0.0
    %3119 = vmatpush1.msra.mxu0 %v2994
    %3120 = vmatprep.subr.mxu0 0.0
    %3121 = vmatpush1.msra.mxu0 %v2995
    %3122 = vmatprep.subr.mxu0 0.0
    %3123 = vmatpush1.msra.mxu0 %v2996
    %3124 = vmatprep.subr.mxu0 0.0
    %3125 = vmatpush1.msra.mxu0 %v2997
    %3126 = vmatprep.subr.mxu0 0.0
    %3127 = vmatpush1.msra.mxu0 0.0
    %3128 = vmatprep.subr.mxu0 0.0
    %3129 = vmatpush1.msra.mxu0 0.0
    %3130 = vmatprep.subr.mxu0 0.0
    %3131 = vmatpush1.msra.mxu0 0.0
    %3132 = vmatprep.subr.mxu0 0.0
    %3133 = vmatpush1.msra.mxu0 0.0
    %3134 = vmatprep.subr.mxu0 0.0
    %3135 = vmatpush1.msra.mxu0 0.0
    %3136 = vmatprep.subr.mxu0 0.0
    %3137 = vmatpush1.msra.mxu0 0.0
    %3138 = vmatprep.subr.mxu0 0.0
    %3139 = vmatpush1.msra.mxu0 0.0
    %3140 = vmatprep.subr.mxu0 0.0
    %3141 = vmatpush1.msra.mxu0 0.0
    %3142 = vmatprep.subr.mxu0 0.0
    %3143 = vmatpush1.msra.mxu0 0.0
    %3144 = vmatprep.subr.mxu0 0.0
    %3145 = vmatpush1.msra.mxu0 0.0
    %3146 = vmatprep.subr.mxu0 0.0
    %3147 = vmatpush1.msra.mxu0 0.0
    %3148 = vmatprep.subr.mxu0 0.0
    %3149 = vmatpush1.msra.mxu0 0.0
    %3150 = vmatprep.subr.mxu0 0.0
    %3151 = vmatpush1.msra.mxu0 0.0
    %3152 = vmatprep.subr.mxu0 0.0
    %3153 = vmatpush1.msra.mxu0 0.0
    %3154 = vmatprep.subr.mxu0 0.0
    %3155 = vmatpush1.msra.mxu0 0.0
    %3156 = vmatprep.subr.mxu0 0.0
    %3157 = vmatpush1.msra.mxu0 0.0
    %3158 = vmatprep.subr.mxu0 0.0
    %3159 = vmatpush1.msra.mxu0 0.0
    %3160 = vmatprep.subr.mxu0 0.0
    %3161 = vmatpush1.msra.mxu0 0.0
    %3162 = vmatprep.subr.mxu0 0.0
    %3163 = vmatpush1.msra.mxu0 0.0
    %3164 = vmatprep.subr.mxu0 0.0
    %3165 = vmatpush1.msra.mxu0 0.0
    %3166 = vmatprep.subr.mxu0 0.0
    %3167 = vmatpush1.msra.mxu0 0.0
    %3168 = vmatprep.subr.mxu0 0.0
    %3169 = vmatpush1.msra.mxu0 0.0
    %3170 = vmatprep.mubr.f32.mxu0 0.0
    %3171 = vmatmul.mubr.f32.gmra.mrb[0].mxu0 %v3104
    %v3172 = vpop.f32.mrb[0].mxu0
    %v3173 = vadd.f32 %v3090, %v3172
    %v3174 = vpop.f32.mrb[0].mxu0
    %3175 = vdwg.mxu0
    %s3176 = scalar_lea.vmem %s7, 160
    %v3177 = vld [vmem:[%s3176] sm:$0xff]
    %v3178 = vld [vmem:[%s3176 + $0x8] sm:$0xff]
    %v3179 = vld [vmem:[%s3176 + $0x10] sm:$0xff]
    %v3180 = vld [vmem:[%s3176 + $0x18] sm:$0xff]
    %v3181 = vld [vmem:[%s3176 + $0x20] sm:$0xff]
    %v3182 = vld [vmem:[%s3176 + $0x28] sm:$0xff]
    %v3183 = vld [vmem:[%s3176 + $0x30] sm:$0xff]
    %v3184 = vld [vmem:[%s3176 + $0x38] sm:$0xff]
    %v3185 = vld [vmem:[%s3176 + $0x40] sm:$0xff]
    %v3186 = vld [vmem:[%s3176 + $0x48] sm:$0xff]
    %v3189 = vlaneseq
    %v3190 = vshrl.u32 %v3189, 7
    %v3191 = vsub.s32 0, %v3190
    %v3192 = vrot.slane %v2982, %v3191
    %v3193 = vlaneseq
    %v3194 = vshrl.u32 %v3193, 7
    %v3195 = vsub.s32 0, %v3194
    %v3196 = vrot.slane %v2986, %v3195
    %v3197 = vsel %vm1881, %v3196, %v3192
    %v3198 = vsel %vm3020, %v3197, 0
    %3200 = vmatprep.subr.mxu0 0.0
    %3201 = vmatpush1.msra.mxu0 %v3177
    %3202 = vmatprep.subr.mxu0 0.0
    %3203 = vmatpush1.msra.mxu0 %v3178
    %3204 = vmatprep.subr.mxu0 0.0
    %3205 = vmatpush1.msra.mxu0 %v3179
    %3206 = vmatprep.subr.mxu0 0.0
    %3207 = vmatpush1.msra.mxu0 %v3180
    %3208 = vmatprep.subr.mxu0 0.0
    %3209 = vmatpush1.msra.mxu0 %v3181
    %3210 = vmatprep.subr.mxu0 0.0
    %3211 = vmatpush1.msra.mxu0 %v3182
    %3212 = vmatprep.subr.mxu0 0.0
    %3213 = vmatpush1.msra.mxu0 %v3183
    %3214 = vmatprep.subr.mxu0 0.0
    %3215 = vmatpush1.msra.mxu0 %v3184
    %3216 = vmatprep.subr.mxu0 0.0
    %3217 = vmatpush1.msra.mxu0 %v3185
    %3218 = vmatprep.subr.mxu0 0.0
    %3219 = vmatpush1.msra.mxu0 %v3186
    %3220 = vmatprep.subr.mxu0 0.0
    %3221 = vmatpush1.msra.mxu0 0.0
    %3222 = vmatprep.subr.mxu0 0.0
    %3223 = vmatpush1.msra.mxu0 0.0
    %3224 = vmatprep.subr.mxu0 0.0
    %3225 = vmatpush1.msra.mxu0 0.0
    %3226 = vmatprep.subr.mxu0 0.0
    %3227 = vmatpush1.msra.mxu0 0.0
    %3228 = vmatprep.subr.mxu0 0.0
    %3229 = vmatpush1.msra.mxu0 0.0
    %3230 = vmatprep.subr.mxu0 0.0
    %3231 = vmatpush1.msra.mxu0 0.0
    %3232 = vmatprep.subr.mxu0 0.0
    %3233 = vmatpush1.msra.mxu0 0.0
    %3234 = vmatprep.subr.mxu0 0.0
    %3235 = vmatpush1.msra.mxu0 0.0
    %3236 = vmatprep.subr.mxu0 0.0
    %3237 = vmatpush1.msra.mxu0 0.0
    %3238 = vmatprep.subr.mxu0 0.0
    %3239 = vmatpush1.msra.mxu0 0.0
    %3240 = vmatprep.subr.mxu0 0.0
    %3241 = vmatpush1.msra.mxu0 0.0
    %3242 = vmatprep.subr.mxu0 0.0
    %3243 = vmatpush1.msra.mxu0 0.0
    %3244 = vmatprep.subr.mxu0 0.0
    %3245 = vmatpush1.msra.mxu0 0.0
    %3246 = vmatprep.subr.mxu0 0.0
    %3247 = vmatpush1.msra.mxu0 0.0
    %3248 = vmatprep.subr.mxu0 0.0
    %3249 = vmatpush1.msra.mxu0 0.0
    %3250 = vmatprep.subr.mxu0 0.0
    %3251 = vmatpush1.msra.mxu0 0.0
    %3252 = vmatprep.subr.mxu0 0.0
    %3253 = vmatpush1.msra.mxu0 0.0
    %3254 = vmatprep.subr.mxu0 0.0
    %3255 = vmatpush1.msra.mxu0 0.0
    %3256 = vmatprep.subr.mxu0 0.0
    %3257 = vmatpush1.msra.mxu0 0.0
    %3258 = vmatprep.subr.mxu0 0.0
    %3259 = vmatpush1.msra.mxu0 0.0
    %3260 = vmatprep.subr.mxu0 0.0
    %3261 = vmatpush1.msra.mxu0 0.0
    %3262 = vmatprep.subr.mxu0 0.0
    %3263 = vmatpush1.msra.mxu0 0.0
    %3264 = vmatprep.mubr.f32.mxu0 0.0
    %3265 = vmatmul.mubr.f32.gmra.mrb[0].mxu0 %v3198
    %v3266 = vpop.f32.mrb[0].mxu0
    %v3267 = vadd.f32 0.0, %v3266
    %v3268 = vpop.f32.mrb[0].mxu0
    %3269 = vdwg.mxu0
    %v3270 = vadd.f32 %v3173, %v3267
    %s3271 = scalar_lea.vmem %s7, 240
    %v3272 = vld [vmem:[%s3271] sm:$0xff]
    %v3273 = vld [vmem:[%s3271 + $0x8] sm:$0xff]
    %v3274 = vld [vmem:[%s3271 + $0x10] sm:$0xff]
    %v3275 = vld [vmem:[%s3271 + $0x18] sm:$0xff]
    %v3276 = vld [vmem:[%s3271 + $0x20] sm:$0xff]
    %v3277 = vld [vmem:[%s3271 + $0x28] sm:$0xff]
    %v3278 = vld [vmem:[%s3271 + $0x30] sm:$0xff]
    %v3279 = vld [vmem:[%s3271 + $0x38] sm:$0xff]
    %v3280 = vld [vmem:[%s3271 + $0x40] sm:$0xff]
    %v3281 = vld [vmem:[%s3271 + $0x48] sm:$0xff]
    %v3284 = vlaneseq
    %v3285 = vshrl.u32 %v3284, 7
    %v3286 = vsub.s32 0, %v3285
    %v3287 = vrot.slane %v2983, %v3286
    %v3288 = vlaneseq
    %v3289 = vshrl.u32 %v3288, 7
    %v3290 = vsub.s32 0, %v3289
    %v3291 = vrot.slane %v2987, %v3290
    %v3292 = vsel %vm1881, %v3291, %v3287
    %v3293 = vsel %vm3020, %v3292, 0
    %3295 = vmatprep.subr.mxu0 0.0
    %3296 = vmatpush1.msra.mxu0 %v3272
    %3297 = vmatprep.subr.mxu0 0.0
    %3298 = vmatpush1.msra.mxu0 %v3273
    %3299 = vmatprep.subr.mxu0 0.0
    %3300 = vmatpush1.msra.mxu0 %v3274
    %3301 = vmatprep.subr.mxu0 0.0
    %3302 = vmatpush1.msra.mxu0 %v3275
    %3303 = vmatprep.subr.mxu0 0.0
    %3304 = vmatpush1.msra.mxu0 %v3276
    %3305 = vmatprep.subr.mxu0 0.0
    %3306 = vmatpush1.msra.mxu0 %v3277
    %3307 = vmatprep.subr.mxu0 0.0
    %3308 = vmatpush1.msra.mxu0 %v3278
    %3309 = vmatprep.subr.mxu0 0.0
    %3310 = vmatpush1.msra.mxu0 %v3279
    %3311 = vmatprep.subr.mxu0 0.0
    %3312 = vmatpush1.msra.mxu0 %v3280
    %3313 = vmatprep.subr.mxu0 0.0
    %3314 = vmatpush1.msra.mxu0 %v3281
    %3315 = vmatprep.subr.mxu0 0.0
    %3316 = vmatpush1.msra.mxu0 0.0
    %3317 = vmatprep.subr.mxu0 0.0
    %3318 = vmatpush1.msra.mxu0 0.0
    %3319 = vmatprep.subr.mxu0 0.0
    %3320 = vmatpush1.msra.mxu0 0.0
    %3321 = vmatprep.subr.mxu0 0.0
    %3322 = vmatpush1.msra.mxu0 0.0
    %3323 = vmatprep.subr.mxu0 0.0
    %3324 = vmatpush1.msra.mxu0 0.0
    %3325 = vmatprep.subr.mxu0 0.0
    %3326 = vmatpush1.msra.mxu0 0.0
    %3327 = vmatprep.subr.mxu0 0.0
    %3328 = vmatpush1.msra.mxu0 0.0
    %3329 = vmatprep.subr.mxu0 0.0
    %3330 = vmatpush1.msra.mxu0 0.0
    %3331 = vmatprep.subr.mxu0 0.0
    %3332 = vmatpush1.msra.mxu0 0.0
    %3333 = vmatprep.subr.mxu0 0.0
    %3334 = vmatpush1.msra.mxu0 0.0
    %3335 = vmatprep.subr.mxu0 0.0
    %3336 = vmatpush1.msra.mxu0 0.0
    %3337 = vmatprep.subr.mxu0 0.0
    %3338 = vmatpush1.msra.mxu0 0.0
    %3339 = vmatprep.subr.mxu0 0.0
    %3340 = vmatpush1.msra.mxu0 0.0
    %3341 = vmatprep.subr.mxu0 0.0
    %3342 = vmatpush1.msra.mxu0 0.0
    %3343 = vmatprep.subr.mxu0 0.0
    %3344 = vmatpush1.msra.mxu0 0.0
    %3345 = vmatprep.subr.mxu0 0.0
    %3346 = vmatpush1.msra.mxu0 0.0
    %3347 = vmatprep.subr.mxu0 0.0
    %3348 = vmatpush1.msra.mxu0 0.0
    %3349 = vmatprep.subr.mxu0 0.0
    %3350 = vmatpush1.msra.mxu0 0.0
    %3351 = vmatprep.subr.mxu0 0.0
    %3352 = vmatpush1.msra.mxu0 0.0
    %3353 = vmatprep.subr.mxu0 0.0
    %3354 = vmatpush1.msra.mxu0 0.0
    %3355 = vmatprep.subr.mxu0 0.0
    %3356 = vmatpush1.msra.mxu0 0.0
    %3357 = vmatprep.subr.mxu0 0.0
    %3358 = vmatpush1.msra.mxu0 0.0
    %3359 = vmatprep.mubr.f32.mxu0 0.0
    %3360 = vmatmul.mubr.f32.gmra.mrb[0].mxu0 %v3293
    %v3361 = vpop.f32.mrb[0].mxu0
    %v3362 = vadd.f32 0.0, %v3361
    %v3363 = vpop.f32.mrb[0].mxu0
    %3364 = vdwg.mxu0
    %v3365 = vadd.f32 %v3270, %v3362
    %v3366 = vld [vmem:[%s8] sm:$0x1]
    %v3368 = vlaneseq
    %v3369 = vshrl.u32 %v3368, 7
    %v3370 = vsub.s32 0, %v3369
    %v3371 = vrot.slane %v3366, %v3370
    %v3373 = vadd.f32 %v3365, %v3371
    %v3374 = vmax.f32 %v3373, 0.0
    %v3375 = vld [vmem:[%s9] sm:$0xff]
    %v3376 = vld [vmem:[%s9 + $0x8] sm:$0xff]
    %v3377 = vld [vmem:[%s9 + $0x10] sm:$0xff]
    %v3378 = vld [vmem:[%s9 + $0x18] sm:$0xff]
    %v3379 = vld [vmem:[%s9 + $0x20] sm:$0xff]
    %v3380 = vld [vmem:[%s9 + $0x28] sm:$0xff]
    %v3381 = vld [vmem:[%s9 + $0x30] sm:$0x3]
    %v3382 = vld [vmem:[%s10] sm:$0x1]
    %v3384 = vlaneseq
    %v3385 = vshrl.u32 %v3384, 7
    %v3386 = vsub.s32 0, %v3385
    %v3387 = vrot.slane %v3382, %v3386
    %vm3389 = vcmask 408576
    %v3391 = vsel %vm3389, %v3374, 0
    %vm3393 = vcmask 1041408
    %v3395 = vsel %vm3393, %v3381, 0
    %3397 = vmatprep.subr.mxu0 0.0
    %3398 = vmatpush1.msra.mxu0 %v3375
    %3399 = vmatprep.subr.mxu0 0.0
    %3400 = vmatpush1.msra.mxu0 %v3376
    %3401 = vmatprep.subr.mxu0 0.0
    %3402 = vmatpush1.msra.mxu0 %v3377
    %3403 = vmatprep.subr.mxu0 0.0
    %3404 = vmatpush1.msra.mxu0 %v3378
    %3405 = vmatprep.subr.mxu0 0.0
    %3406 = vmatpush1.msra.mxu0 %v3379
    %3407 = vmatprep.subr.mxu0 0.0
    %3408 = vmatpush1.msra.mxu0 %v3380
    %3409 = vmatprep.subr.mxu0 0.0
    %3410 = vmatpush1.msra.mxu0 %v3395
    %3411 = vmatprep.subr.mxu0 0.0
    %3412 = vmatpush1.msra.mxu0 0.0
    %3413 = vmatprep.subr.mxu0 0.0
    %3414 = vmatpush1.msra.mxu0 0.0
    %3415 = vmatprep.subr.mxu0 0.0
    %3416 = vmatpush1.msra.mxu0 0.0
    %3417 = vmatprep.subr.mxu0 0.0
    %3418 = vmatpush1.msra.mxu0 0.0
    %3419 = vmatprep.subr.mxu0 0.0
    %3420 = vmatpush1.msra.mxu0 0.0
    %3421 = vmatprep.subr.mxu0 0.0
    %3422 = vmatpush1.msra.mxu0 0.0
    %3423 = vmatprep.subr.mxu0 0.0
    %3424 = vmatpush1.msra.mxu0 0.0
    %3425 = vmatprep.subr.mxu0 0.0
    %3426 = vmatpush1.msra.mxu0 0.0
    %3427 = vmatprep.subr.mxu0 0.0
    %3428 = vmatpush1.msra.mxu0 0.0
    %3429 = vmatprep.subr.mxu0 0.0
    %3430 = vmatpush1.msra.mxu0 0.0
    %3431 = vmatprep.subr.mxu0 0.0
    %3432 = vmatpush1.msra.mxu0 0.0
    %3433 = vmatprep.subr.mxu0 0.0
    %3434 = vmatpush1.msra.mxu0 0.0
    %3435 = vmatprep.subr.mxu0 0.0
    %3436 = vmatpush1.msra.mxu0 0.0
    %3437 = vmatprep.subr.mxu0 0.0
    %3438 = vmatpush1.msra.mxu0 0.0
    %3439 = vmatprep.subr.mxu0 0.0
    %3440 = vmatpush1.msra.mxu0 0.0
    %3441 = vmatprep.subr.mxu0 0.0
    %3442 = vmatpush1.msra.mxu0 0.0
    %3443 = vmatprep.subr.mxu0 0.0
    %3444 = vmatpush1.msra.mxu0 0.0
    %3445 = vmatprep.subr.mxu0 0.0
    %3446 = vmatpush1.msra.mxu0 0.0
    %3447 = vmatprep.subr.mxu0 0.0
    %3448 = vmatpush1.msra.mxu0 0.0
    %3449 = vmatprep.subr.mxu0 0.0
    %3450 = vmatpush1.msra.mxu0 0.0
    %3451 = vmatprep.subr.mxu0 0.0
    %3452 = vmatpush1.msra.mxu0 0.0
    %3453 = vmatprep.subr.mxu0 0.0
    %3454 = vmatpush1.msra.mxu0 0.0
    %3455 = vmatprep.subr.mxu0 0.0
    %3456 = vmatpush1.msra.mxu0 0.0
    %3457 = vmatprep.subr.mxu0 0.0
    %3458 = vmatpush1.msra.mxu0 0.0
    %3459 = vmatprep.subr.mxu0 0.0
    %3460 = vmatpush1.msra.mxu0 0.0
    %3461 = vmatprep.mubr.f32.mxu0 0.0
    %3462 = vmatmul.mubr.f32.gmra.mrb[0].mxu0 %v3391
    %v3463 = vpop.f32.mrb[0].mxu0
    %v3464 = vadd.f32 %v3387, %v3463
    %v3465 = vpop.f32.mrb[0].mxu0
    %3466 = vdwg.mxu0
    %vm3467 = vcmask 74752
    %3468 = vst.msk [vmem:[#allocation2] sm:$0x3] %vm3467, %v3464
    // Predicated region
    $region46: #{clf_forward.1} parent=1 // pred_check
      _
    $region47: #{clf_forward.1} parent=1 // pred_check_branch
      %3470 = sbr.rel (0) target = $region49
    $region48: #{clf_forward.1} parent=1 // pred_region
      %s3472 = ssub.s32 32, 32
      %3473 = vsyncadd [#allocation3], %s3472
      %s3475 = sshll.u32 [#allocation2], 4
      %s3476 = int_to_ptr.vmem [resolvable:$true] %s3475
      %3478 = dma.vmem_to_hbm [thread:$0]  %s3476, 32, %s11, [#allocation3]
    $region49: #{clf_forward.1} parent=1 // pred_fallthru
      _
    // Predicated region
    $region50: #{clf_forward.1} parent=1 // pred_check
      _
    $region51: #{clf_forward.1} parent=1 // pred_check_branch
      %3480 = sbr.rel (0) target = $region53
    $region52: #{clf_forward.1} parent=1 // pred_region
      %3481 = dma.done [#allocation3], 32
    $region53: #{clf_forward.1} parent=1 // pred_fallthru
      _
    %3482 = vsyncpa [#allocation3], 1

</llo_original>
